<compile_context>
chip_gen: v6e
topology: v6e:2x2x1
jax: 0.10.0
libtpu: 0.0.40
codegen_flags: <defaults>
</compile_context>

<pallas_src>
import jax
import jax.numpy as jnp
from jax import lax
from jax.experimental import pallas as pl
from jax.experimental.pallas import tpu as pltpu

PAD = 0            # Constants.PAD
LN_EPS = 1e-6      # TODO(synk): the historical repo used a custom LayerNormalization
                   # with torch.std()+eps (eps=1e-3); standard LayerNorm semantics used here.
NEG_BIG = -1e30    # large finite negative instead of -inf (avoids NaN on fully-masked rows)


# ----------------------------------------------------------------------------
# Capability probe: single-buffered (grid-invariant) weight blocks.
# ----------------------------------------------------------------------------
_BUFFERED1 = None


def _single_buffered_weights_supported():
    """Probe whether pl.Buffered(1) in BlockSpec.pipeline_mode compiles on this
    Pallas/Mosaic build; fall back to default double buffering otherwise."""
    global _BUFFERED1
    if _BUFFERED1 is None:
        def probe(x_ref, o_ref):
            o_ref[...] = x_ref[...] + 1.0
        try:
            out = pl.pallas_call(
                probe,
                out_shape=jax.ShapeDtypeStruct((8, 128), jnp.float32),
                grid=(2,),
                in_specs=[pl.BlockSpec((8, 128), lambda i: (0, 0),
                                       pipeline_mode=pl.Buffered(1))],
                out_specs=pl.BlockSpec((8, 128), lambda i: (0, 0)),
            )(jnp.zeros((8, 128), jnp.float32))
            jax.block_until_ready(out)
            _BUFFERED1 = True
        except Exception:
            _BUFFERED1 = False
    return _BUFFERED1


# ----------------------------------------------------------------------------
# Fused DecoderLayer kernel: masked self-MHA -> enc-dec MHA -> position-wise FFN,
# each with residual + LayerNorm. `block_b` batch elements per grid step.
# ----------------------------------------------------------------------------
def make_layer_kernel(n_head, d_k, d_v, block_b):
    Hk = n_head * d_k
    Hv = n_head * d_v

    def kernel(x_ref, enc_ref, tpad_ref, spad_ref,
               s_wqkv, s_wo, s_bo, s_g, s_b,
               c_wq, c_wkv, c_wo, c_bo, c_g, c_b,
               f_w1, f_b1, f_w2, f_b2, f_g, f_b,
               o_ref):
        Bb, Lq, D = x_ref.shape
        Lk = enc_ref.shape[1]
        # Flatten the batch block into rows: taller M for every MXU matmul.
        x = x_ref[...].reshape(Bb * Lq, D)       # bf16
        enc = enc_ref[...].reshape(Bb * Lk, D)   # bf16

        def layer_norm(y, g_ref, b_ref):
            mu = jnp.mean(y, axis=-1, keepdims=True)
            var = jnp.mean((y - mu) ** 2, axis=-1, keepdims=True)
            return (y - mu) * lax.rsqrt(var + LN_EPS) * g_ref[...] + b_ref[...]

        def mha(qp, kp, vp, bias, wo_ref, bo_ref, resid, g_ref, b_ref):
            # Head-batched attention: ONE batched dot_general for all heads'
            # scores and ONE for P@V — no per-head lane slicing, no concat,
            # and each head's f32 intermediates don't all stay live at once.
            lq = qp.shape[0]
            lk = kp.shape[0]
            q3 = qp.reshape(lq, n_head, d_k)
            k3 = kp.reshape(lk, n_head, d_k)
            v3 = vp.reshape(lk, n_head, d_v)
            s = jnp.einsum('qhd,khd->hqk', q3, k3,
                           preferred_element_type=jnp.float32)        # (H, lq, lk) f32
            s = s + bias[None, :, :]
            s = s - jnp.max(s, axis=-1, keepdims=True)
            p = jnp.exp(s)
            # approx reciprocal -> EUP slot (near free); ~1e-3 rel err, fine for inference
            p = p * pl.reciprocal(jnp.sum(p, axis=-1, keepdims=True), approx=True)
            o = jnp.einsum('hqk,khd->qhd', p.astype(jnp.bfloat16), v3,
                           preferred_element_type=jnp.float32)         # (lq, H, d_v)
            o = o.reshape(lq, Hv).astype(jnp.bfloat16)
            out = jnp.dot(o, wo_ref[...], preferred_element_type=jnp.float32) + bo_ref[...]
            out = out + resid.astype(jnp.float32)                      # residual
            return layer_norm(out, g_ref, b_ref).astype(jnp.bfloat16)

        # causal (subsequent) mask component, shared by every batch element
        row = lax.broadcasted_iota(jnp.int32, (Lq, Lq), 0)
        col = lax.broadcasted_iota(jnp.int32, (Lq, Lq), 1)
        causal = col > row

        # ---- 1) masked multi-head self-attention --------------------------------
        # ONE fused (D, H*(2*d_k+d_v)) Q|K|V projection (single wide MXU matmul).
        qkv = jnp.dot(x, s_wqkv[...],
                      preferred_element_type=jnp.float32).astype(jnp.bfloat16)
        qp_a, kp_a, vp_a = qkv[:, :Hk], qkv[:, Hk:2 * Hk], qkv[:, 2 * Hk:]

        h1_parts = []
        for bb in range(block_b):                        # static; block_b is small
            r = slice(bb * Lq, (bb + 1) * Lq)
            forbid = jnp.logical_or(causal, tpad_ref[bb] == PAD)   # causal OR key-is-PAD
            bias = jnp.where(forbid, jnp.float32(NEG_BIG), jnp.float32(0.0))
            h1_parts.append(mha(qp_a[r], kp_a[r], vp_a[r], bias,
                                s_wo, s_bo, x[r], s_g, s_b))
        h1 = h1_parts[0] if block_b == 1 else jnp.concatenate(h1_parts, axis=0)

        # ---- 2) encoder-decoder attention ---------------------------------------
        # Fused K|V projection of the encoder output; Q projected from h1.
        qp2 = jnp.dot(h1, c_wq[...],
                      preferred_element_type=jnp.float32).astype(jnp.bfloat16)
        kv2 = jnp.dot(enc, c_wkv[...],
                      preferred_element_type=jnp.float32).astype(jnp.bfloat16)
        kp2, vp2 = kv2[:, :Hk], kv2[:, Hk:]

        h2_parts = []
        for bb in range(block_b):
            rq = slice(bb * Lq, (bb + 1) * Lq)
            rk = slice(bb * Lk, (bb + 1) * Lk)
            bias = jnp.where(spad_ref[bb] == PAD,
                             jnp.float32(NEG_BIG), jnp.float32(0.0))   # (1, Lk)
            h2_parts.append(mha(qp2[rq], kp2[rk], vp2[rk], bias,
                                c_wo, c_bo, h1[rq], c_g, c_b))
        h2 = h2_parts[0] if block_b == 1 else jnp.concatenate(h2_parts, axis=0)

        # ---- 3) position-wise FFN (Conv1d kernel=1 == matmul over features) -----
        t = jnp.dot(h2, f_w1[...], preferred_element_type=jnp.float32) + f_b1[...]
        t = jnp.maximum(t, 0.0).astype(jnp.bfloat16)                   # ReLU
        y = jnp.dot(t, f_w2[...], preferred_element_type=jnp.float32) + f_b2[...]
        y = y + h2.astype(jnp.float32)                                 # residual
        o_ref[...] = layer_norm(y, f_g, f_b).astype(o_ref.dtype).reshape(Bb, Lq, D)

    return kernel


# ----------------------------------------------------------------------------
# Wrapper-side sizing helpers
# ----------------------------------------------------------------------------
def _pick_block_b(B, Lq, Lk, D, d_inner, H, d_k, d_v):
    # Rough f32-dominant per-batch-element working set (activations + score mats).
    per_elem = 4 * (Lq * D * 8 + Lk * D * 2
                    + H * Lq * (Lq + Lk) * 3 + Lq * d_inner * 2)
    best = 1
    for bb in range(1, B + 1):
        if B % bb:
            continue
        if bb * per_elem > (8 << 20):
            continue
        # Keep >= 2 grid steps so the "parallel" batch axis can be split across
        # the two TensorCores on v7x; on v5e/v6e (1 TC) this is neutral.
        if B // bb >= 2 or B == 1:
            best = bb
    return best


def _vmem_limit_bytes(block_b, Lq, Lk, D, d_inner, H, d_k, d_v, weight_bufs):
    bf16, f32 = 2, 4
    # activation blocks (x, enc, out), double-buffered by the pipeline
    act = 2 * bf16 * block_b * (2 * Lq * D + Lk * D)
    pads = 2 * 4 * block_b * (Lq + Lk)
    # per-layer weights (bf16) x buffer count
    w = weight_bufs * bf16 * (D * H * (2 * d_k + d_v)      # self wqkv
                              + D * H * d_k                # cross wq
                              + D * H * (d_k + d_v)        # cross wkv
                              + 2 * H * d_v * D            # two output projections
                              + 2 * D * d_inner)           # ffn w1 + w2
    w += weight_bufs * f32 * (8 * D + 2 * d_inner)         # biases / LN params
    # in-kernel f32 intermediates (scores, probs, ffn hidden, residual temps)
    inter = f32 * block_b * (H * Lq * (Lq + Lk) * 3 + 2 * Lq * d_inner + 8 * Lq * D)
    est = act + pads + w + inter
    # 2x headroom + 8 MiB slack; clamp so the limit is valid on v5e/v6e/v7x.
    return int(min(max(2 * est + (8 << 20), 32 << 20), 64 << 20))


def decoder_layer(x, enc, tpad, spad, lp, *, n_head, d_k, d_v, block_b):
    B, Lq, D = x.shape
    Lk = enc.shape[1]
    d_inner = lp["ffn"]["w1"].shape[1]

    single_buf = _single_buffered_weights_supported()
    weight_bufs = 1 if single_buf else 2

    def const_spec(a):
        nd = a.ndim
        idx = lambda b, _nd=nd: (0,) * _nd
        if single_buf:
            # Grid-invariant weights: single-buffer to halve their VMEM footprint.
            return pl.BlockSpec(a.shape, idx, pipeline_mode=pl.Buffered(1))
        return pl.BlockSpec(a.shape, idx)

    in_specs = [
        pl.BlockSpec((block_b, Lq, D), lambda b: (b, 0, 0)),   # x
        pl.BlockSpec((block_b, Lk, D), lambda b: (b, 0, 0)),   # enc_output
        pl.BlockSpec((block_b, 1, Lq), lambda b: (b, 0, 0)),   # tgt pad ids
        pl.BlockSpec((block_b, 1, Lk), lambda b: (b, 0, 0)),   # src pad ids
    ]
    args = [x, enc, tpad, spad]
    for name, keys in (("slf", ("wqkv", "wo", "bo", "gamma", "beta")),
                       ("enc", ("wq", "wkv", "wo", "bo", "gamma", "beta")),
                       ("ffn", ("w1", "b1", "w2", "b2", "gamma", "beta"))):
        for kname in keys:
            a = lp[name][kname]
            in_specs.append(const_spec(a))
            args.append(a)

    return pl.pallas_call(
        make_layer_kernel(n_head, d_k, d_v, block_b),
        out_shape=jax.ShapeDtypeStruct((B, Lq, D), jnp.bfloat16),
        grid=(B // block_b,),
        in_specs=in_specs,
        out_specs=pl.BlockSpec((block_b, Lq, D), lambda b: (b, 0, 0)),
        compiler_params=pltpu.CompilerParams(
            dimension_semantics=("parallel",),   # batch elements independent -> megacore
            vmem_limit_bytes=_vmem_limit_bytes(block_b, Lq, Lk, D, d_inner,
                                               n_head, d_k, d_v, weight_bufs)),
    )(*args)


# ----------------------------------------------------------------------------
# Parameter init (deterministic, synthetic), packed for the kernel:
# head-fused + QKV-fused weights, logit scale folded into wq, bf16 weights.
# ----------------------------------------------------------------------------
def init_decoder_params(key, n_layers, n_head, d_k, d_v, d_model, d_inner):
    # The historical repo scales attention logits by 1/sqrt(d_model)
    # (ScaledDotProductAttention(d_model)); folded into wq here.
    scale = 1.0 / float(d_model) ** 0.5
    params = []
    for _ in range(n_layers):
        layer = {}

        def attn_weights(k):
            k1, k2, k3, k4 = jax.random.split(k, 4)
            wq = jax.random.normal(k1, (n_head, d_model, d_k), jnp.float32) / jnp.sqrt(d_model)
            wk = jax.random.normal(k2, (n_head, d_model, d_k), jnp.float32) / jnp.sqrt(d_model)
            wv = jax.random.normal(k3, (n_head, d_model, d_v), jnp.float32) / jnp.sqrt(d_model)
            wo = jax.random.normal(k4, (n_head * d_v, d_model), jnp.float32) / jnp.sqrt(n_head * d_v)
            # head-fused packing: (D, H*d) with columns ordered head0 | head1 | ...
            wq_p = (wq * scale).transpose(1, 0, 2).reshape(d_model, n_head * d_k)
            wk_p = wk.transpose(1, 0, 2).reshape(d_model, n_head * d_k)
            wv_p = wv.transpose(1, 0, 2).reshape(d_model, n_head * d_v)
            common = dict(
                wo=wo.astype(jnp.bfloat16),
                bo=jnp.zeros((1, d_model), jnp.float32),
                gamma=jnp.ones((1, d_model), jnp.float32),
                beta=jnp.zeros((1, d_model), jnp.float32),
            )
            return wq_p, wk_p, wv_p, common

        key, ks, kc, k1, k2 = jax.random.split(key, 5)

        wq_p, wk_p, wv_p, common = attn_weights(ks)
        layer["slf"] = dict(
            wqkv=jnp.concatenate([wq_p, wk_p, wv_p], axis=1).astype(jnp.bfloat16),
            **common)

        wq_p, wk_p, wv_p, common = attn_weights(kc)
        layer["enc"] = dict(
            wq=wq_p.astype(jnp.bfloat16),
            wkv=jnp.concatenate([wk_p, wv_p], axis=1).astype(jnp.bfloat16),
            **common)

        layer["ffn"] = dict(
            w1=(jax.random.normal(k1, (d_model, d_inner), jnp.float32) / jnp.sqrt(d_model)).astype(jnp.bfloat16),
            b1=jnp.zeros((1, d_inner), jnp.float32),
            w2=(jax.random.normal(k2, (d_inner, d_model), jnp.float32) / jnp.sqrt(d_inner)).astype(jnp.bfloat16),
            b2=jnp.zeros((1, d_model), jnp.float32),
            gamma=jnp.ones((1, d_model), jnp.float32),
            beta=jnp.zeros((1, d_model), jnp.float32),
        )
        params.append(layer)
    return params


def decoder_forward(tgt_seq, tgt_pad_mask, src_pad_mask, enc_output, params,
                    *, n_head, d_k, d_v):
    B, Lq, _ = tgt_seq.shape
    Lk = enc_output.shape[1]
    d_inner = params[0]["ffn"]["w1"].shape[1]
    dec = tgt_seq.astype(jnp.bfloat16)
    enc = enc_output.astype(jnp.bfloat16)
    tpad = tgt_pad_mask.astype(jnp.int32).reshape(B, 1, Lq)
    spad = src_pad_mask.astype(jnp.int32).reshape(B, 1, Lk)
    block_b = _pick_block_b(B, Lq, Lk, tgt_seq.shape[-1], d_inner, n_head, d_k, d_v)
    for lp in params:
        dec = decoder_layer(dec, enc, tpad, spad, lp,
                            n_head=n_head, d_k=d_k, d_v=d_v, block_b=block_b)
    return (dec,)


if __name__ == "__main__":
    # small, forward-consistent shapes
    B, Lq, Lk = 2, 8, 16
    n_layers, n_head, d_k, d_v = 2, 4, 8, 8
    d_model, d_inner = 32, 64

    key = jax.random.PRNGKey(0)
    k_in, k_enc, k_par = jax.random.split(key, 3)

    tgt_seq = jax.random.normal(k_in, (B, Lq, d_model), jnp.float32)     # decoder-side embeddings
    enc_output = jax.random.normal(k_enc, (B, Lk, d_model), jnp.float32)
    # integer token ids, PAD == 0 at the tail
    tgt_pad_mask = jnp.array([[1, 2, 3, 4, 5, 6, 0, 0],
                              [7, 8, 9, 1, 2, 0, 0, 0]], jnp.int32)
    src_pad_mask = jnp.array([[1] * 14 + [0, 0],
                              [1] * 11 + [0] * 5], jnp.int32)

    params = init_decoder_params(k_par, n_layers, n_head, d_k, d_v, d_model, d_inner)

    (dec_out,) = decoder_forward(tgt_seq, tgt_pad_mask, src_pad_mask, enc_output, params,
                                 n_head=n_head, d_k=d_k, d_v=d_v)
    dec_out = jax.block_until_ready(dec_out)
    assert dec_out.shape == (B, Lq, d_model)
    assert bool(jnp.all(jnp.isfinite(dec_out.astype(jnp.float32))))
    print("KERNEL_OK")
</pallas_src>

<mosaic_0001>
module attributes {stable_mosaic.version = 11 : i64} {
  func.func @probe(%arg0: i32, %arg1: memref<8x128xf32, #tpu.memory_space<vmem>>, %arg2: memref<8x128xf32, #tpu.memory_space<vmem>>) attributes {dimension_semantics = [#tpu.dimension_semantics<arbitrary>], iteration_bounds = array<i64: 2>, scalar_prefetch = 0 : i64, scratch_operands = 0 : i64, tpu.core_type = #tpu.core_type<tc>, window_params = [{pipeline_mode = #tpu.pipeline_mode<synchronous>, transform_indices = @transform_0, window_bounds = array<i64: 8, 128>}, {pipeline_mode = #tpu.pipeline_mode<synchronous>, transform_indices = @transform_1, window_bounds = array<i64: 8, 128>}]} {
    %c0 = arith.constant 0 : index
    %c0_0 = arith.constant 0 : index
    %0 = vector.load %arg1[%c0, %c0_0] : memref<8x128xf32, #tpu.memory_space<vmem>>, vector<8x128xf32>
    %cst = arith.constant 1.000000e+00 : f32
    %1 = vector.broadcast %cst : f32 to vector<8x128xf32>
    %2 = arith.addf %0, %1 : vector<8x128xf32>
    %c0_1 = arith.constant 0 : index
    %c0_2 = arith.constant 0 : index
    %3 = vector.load %arg2[%c0_1, %c0_2] : memref<8x128xf32, #tpu.memory_space<vmem>>, vector<8x128xf32>
    tpu.vector_store %arg2[%c0_1, %c0_2], %2 {strides = array<i32>} : memref<8x128xf32, #tpu.memory_space<vmem>>, vector<8x128xf32>,
    return
  }
  func.func @transform_0(%arg0: i32) -> (i32, i32) {
    %c0_i32 = arith.constant 0 : i32
    %c0_i32_0 = arith.constant 0 : i32
    %c0_i32_1 = arith.constant 0 : i32
    return %c0_i32, %c0_i32_0 : i32, i32
  }
  func.func @transform_1(%arg0: i32) -> (i32, i32) {
    %c0_i32 = arith.constant 0 : i32
    %c0_i32_0 = arith.constant 0 : i32
    %c0_i32_1 = arith.constant 0 : i32
    return %c0_i32, %c0_i32_0 : i32, i32
  }
}

module attributes {stable_mosaic.version = 11 : i64} {
  func.func @kernel(%arg0: i32, %arg1: memref<1x8x32xbf16, #tpu.memory_space<vmem>>, %arg2: memref<1x16x32xbf16, #tpu.memory_space<vmem>>, %arg3: memref<1x1x8xi32, #tpu.memory_space<vmem>>, %arg4: memref<1x1x16xi32, #tpu.memory_space<vmem>>, %arg5: memref<32x96xbf16, #tpu.memory_space<vmem>>, %arg6: memref<32x32xbf16, #tpu.memory_space<vmem>>, %arg7: memref<1x32xf32, #tpu.memory_space<vmem>>, %arg8: memref<1x32xf32, #tpu.memory_space<vmem>>, %arg9: memref<1x32xf32, #tpu.memory_space<vmem>>, %arg10: memref<32x32xbf16, #tpu.memory_space<vmem>>, %arg11: memref<32x64xbf16, #tpu.memory_space<vmem>>, %arg12: memref<32x32xbf16, #tpu.memory_space<vmem>>, %arg13: memref<1x32xf32, #tpu.memory_space<vmem>>, %arg14: memref<1x32xf32, #tpu.memory_space<vmem>>, %arg15: memref<1x32xf32, #tpu.memory_space<vmem>>, %arg16: memref<32x64xbf16, #tpu.memory_space<vmem>>, %arg17: memref<1x64xf32, #tpu.memory_space<vmem>>, %arg18: memref<64x32xbf16, #tpu.memory_space<vmem>>, %arg19: memref<1x32xf32, #tpu.memory_space<vmem>>, %arg20: memref<1x32xf32, #tpu.memory_space<vmem>>, %arg21: memref<1x32xf32, #tpu.memory_space<vmem>>, %arg22: memref<1x8x32xbf16, #tpu.memory_space<vmem>>) attributes {dimension_semantics = [#tpu.dimension_semantics<parallel>], iteration_bounds = array<i64: 2>, scalar_prefetch = 0 : i64, scratch_operands = 0 : i64, tpu.core_type = #tpu.core_type<tc>, window_params = [{transform_indices = @transform_0, window_bounds = array<i64: 1, 8, 32>}, {transform_indices = @transform_1, window_bounds = array<i64: 1, 16, 32>}, {transform_indices = @transform_2, window_bounds = array<i64: 1, 1, 8>}, {transform_indices = @transform_3, window_bounds = array<i64: 1, 1, 16>}, {pipeline_mode = #tpu.pipeline_mode<synchronous>, transform_indices = @transform_4, window_bounds = array<i64: 32, 96>}, {pipeline_mode = #tpu.pipeline_mode<synchronous>, transform_indices = @transform_5, window_bounds = array<i64: 32, 32>}, {pipeline_mode = #tpu.pipeline_mode<synchronous>, transform_indices = @transform_6, window_bounds = array<i64: 1, 32>}, {pipeline_mode = #tpu.pipeline_mode<synchronous>, transform_indices = @transform_7, window_bounds = array<i64: 1, 32>}, {pipeline_mode = #tpu.pipeline_mode<synchronous>, transform_indices = @transform_8, window_bounds = array<i64: 1, 32>}, {pipeline_mode = #tpu.pipeline_mode<synchronous>, transform_indices = @transform_9, window_bounds = array<i64: 32, 32>}, {pipeline_mode = #tpu.pipeline_mode<synchronous>, transform_indices = @transform_10, window_bounds = array<i64: 32, 64>}, {pipeline_mode = #tpu.pipeline_mode<synchronous>, transform_indices = @transform_11, window_bounds = array<i64: 32, 32>}, {pipeline_mode = #tpu.pipeline_mode<synchronous>, transform_indices = @transform_12, window_bounds = array<i64: 1, 32>}, {pipeline_mode = #tpu.pipeline_mode<synchronous>, transform_indices = @transform_13, window_bounds = array<i64: 1, 32>}, {pipeline_mode = #tpu.pipeline_mode<synchronous>, transform_indices = @transform_14, window_bounds = array<i64: 1, 32>}, {pipeline_mode = #tpu.pipeline_mode<synchronous>, transform_indices = @transform_15, window_bounds = array<i64: 32, 64>}, {pipeline_mode = #tpu.pipeline_mode<synchronous>, transform_indices = @transform_16, window_bounds = array<i64: 1, 64>}, {pipeline_mode = #tpu.pipeline_mode<synchronous>, transform_indices = @transform_17, window_bounds = array<i64: 64, 32>}, {pipeline_mode = #tpu.pipeline_mode<synchronous>, transform_indices = @transform_18, window_bounds = array<i64: 1, 32>}, {pipeline_mode = #tpu.pipeline_mode<synchronous>, transform_indices = @transform_19, window_bounds = array<i64: 1, 32>}, {pipeline_mode = #tpu.pipeline_mode<synchronous>, transform_indices = @transform_20, window_bounds = array<i64: 1, 32>}, {transform_indices = @transform_21, window_bounds = array<i64: 1, 8, 32>}]} {
    %c0 = arith.constant 0 : index
    %c0_0 = arith.constant 0 : index
    %c0_1 = arith.constant 0 : index
    %0 = vector.load %arg1[%c0, %c0_0, %c0_1] : memref<1x8x32xbf16, #tpu.memory_space<vmem>>, vector<1x8x32xbf16>
    %1 = vector.shape_cast %0 : vector<1x8x32xbf16> to vector<8x32xbf16>
    %c0_2 = arith.constant 0 : index
    %c0_3 = arith.constant 0 : index
    %c0_4 = arith.constant 0 : index
    %2 = vector.load %arg2[%c0_2, %c0_3, %c0_4] : memref<1x16x32xbf16, #tpu.memory_space<vmem>>, vector<1x16x32xbf16>
    %3 = vector.shape_cast %2 : vector<1x16x32xbf16> to vector<16x32xbf16>
    %4 = tpu.iota {dimensions = array<i32: 0>} : vector<8x8xi32>
    %5 = tpu.iota {dimensions = array<i32: 1>} : vector<8x8xi32>
    %6 = arith.cmpi sgt, %5, %4 : vector<8x8xi32>
    %c0_5 = arith.constant 0 : index
    %c0_6 = arith.constant 0 : index
    %7 = vector.load %arg5[%c0_5, %c0_6] : memref<32x96xbf16, #tpu.memory_space<vmem>>, vector<32x96xbf16>
    %cst = arith.constant dense<0.000000e+00> : vector<8x96xf32>
    %8 = tpu.matmul %1, %7, %cst {dimension_numbers = #tpu.dot_dimension_numbers<[1], [0], [0], [1], [0, 0, 1, 1], [], []>} : vector<8x32xbf16>, vector<32x96xbf16>, vector<8x96xf32> -> vector<8x96xf32>
    %9 = arith.truncf %8 : vector<8x96xf32> to vector<8x96xbf16>
    %10 = vector.extract_strided_slice %9 {offsets = [0, 0], sizes = [8, 32], strides = [1, 1]} : vector<8x96xbf16> to vector<8x32xbf16>
    %11 = vector.extract_strided_slice %9 {offsets = [0, 32], sizes = [8, 32], strides = [1, 1]} : vector<8x96xbf16> to vector<8x32xbf16>
    %12 = vector.extract_strided_slice %9 {offsets = [0, 64], sizes = [8, 32], strides = [1, 1]} : vector<8x96xbf16> to vector<8x32xbf16>
    %c0_7 = arith.constant 0 : index
    %c0_8 = arith.constant 0 : index
    %c0_9 = arith.constant 0 : index
    %13 = vector.load %arg3[%c0_7, %c0_8, %c0_9] : memref<1x1x8xi32, #tpu.memory_space<vmem>>, vector<1x1x8xi32>
    %14 = vector.shape_cast %13 : vector<1x1x8xi32> to vector<1x8xi32>
    %c0_i32 = arith.constant 0 : i32
    %15 = vector.broadcast %c0_i32 : i32 to vector<1x8xi32>
    %16 = arith.cmpi eq, %14, %15 : vector<1x8xi32>
    %17 = vector.broadcast %16 : vector<1x8xi1> to vector<8x8xi1>
    %18 = arith.ori %6, %17 : vector<8x8xi1>
    %cst_10 = arith.constant -1.000000e+30 : f32
    %cst_11 = arith.constant 0.000000e+00 : f32
    %19 = vector.broadcast %cst_10 : f32 to vector<8x8xf32>
    %20 = vector.broadcast %cst_11 : f32 to vector<8x8xf32>
    %21 = arith.select %18, %19, %20 : vector<8x8xi1>, vector<8x8xf32>
    %22 = vector.shape_cast %10 : vector<8x32xbf16> to vector<8x4x8xbf16>
    %23 = vector.shape_cast %11 : vector<8x32xbf16> to vector<8x4x8xbf16>
    %24 = vector.shape_cast %12 : vector<8x32xbf16> to vector<8x4x8xbf16>
    "tpu.trace_start"() <{level = 10 : i32, message = "qhd,khd->hqk"}> : () -> ()
    %cst_12 = arith.constant dense<0.000000e+00> : vector<4x8x8xf32>
    %25 = tpu.matmul %22, %23, %cst_12 {dimension_numbers = #tpu.dot_dimension_numbers<[2], [2], [0], [0], [0, 1, 0, 0, 1, 0], [1], [1]>} : vector<8x4x8xbf16>, vector<8x4x8xbf16>, vector<4x8x8xf32> -> vector<4x8x8xf32>
    "tpu.trace_stop"() : () -> ()
    %26 = vector.shape_cast %21 : vector<8x8xf32> to vector<1x8x8xf32>
    %27 = vector.broadcast %26 : vector<1x8x8xf32> to vector<4x8x8xf32>
    %28 = arith.addf %25, %27 : vector<4x8x8xf32>
    %cst_13 = arith.constant dense<0xFF800000> : vector<4x8xf32>
    %29 = vector.multi_reduction <maximumf>, %28, %cst_13 [2] : vector<4x8x8xf32> to vector<4x8xf32>
    %30 = vector.shape_cast %29 : vector<4x8xf32> to vector<4x8x1xf32>
    %31 = vector.broadcast %30 : vector<4x8x1xf32> to vector<4x8x8xf32>
    %32 = arith.subf %28, %31 : vector<4x8x8xf32>
    %33 = math.exp %32 : vector<4x8x8xf32>
    %cst_14 = arith.constant dense<0.000000e+00> : vector<4x8xf32>
    %34 = vector.multi_reduction <add>, %33, %cst_14 [2] : vector<4x8x8xf32> to vector<4x8xf32>
    %35 = vector.shape_cast %34 : vector<4x8xf32> to vector<4x8x1xf32>
    %36 = tpu.reciprocal %35 {approx = true} : vector<4x8x1xf32> -> vector<4x8x1xf32>
    %37 = vector.broadcast %36 : vector<4x8x1xf32> to vector<4x8x8xf32>
    %38 = arith.mulf %33, %37 : vector<4x8x8xf32>
    %39 = arith.truncf %38 : vector<4x8x8xf32> to vector<4x8x8xbf16>
    "tpu.trace_start"() <{level = 10 : i32, message = "hqk,khd->qhd"}> : () -> ()
    %cst_15 = arith.constant dense<0.000000e+00> : vector<4x8x8xf32>
    %40 = tpu.matmul %24, %39, %cst_15 {dimension_numbers = #tpu.dot_dimension_numbers<[0], [2], [2], [1], [0, 1, 0, 2, 1, 1], [1], [0]>} : vector<8x4x8xbf16>, vector<4x8x8xbf16>, vector<4x8x8xf32> -> vector<4x8x8xf32>
    %41 = tpu.transpose %40, [2, 0, 1] : vector<4x8x8xf32> -> vector<8x4x8xf32>
    "tpu.trace_stop"() : () -> ()
    %42 = vector.shape_cast %41 : vector<8x4x8xf32> to vector<8x32xf32>
    %43 = arith.truncf %42 : vector<8x32xf32> to vector<8x32xbf16>
    %c0_16 = arith.constant 0 : index
    %c0_17 = arith.constant 0 : index
    %44 = vector.load %arg6[%c0_16, %c0_17] : memref<32x32xbf16, #tpu.memory_space<vmem>>, vector<32x32xbf16>
    %cst_18 = arith.constant dense<0.000000e+00> : vector<8x32xf32>
    %45 = tpu.matmul %43, %44, %cst_18 {dimension_numbers = #tpu.dot_dimension_numbers<[1], [0], [0], [1], [0, 0, 1, 1], [], []>} : vector<8x32xbf16>, vector<32x32xbf16>, vector<8x32xf32> -> vector<8x32xf32>
    %c0_19 = arith.constant 0 : index
    %c0_20 = arith.constant 0 : index
    %46 = vector.load %arg7[%c0_19, %c0_20] : memref<1x32xf32, #tpu.memory_space<vmem>>, vector<1x32xf32>
    %47 = vector.broadcast %46 : vector<1x32xf32> to vector<8x32xf32>
    %48 = arith.addf %45, %47 : vector<8x32xf32>
    %49 = arith.extf %1 : vector<8x32xbf16> to vector<8x32xf32>
    %50 = arith.addf %48, %49 : vector<8x32xf32>
    %cst_21 = arith.constant dense<0.000000e+00> : vector<8xf32>
    %51 = vector.multi_reduction <add>, %50, %cst_21 [1] : vector<8x32xf32> to vector<8xf32>
    %52 = vector.shape_cast %51 : vector<8xf32> to vector<8x1xf32>
    %cst_22 = arith.constant 3.200000e+01 : f32
    %53 = vector.broadcast %cst_22 : f32 to vector<8x1xf32>
    %54 = arith.divf %52, %53 : vector<8x1xf32>
    %55 = vector.broadcast %54 : vector<8x1xf32> to vector<8x32xf32>
    %56 = arith.subf %50, %55 : vector<8x32xf32>
    %57 = arith.mulf %56, %56 : vector<8x32xf32>
    %cst_23 = arith.constant dense<0.000000e+00> : vector<8xf32>
    %58 = vector.multi_reduction <add>, %57, %cst_23 [1] : vector<8x32xf32> to vector<8xf32>
    %59 = vector.shape_cast %58 : vector<8xf32> to vector<8x1xf32>
    %cst_24 = arith.constant 3.200000e+01 : f32
    %60 = vector.broadcast %cst_24 : f32 to vector<8x1xf32>
    %61 = arith.divf %59, %60 : vector<8x1xf32>
    %62 = vector.broadcast %54 : vector<8x1xf32> to vector<8x32xf32>
    %63 = arith.subf %50, %62 : vector<8x32xf32>
    %cst_25 = arith.constant 9.99999997E-7 : f32
    %64 = vector.broadcast %cst_25 : f32 to vector<8x1xf32>
    %65 = arith.addf %61, %64 : vector<8x1xf32>
    %66 = math.rsqrt %65 : vector<8x1xf32>
    %67 = vector.broadcast %66 : vector<8x1xf32> to vector<8x32xf32>
    %68 = arith.mulf %63, %67 : vector<8x32xf32>
    %c0_26 = arith.constant 0 : index
    %c0_27 = arith.constant 0 : index
    %69 = vector.load %arg8[%c0_26, %c0_27] : memref<1x32xf32, #tpu.memory_space<vmem>>, vector<1x32xf32>
    %70 = vector.broadcast %69 : vector<1x32xf32> to vector<8x32xf32>
    %71 = arith.mulf %68, %70 : vector<8x32xf32>
    %c0_28 = arith.constant 0 : index
    %c0_29 = arith.constant 0 : index
    %72 = vector.load %arg9[%c0_28, %c0_29] : memref<1x32xf32, #tpu.memory_space<vmem>>, vector<1x32xf32>
    %73 = vector.broadcast %72 : vector<1x32xf32> to vector<8x32xf32>
    %74 = arith.addf %71, %73 : vector<8x32xf32>
    %75 = arith.truncf %74 : vector<8x32xf32> to vector<8x32xbf16>
    %c0_30 = arith.constant 0 : index
    %c0_31 = arith.constant 0 : index
    %76 = vector.load %arg10[%c0_30, %c0_31] : memref<32x32xbf16, #tpu.memory_space<vmem>>, vector<32x32xbf16>
    %cst_32 = arith.constant dense<0.000000e+00> : vector<8x32xf32>
    %77 = tpu.matmul %75, %76, %cst_32 {dimension_numbers = #tpu.dot_dimension_numbers<[1], [0], [0], [1], [0, 0, 1, 1], [], []>} : vector<8x32xbf16>, vector<32x32xbf16>, vector<8x32xf32> -> vector<8x32xf32>
    %78 = arith.truncf %77 : vector<8x32xf32> to vector<8x32xbf16>
    %c0_33 = arith.constant 0 : index
    %c0_34 = arith.constant 0 : index
    %79 = vector.load %arg11[%c0_33, %c0_34] : memref<32x64xbf16, #tpu.memory_space<vmem>>, vector<32x64xbf16>
    %cst_35 = arith.constant dense<0.000000e+00> : vector<16x64xf32>
    %80 = tpu.matmul %3, %79, %cst_35 {dimension_numbers = #tpu.dot_dimension_numbers<[1], [0], [0], [1], [0, 0, 1, 1], [], []>} : vector<16x32xbf16>, vector<32x64xbf16>, vector<16x64xf32> -> vector<16x64xf32>
    %81 = arith.truncf %80 : vector<16x64xf32> to vector<16x64xbf16>
    %82 = vector.extract_strided_slice %81 {offsets = [0, 0], sizes = [16, 32], strides = [1, 1]} : vector<16x64xbf16> to vector<16x32xbf16>
    %83 = vector.extract_strided_slice %81 {offsets = [0, 32], sizes = [16, 32], strides = [1, 1]} : vector<16x64xbf16> to vector<16x32xbf16>
    %c0_36 = arith.constant 0 : index
    %c0_37 = arith.constant 0 : index
    %c0_38 = arith.constant 0 : index
    %84 = vector.load %arg4[%c0_36, %c0_37, %c0_38] : memref<1x1x16xi32, #tpu.memory_space<vmem>>, vector<1x1x16xi32>
    %85 = vector.shape_cast %84 : vector<1x1x16xi32> to vector<1x16xi32>
    %c0_i32_39 = arith.constant 0 : i32
    %86 = vector.broadcast %c0_i32_39 : i32 to vector<1x16xi32>
    %87 = arith.cmpi eq, %85, %86 : vector<1x16xi32>
    %cst_40 = arith.constant -1.000000e+30 : f32
    %cst_41 = arith.constant 0.000000e+00 : f32
    %88 = vector.broadcast %cst_40 : f32 to vector<1x16xf32>
    %89 = vector.broadcast %cst_41 : f32 to vector<1x16xf32>
    %90 = arith.select %87, %88, %89 : vector<1x16xi1>, vector<1x16xf32>
    %91 = vector.shape_cast %78 : vector<8x32xbf16> to vector<8x4x8xbf16>
    %92 = vector.shape_cast %82 : vector<16x32xbf16> to vector<16x4x8xbf16>
    %93 = vector.shape_cast %83 : vector<16x32xbf16> to vector<16x4x8xbf16>
    "tpu.trace_start"() <{level = 10 : i32, message = "qhd,khd->hqk"}> : () -> ()
    %cst_42 = arith.constant dense<0.000000e+00> : vector<4x8x16xf32>
    %94 = tpu.matmul %91, %92, %cst_42 {dimension_numbers = #tpu.dot_dimension_numbers<[2], [2], [0], [0], [0, 1, 0, 0, 1, 0], [1], [1]>} : vector<8x4x8xbf16>, vector<16x4x8xbf16>, vector<4x8x16xf32> -> vector<4x8x16xf32>
    "tpu.trace_stop"() : () -> ()
    %95 = vector.shape_cast %90 : vector<1x16xf32> to vector<1x1x16xf32>
    %96 = vector.broadcast %95 : vector<1x1x16xf32> to vector<4x8x16xf32>
    %97 = arith.addf %94, %96 : vector<4x8x16xf32>
    %cst_43 = arith.constant dense<0xFF800000> : vector<4x8xf32>
    %98 = vector.multi_reduction <maximumf>, %97, %cst_43 [2] : vector<4x8x16xf32> to vector<4x8xf32>
    %99 = vector.shape_cast %98 : vector<4x8xf32> to vector<4x8x1xf32>
    %100 = vector.broadcast %99 : vector<4x8x1xf32> to vector<4x8x16xf32>
    %101 = arith.subf %97, %100 : vector<4x8x16xf32>
    %102 = math.exp %101 : vector<4x8x16xf32>
    %cst_44 = arith.constant dense<0.000000e+00> : vector<4x8xf32>
    %103 = vector.multi_reduction <add>, %102, %cst_44 [2] : vector<4x8x16xf32> to vector<4x8xf32>
    %104 = vector.shape_cast %103 : vector<4x8xf32> to vector<4x8x1xf32>
    %105 = tpu.reciprocal %104 {approx = true} : vector<4x8x1xf32> -> vector<4x8x1xf32>
    %106 = vector.broadcast %105 : vector<4x8x1xf32> to vector<4x8x16xf32>
    %107 = arith.mulf %102, %106 : vector<4x8x16xf32>
    %108 = arith.truncf %107 : vector<4x8x16xf32> to vector<4x8x16xbf16>
    "tpu.trace_start"() <{level = 10 : i32, message = "hqk,khd->qhd"}> : () -> ()
    %cst_45 = arith.constant dense<0.000000e+00> : vector<4x8x8xf32>
    %109 = tpu.matmul %93, %108, %cst_45 {dimension_numbers = #tpu.dot_dimension_numbers<[0], [2], [2], [1], [0, 1, 0, 2, 1, 1], [1], [0]>} : vector<16x4x8xbf16>, vector<4x8x16xbf16>, vector<4x8x8xf32> -> vector<4x8x8xf32>
    %110 = tpu.transpose %109, [2, 0, 1] : vector<4x8x8xf32> -> vector<8x4x8xf32>
    "tpu.trace_stop"() : () -> ()
    %111 = vector.shape_cast %110 : vector<8x4x8xf32> to vector<8x32xf32>
    %112 = arith.truncf %111 : vector<8x32xf32> to vector<8x32xbf16>
    %c0_46 = arith.constant 0 : index
    %c0_47 = arith.constant 0 : index
    %113 = vector.load %arg12[%c0_46, %c0_47] : memref<32x32xbf16, #tpu.memory_space<vmem>>, vector<32x32xbf16>
    %cst_48 = arith.constant dense<0.000000e+00> : vector<8x32xf32>
    %114 = tpu.matmul %112, %113, %cst_48 {dimension_numbers = #tpu.dot_dimension_numbers<[1], [0], [0], [1], [0, 0, 1, 1], [], []>} : vector<8x32xbf16>, vector<32x32xbf16>, vector<8x32xf32> -> vector<8x32xf32>
    %c0_49 = arith.constant 0 : index
    %c0_50 = arith.constant 0 : index
    %115 = vector.load %arg13[%c0_49, %c0_50] : memref<1x32xf32, #tpu.memory_space<vmem>>, vector<1x32xf32>
    %116 = vector.broadcast %115 : vector<1x32xf32> to vector<8x32xf32>
    %117 = arith.addf %114, %116 : vector<8x32xf32>
    %118 = arith.extf %75 : vector<8x32xbf16> to vector<8x32xf32>
    %119 = arith.addf %117, %118 : vector<8x32xf32>
    %cst_51 = arith.constant dense<0.000000e+00> : vector<8xf32>
    %120 = vector.multi_reduction <add>, %119, %cst_51 [1] : vector<8x32xf32> to vector<8xf32>
    %121 = vector.shape_cast %120 : vector<8xf32> to vector<8x1xf32>
    %cst_52 = arith.constant 3.200000e+01 : f32
    %122 = vector.broadcast %cst_52 : f32 to vector<8x1xf32>
    %123 = arith.divf %121, %122 : vector<8x1xf32>
    %124 = vector.broadcast %123 : vector<8x1xf32> to vector<8x32xf32>
    %125 = arith.subf %119, %124 : vector<8x32xf32>
    %126 = arith.mulf %125, %125 : vector<8x32xf32>
    %cst_53 = arith.constant dense<0.000000e+00> : vector<8xf32>
    %127 = vector.multi_reduction <add>, %126, %cst_53 [1] : vector<8x32xf32> to vector<8xf32>
    %128 = vector.shape_cast %127 : vector<8xf32> to vector<8x1xf32>
    %cst_54 = arith.constant 3.200000e+01 : f32
    %129 = vector.broadcast %cst_54 : f32 to vector<8x1xf32>
    %130 = arith.divf %128, %129 : vector<8x1xf32>
    %131 = vector.broadcast %123 : vector<8x1xf32> to vector<8x32xf32>
    %132 = arith.subf %119, %131 : vector<8x32xf32>
    %cst_55 = arith.constant 9.99999997E-7 : f32
    %133 = vector.broadcast %cst_55 : f32 to vector<8x1xf32>
    %134 = arith.addf %130, %133 : vector<8x1xf32>
    %135 = math.rsqrt %134 : vector<8x1xf32>
    %136 = vector.broadcast %135 : vector<8x1xf32> to vector<8x32xf32>
    %137 = arith.mulf %132, %136 : vector<8x32xf32>
    %c0_56 = arith.constant 0 : index
    %c0_57 = arith.constant 0 : index
    %138 = vector.load %arg14[%c0_56, %c0_57] : memref<1x32xf32, #tpu.memory_space<vmem>>, vector<1x32xf32>
    %139 = vector.broadcast %138 : vector<1x32xf32> to vector<8x32xf32>
    %140 = arith.mulf %137, %139 : vector<8x32xf32>
    %c0_58 = arith.constant 0 : index
    %c0_59 = arith.constant 0 : index
    %141 = vector.load %arg15[%c0_58, %c0_59] : memref<1x32xf32, #tpu.memory_space<vmem>>, vector<1x32xf32>
    %142 = vector.broadcast %141 : vector<1x32xf32> to vector<8x32xf32>
    %143 = arith.addf %140, %142 : vector<8x32xf32>
    %144 = arith.truncf %143 : vector<8x32xf32> to vector<8x32xbf16>
    %c0_60 = arith.constant 0 : index
    %c0_61 = arith.constant 0 : index
    %145 = vector.load %arg16[%c0_60, %c0_61] : memref<32x64xbf16, #tpu.memory_space<vmem>>, vector<32x64xbf16>
    %cst_62 = arith.constant dense<0.000000e+00> : vector<8x64xf32>
    %146 = tpu.matmul %144, %145, %cst_62 {dimension_numbers = #tpu.dot_dimension_numbers<[1], [0], [0], [1], [0, 0, 1, 1], [], []>} : vector<8x32xbf16>, vector<32x64xbf16>, vector<8x64xf32> -> vector<8x64xf32>
    %c0_63 = arith.constant 0 : index
    %c0_64 = arith.constant 0 : index
    %147 = vector.load %arg17[%c0_63, %c0_64] : memref<1x64xf32, #tpu.memory_space<vmem>>, vector<1x64xf32>
    %148 = vector.broadcast %147 : vector<1x64xf32> to vector<8x64xf32>
    %149 = arith.addf %146, %148 : vector<8x64xf32>
    %cst_65 = arith.constant 0.000000e+00 : f32
    %150 = vector.broadcast %cst_65 : f32 to vector<8x64xf32>
    %151 = arith.maximumf %149, %150 : vector<8x64xf32>
    %152 = arith.truncf %151 : vector<8x64xf32> to vector<8x64xbf16>
    %c0_66 = arith.constant 0 : index
    %c0_67 = arith.constant 0 : index
    %153 = vector.load %arg18[%c0_66, %c0_67] : memref<64x32xbf16, #tpu.memory_space<vmem>>, vector<64x32xbf16>
    %cst_68 = arith.constant dense<0.000000e+00> : vector<8x32xf32>
    %154 = tpu.matmul %152, %153, %cst_68 {dimension_numbers = #tpu.dot_dimension_numbers<[1], [0], [0], [1], [0, 0, 1, 1], [], []>} : vector<8x64xbf16>, vector<64x32xbf16>, vector<8x32xf32> -> vector<8x32xf32>
    %c0_69 = arith.constant 0 : index
    %c0_70 = arith.constant 0 : index
    %155 = vector.load %arg19[%c0_69, %c0_70] : memref<1x32xf32, #tpu.memory_space<vmem>>, vector<1x32xf32>
    %156 = vector.broadcast %155 : vector<1x32xf32> to vector<8x32xf32>
    %157 = arith.addf %154, %156 : vector<8x32xf32>
    %158 = arith.extf %144 : vector<8x32xbf16> to vector<8x32xf32>
    %159 = arith.addf %157, %158 : vector<8x32xf32>
    %cst_71 = arith.constant dense<0.000000e+00> : vector<8xf32>
    %160 = vector.multi_reduction <add>, %159, %cst_71 [1] : vector<8x32xf32> to vector<8xf32>
    %161 = vector.shape_cast %160 : vector<8xf32> to vector<8x1xf32>
    %cst_72 = arith.constant 3.200000e+01 : f32
    %162 = vector.broadcast %cst_72 : f32 to vector<8x1xf32>
    %163 = arith.divf %161, %162 : vector<8x1xf32>
    %164 = vector.broadcast %163 : vector<8x1xf32> to vector<8x32xf32>
    %165 = arith.subf %159, %164 : vector<8x32xf32>
    %166 = arith.mulf %165, %165 : vector<8x32xf32>
    %cst_73 = arith.constant dense<0.000000e+00> : vector<8xf32>
    %167 = vector.multi_reduction <add>, %166, %cst_73 [1] : vector<8x32xf32> to vector<8xf32>
    %168 = vector.shape_cast %167 : vector<8xf32> to vector<8x1xf32>
    %cst_74 = arith.constant 3.200000e+01 : f32
    %169 = vector.broadcast %cst_74 : f32 to vector<8x1xf32>
    %170 = arith.divf %168, %169 : vector<8x1xf32>
    %171 = vector.broadcast %163 : vector<8x1xf32> to vector<8x32xf32>
    %172 = arith.subf %159, %171 : vector<8x32xf32>
    %cst_75 = arith.constant 9.99999997E-7 : f32
    %173 = vector.broadcast %cst_75 : f32 to vector<8x1xf32>
    %174 = arith.addf %170, %173 : vector<8x1xf32>
    %175 = math.rsqrt %174 : vector<8x1xf32>
    %176 = vector.broadcast %175 : vector<8x1xf32> to vector<8x32xf32>
    %177 = arith.mulf %172, %176 : vector<8x32xf32>
    %c0_76 = arith.constant 0 : index
    %c0_77 = arith.constant 0 : index
    %178 = vector.load %arg20[%c0_76, %c0_77] : memref<1x32xf32, #tpu.memory_space<vmem>>, vector<1x32xf32>
    %179 = vector.broadcast %178 : vector<1x32xf32> to vector<8x32xf32>
    %180 = arith.mulf %177, %179 : vector<8x32xf32>
    %c0_78 = arith.constant 0 : index
    %c0_79 = arith.constant 0 : index
    %181 = vector.load %arg21[%c0_78, %c0_79] : memref<1x32xf32, #tpu.memory_space<vmem>>, vector<1x32xf32>
    %182 = vector.broadcast %181 : vector<1x32xf32> to vector<8x32xf32>
    %183 = arith.addf %180, %182 : vector<8x32xf32>
    %184 = arith.truncf %183 : vector<8x32xf32> to vector<8x32xbf16>
    %185 = vector.shape_cast %184 : vector<8x32xbf16> to vector<1x8x32xbf16>
    %c0_80 = arith.constant 0 : index
    %c0_81 = arith.constant 0 : index
    %c0_82 = arith.constant 0 : index
    %186 = vector.load %arg22[%c0_80, %c0_81, %c0_82] : memref<1x8x32xbf16, #tpu.memory_space<vmem>>, vector<1x8x32xbf16>
    tpu.vector_store %arg22[%c0_80, %c0_81, %c0_82], %185 {strides = array<i32>} : memref<1x8x32xbf16, #tpu.memory_space<vmem>>, vector<1x8x32xbf16>,
    return
  }
  func.func @transform_0(%arg0: i32) -> (i32, i32, i32) {
    %c0_i32 = arith.constant 0 : i32
    %c0_i32_0 = arith.constant 0 : i32
    %c0_i32_1 = arith.constant 0 : i32
    return %arg0, %c0_i32, %c0_i32_0 : i32, i32, i32
  }
  func.func @transform_1(%arg0: i32) -> (i32, i32, i32) {
    %c0_i32 = arith.constant 0 : i32
    %c0_i32_0 = arith.constant 0 : i32
    %c0_i32_1 = arith.constant 0 : i32
    return %arg0, %c0_i32, %c0_i32_0 : i32, i32, i32
  }
  func.func @transform_2(%arg0: i32) -> (i32, i32, i32) {
    %c0_i32 = arith.constant 0 : i32
    %c0_i32_0 = arith.constant 0 : i32
    %c0_i32_1 = arith.constant 0 : i32
    return %arg0, %c0_i32, %c0_i32_0 : i32, i32, i32
  }
  func.func @transform_3(%arg0: i32) -> (i32, i32, i32) {
    %c0_i32 = arith.constant 0 : i32
    %c0_i32_0 = arith.constant 0 : i32
    %c0_i32_1 = arith.constant 0 : i32
    return %arg0, %c0_i32, %c0_i32_0 : i32, i32, i32
  }
  func.func @transform_4(%arg0: i32) -> (i32, i32) {
    %c0_i32 = arith.constant 0 : i32
    %c0_i32_0 = arith.constant 0 : i32
    %c0_i32_1 = arith.constant 0 : i32
    return %c0_i32, %c0_i32_0 : i32, i32
  }
  func.func @transform_5(%arg0: i32) -> (i32, i32) {
    %c0_i32 = arith.constant 0 : i32
    %c0_i32_0 = arith.constant 0 : i32
    %c0_i32_1 = arith.constant 0 : i32
    return %c0_i32, %c0_i32_0 : i32, i32
  }
  func.func @transform_6(%arg0: i32) -> (i32, i32) {
    %c0_i32 = arith.constant 0 : i32
    %c0_i32_0 = arith.constant 0 : i32
    %c0_i32_1 = arith.constant 0 : i32
    return %c0_i32, %c0_i32_0 : i32, i32
  }
  func.func @transform_7(%arg0: i32) -> (i32, i32) {
    %c0_i32 = arith.constant 0 : i32
    %c0_i32_0 = arith.constant 0 : i32
    %c0_i32_1 = arith.constant 0 : i32
    return %c0_i32, %c0_i32_0 : i32, i32
  }
  func.func @transform_8(%arg0: i32) -> (i32, i32) {
    %c0_i32 = arith.constant 0 : i32
    %c0_i32_0 = arith.constant 0 : i32
    %c0_i32_1 = arith.constant 0 : i32
    return %c0_i32, %c0_i32_0 : i32, i32
  }
  func.func @transform_9(%arg0: i32) -> (i32, i32) {
    %c0_i32 = arith.constant 0 : i32
    %c0_i32_0 = arith.constant 0 : i32
    %c0_i32_1 = arith.constant 0 : i32
    return %c0_i32, %c0_i32_0 : i32, i32
  }
  func.func @transform_10(%arg0: i32) -> (i32, i32) {
    %c0_i32 = arith.constant 0 : i32
    %c0_i32_0 = arith.constant 0 : i32
    %c0_i32_1 = arith.constant 0 : i32
    return %c0_i32, %c0_i32_0 : i32, i32
  }
  func.func @transform_11(%arg0: i32) -> (i32, i32) {
    %c0_i32 = arith.constant 0 : i32
    %c0_i32_0 = arith.constant 0 : i32
    %c0_i32_1 = arith.constant 0 : i32
    return %c0_i32, %c0_i32_0 : i32, i32
  }
  func.func @transform_12(%arg0: i32) -> (i32, i32) {
    %c0_i32 = arith.constant 0 : i32
    %c0_i32_0 = arith.constant 0 : i32
    %c0_i32_1 = arith.constant 0 : i32
    return %c0_i32, %c0_i32_0 : i32, i32
  }
  func.func @transform_13(%arg0: i32) -> (i32, i32) {
    %c0_i32 = arith.constant 0 : i32
    %c0_i32_0 = arith.constant 0 : i32
    %c0_i32_1 = arith.constant 0 : i32
    return %c0_i32, %c0_i32_0 : i32, i32
  }
  func.func @transform_14(%arg0: i32) -> (i32, i32) {
    %c0_i32 = arith.constant 0 : i32
    %c0_i32_0 = arith.constant 0 : i32
    %c0_i32_1 = arith.constant 0 : i32
    return %c0_i32, %c0_i32_0 : i32, i32
  }
  func.func @transform_15(%arg0: i32) -> (i32, i32) {
    %c0_i32 = arith.constant 0 : i32
    %c0_i32_0 = arith.constant 0 : i32
    %c0_i32_1 = arith.constant 0 : i32
    return %c0_i32, %c0_i32_0 : i32, i32
  }
  func.func @transform_16(%arg0: i32) -> (i32, i32) {
    %c0_i32 = arith.constant 0 : i32
    %c0_i32_0 = arith.constant 0 : i32
    %c0_i32_1 = arith.constant 0 : i32
    return %c0_i32, %c0_i32_0 : i32, i32
  }
  func.func @transform_17(%arg0: i32) -> (i32, i32) {
    %c0_i32 = arith.constant 0 : i32
    %c0_i32_0 = arith.constant 0 : i32
    %c0_i32_1 = arith.constant 0 : i32
    return %c0_i32, %c0_i32_0 : i32, i32
  }
  func.func @transform_18(%arg0: i32) -> (i32, i32) {
    %c0_i32 = arith.constant 0 : i32
    %c0_i32_0 = arith.constant 0 : i32
    %c0_i32_1 = arith.constant 0 : i32
    return %c0_i32, %c0_i32_0 : i32, i32
  }
  func.func @transform_19(%arg0: i32) -> (i32, i32) {
    %c0_i32 = arith.constant 0 : i32
    %c0_i32_0 = arith.constant 0 : i32
    %c0_i32_1 = arith.constant 0 : i32
    return %c0_i32, %c0_i32_0 : i32, i32
  }
  func.func @transform_20(%arg0: i32) -> (i32, i32) {
    %c0_i32 = arith.constant 0 : i32
    %c0_i32_0 = arith.constant 0 : i32
    %c0_i32_1 = arith.constant 0 : i32
    return %c0_i32, %c0_i32_0 : i32, i32
  }
  func.func @transform_21(%arg0: i32) -> (i32, i32, i32) {
    %c0_i32 = arith.constant 0 : i32
    %c0_i32_0 = arith.constant 0 : i32
    %c0_i32_1 = arith.constant 0 : i32
    return %arg0, %c0_i32, %c0_i32_0 : i32, i32, i32
  }
}

</mosaic_0001>

<llo_original>
// kernel: tpu_custom_call.1
$region0: #{tpu_custom_call.1}
  #allocation0 [shape = 'u32[]', space=smem, size = 0x4, offset = 0x4, fixed_abs, tag = 'smem constant byte address 0x4 - core index']
  #allocation1 [shape = 'u32[144,128]{1,0:T(1,128)}', space=vmem, size = 0x12000, scoped, tag = 'internal scratch']
  %s0 = inlined_call_operand.hbm [shape: f32[8,128], index: 0, kind: input, shape index: {}]
  %s1 = inlined_call_operand.hbm [shape: f32[8,128], index: 1, kind: output, shape index: {}]
  %s2 = sld [smem:[#allocation0]]
  $region41: #{tpu_custom_call.1} parent=0
    _
  %s4 = ssub.s32 1, %s2
  %s5 = scalar_select 0, %s4, %s2
  $region1: #{tpu_custom_call.1} parent=0
    #allocation2 [shape = 'u8[4096]{0}', space=vmem, size = 0x1000, scoped, tag = 'input window, operand 0, single buffered']
    #allocation3 [shape = 's32[2]{0}', space=sflag, size = 0x8, scoped, tag = 'scoped memory for tpu_custom_call.1']
    #allocation4 [shape = 's32[2]{0}', space=sflag, size = 0x8, scoped, tag = 'scoped memory for tpu_custom_call.1']
    #allocation5 [shape = 'u8[4096]{0}', space=vmem, size = 0x1000, scoped, tag = 'output window, operand 0, single buffered']
    %6 = vsyncpa [#allocation3], 0
    %7 = vsyncpa [#allocation4], 0
    loop: start=0, step=1, limit=4
    $region2: #{tpu_custom_call.1} parent=1 // loop_pre_header
      _
    $region3: #{tpu_custom_call.1} parent=1 // loop_header
      %s9 = sphi 0, %s13
      %p10 = scmp.ge.s32.totalorder %s9, 4
      %s17 = sphi 0, %s17
      %s19 = sphi 0, %s17
      %s20 = sphi 0, %s19
      %s34 = sphi 0, %s20
      %s38 = sphi 0, %s38
      %s40 = sphi 0, %s38
      %s41 = sphi 0, %s40
      %s55 = sphi 0, %s41
    $region4: #{tpu_custom_call.1} parent=1 // loop_header_branch
      %12 = sbr.rel (%p10) target = $region8
    $region5: #{tpu_custom_call.1} parent=1 // loop_body
      %s14 = ssub.s32 %s9, 1
      %s15 = ssub.s32 %s9, 2
      %s16 = sadd.s32 %s9, 1
      %s18 = sadd.s32 %s17, 1
      %p21 = scmp.eq.s32.totalorder %s9, 1
      %p22 = scmp.ne.s32.totalorder %s17, %s19
      %p23 = scmp.eq.s32.totalorder %s9, 0
      %p24 = por %p22, %p23
      %p25 = scmp.ne.s32.totalorder %s17, %s19
      %p26 = scmp.eq.s32.totalorder %s14, 1
      %p27 = por %p25, %p26
      %p28 = scmp.ne.s32.totalorder %s19, %s20
      %p29 = scmp.eq.s32.totalorder %s14, 0
      %p30 = por %p28, %p29
      %p31 = scmp.ne.s32.totalorder %s19, %s20
      %p32 = scmp.eq.s32.totalorder %s15, 1
      %p33 = por %p31, %p32
      %p35 = scmp.ne.s32.totalorder %s20, %s34
      %p36 = scmp.eq.s32.totalorder %s15, 0
      %p37 = por %p35, %p36
      %s39 = sadd.s32 %s38, 1
      %p42 = scmp.eq.s32.totalorder %s9, 1
      %p43 = scmp.ne.s32.totalorder %s38, %s40
      %p44 = scmp.eq.s32.totalorder %s9, 0
      %p45 = por %p43, %p44
      %p46 = scmp.ne.s32.totalorder %s38, %s40
      %p47 = scmp.eq.s32.totalorder %s14, 1
      %p48 = por %p46, %p47
      %p49 = scmp.ne.s32.totalorder %s40, %s41
      %p50 = scmp.eq.s32.totalorder %s14, 0
      %p51 = por %p49, %p50
      %p52 = scmp.ne.s32.totalorder %s40, %s41
      %p53 = scmp.eq.s32.totalorder %s15, 1
      %p54 = por %p52, %p53
      %p56 = scmp.ne.s32.totalorder %s41, %s55
      %p57 = scmp.eq.s32.totalorder %s15, 0
      %p58 = por %p56, %p57
      %p59 = scmp.le.s32.totalorder 1, %s9
      %p60 = scmp.lt.s32.totalorder %s9, 3
      %p61 = pnand %p59, %p60
      %p62 = pneg %p61
      // Predicated region
      $region9: #{tpu_custom_call.1} parent=5 // pred_check
        _
      $region10: #{tpu_custom_call.1} parent=5 // pred_check_branch
        %64 = sbr.rel (%p61) target = $region12
      $region11: #{tpu_custom_call.1} parent=5 // pred_region
        %s65 = ssub.s32 %s9, 1
        // Predicated region
        $region13: #{tpu_custom_call.1} parent=11 // pred_check
          %p66 = pneg %p30
        $region14: #{tpu_custom_call.1} parent=11 // pred_check_branch
          %68 = sbr.rel (%p66) target = $region16
        $region15: #{tpu_custom_call.1} parent=11 // pred_region
          %s70 = ssub.s32 128, 128
          %71 = vsyncadd [#allocation3], %s70
          %s73 = sshll.u32 [#allocation2], 4
          %s74 = int_to_ptr.vmem [resolvable:$true] %s73
          %76 = dma.hbm_to_vmem [thread:$0]  %s0, 128, %s74, [#allocation3]
        $region16: #{tpu_custom_call.1} parent=11 // pred_fallthru
          _
      $region12: #{tpu_custom_call.1} parent=5 // pred_fallthru
        _
      %p77 = scmp.lt.s32.totalorder %s9, 2
      // Predicated region
      $region17: #{tpu_custom_call.1} parent=5 // pred_check
        %p78 = pneg %p77
      $region18: #{tpu_custom_call.1} parent=5 // pred_check_branch
        %80 = sbr.rel (%p78) target = $region20
      $region19: #{tpu_custom_call.1} parent=5 // pred_region
        _
      $region20: #{tpu_custom_call.1} parent=5 // pred_fallthru
        _
      %p81 = scmp.le.s32.totalorder 1, %s9
      %p82 = scmp.lt.s32.totalorder %s9, 3
      %p83 = pnand %p81, %p82
      %p84 = pneg %p83
      // Predicated region
      $region21: #{tpu_custom_call.1} parent=5 // pred_check
        _
      $region22: #{tpu_custom_call.1} parent=5 // pred_check_branch
        %86 = sbr.rel (%p83) target = $region24
      $region23: #{tpu_custom_call.1} parent=5 // pred_region
        %s87 = ssub.s32 %s9, 1
        // Predicated region
        $region25: #{tpu_custom_call.1} parent=23 // pred_check
          %p88 = pneg %p30
        $region26: #{tpu_custom_call.1} parent=23 // pred_check_branch
          %90 = sbr.rel (%p88) target = $region28
        $region27: #{tpu_custom_call.1} parent=23 // pred_region
          %91 = dma.done [#allocation3], 128
        $region28: #{tpu_custom_call.1} parent=23 // pred_fallthru
          _
        %p92 = pneg %p30
        %p93 = pneg %p27
        %p94 = pneg %p51
        %p95 = pneg %p48
        %v96 = vld [vmem:[#allocation2] sm:$0xff]
        %v97 = vadd.f32 %v96, 1.0
        %98 = vst [vmem:[#allocation5] sm:$0xff] %v97
        // Predicated region
        $region29: #{tpu_custom_call.1} parent=23 // pred_check
          %p99 = pneg %p48
        $region30: #{tpu_custom_call.1} parent=23 // pred_check_branch
          %101 = sbr.rel (%p99) target = $region32
        $region31: #{tpu_custom_call.1} parent=23 // pred_region
          %s103 = ssub.s32 128, 128
          %104 = vsyncadd [#allocation4], %s103
          %s106 = sshll.u32 [#allocation5], 4
          %s107 = int_to_ptr.vmem [resolvable:$true] %s106
          %109 = dma.vmem_to_hbm [thread:$0]  %s107, 128, %s1, [#allocation4]
        $region32: #{tpu_custom_call.1} parent=23 // pred_fallthru
          _
        // Predicated region
        $region33: #{tpu_custom_call.1} parent=23 // pred_check
          %p110 = pneg %p48
        $region34: #{tpu_custom_call.1} parent=23 // pred_check_branch
          %112 = sbr.rel (%p110) target = $region36
        $region35: #{tpu_custom_call.1} parent=23 // pred_region
          %113 = dma.done [#allocation4], 128
        $region36: #{tpu_custom_call.1} parent=23 // pred_fallthru
          _
      $region24: #{tpu_custom_call.1} parent=5 // pred_fallthru
        _
      %p114 = scmp.le.s32.totalorder 2, %s9
      // Predicated region
      $region37: #{tpu_custom_call.1} parent=5 // pred_check
        %p115 = pneg %p114
      $region38: #{tpu_custom_call.1} parent=5 // pred_check_branch
        %117 = sbr.rel (%p115) target = $region40
      $region39: #{tpu_custom_call.1} parent=5 // pred_region
        %s118 = ssub.s32 %s9, 2
      $region40: #{tpu_custom_call.1} parent=5 // pred_fallthru
        _
    $region6: #{tpu_custom_call.1} parent=1 // loop_footer
      %s13 = sadd.s32 1, %s9
    $region7: #{tpu_custom_call.1} parent=1 // loop_footer_branch
      %8 = sbr.rel target = $region3
    $region8: #{tpu_custom_call.1} parent=1 // loop_exit
      _
    %119 = vsyncpa [#allocation3], 1
    %s120 = scalar_lea.sflag [#allocation3], 1
    %121 = vsyncpa %s120, 1
    %122 = vsyncpa [#allocation4], 1
    %s123 = scalar_lea.sflag [#allocation4], 1
    %124 = vsyncpa %s123, 1

// kernel: tpu_custom_call.1
$region0: #{tpu_custom_call.1}
  #allocation0 [shape = 'u32[]', space=smem, size = 0x4, offset = 0x4, fixed_abs, tag = 'smem constant byte address 0x4 - core index']
  #allocation1 [shape = 'u32[144,128]{1,0:T(1,128)}', space=vmem, size = 0x12000, scoped, tag = 'internal scratch']
  %s0 = inlined_call_operand.hbm [shape: bf16[2,8,32], index: 0, kind: input, shape index: {}]
  %s1 = inlined_call_operand.vmem [shape: bf16[2,16,32], index: 1, kind: input, shape index: {}]
  %s2 = inlined_call_operand.vmem [shape: s32[2,1,8], index: 2, kind: input, shape index: {}]
  %s3 = inlined_call_operand.vmem [shape: s32[2,1,16], index: 3, kind: input, shape index: {}]
  %s4 = inlined_call_operand.vmem [shape: bf16[32,96], index: 4, kind: input, shape index: {}]
  %s5 = inlined_call_operand.vmem [shape: bf16[32,32], index: 5, kind: input, shape index: {}]
  %s6 = inlined_call_operand.vmem [shape: f32[1,32], index: 6, kind: input, shape index: {}]
  %s7 = inlined_call_operand.vmem [shape: f32[1,32], index: 7, kind: input, shape index: {}]
  %s8 = inlined_call_operand.vmem [shape: f32[1,32], index: 8, kind: input, shape index: {}]
  %s9 = inlined_call_operand.hbm [shape: bf16[32,32], index: 9, kind: input, shape index: {}]
  %s10 = inlined_call_operand.hbm [shape: bf16[32,64], index: 10, kind: input, shape index: {}]
  %s11 = inlined_call_operand.hbm [shape: bf16[32,32], index: 11, kind: input, shape index: {}]
  %s12 = inlined_call_operand.vmem [shape: f32[1,32], index: 12, kind: input, shape index: {}]
  %s13 = inlined_call_operand.vmem [shape: f32[1,32], index: 13, kind: input, shape index: {}]
  %s14 = inlined_call_operand.vmem [shape: f32[1,32], index: 14, kind: input, shape index: {}]
  %s15 = inlined_call_operand.hbm [shape: bf16[32,64], index: 15, kind: input, shape index: {}]
  %s16 = inlined_call_operand.vmem [shape: f32[1,64], index: 16, kind: input, shape index: {}]
  %s17 = inlined_call_operand.vmem [shape: bf16[64,32], index: 17, kind: input, shape index: {}]
  %s18 = inlined_call_operand.vmem [shape: f32[1,32], index: 18, kind: input, shape index: {}]
  %s19 = inlined_call_operand.vmem [shape: f32[1,32], index: 19, kind: input, shape index: {}]
  %s20 = inlined_call_operand.vmem [shape: f32[1,32], index: 20, kind: input, shape index: {}]
  %s21 = inlined_call_operand.hbm [shape: bf16[2,8,32], index: 21, kind: output, shape index: {}]
  %s22 = sld [smem:[#allocation0]]
  $region137: #{tpu_custom_call.1} parent=0
    _
  %s24 = ssub.s32 1, %s22
  %s25 = scalar_select 0, %s24, %s22
  $region1: #{tpu_custom_call.1} parent=0
    #allocation2 [shape = 'u8[4096]{0}', space=vmem, size = 0x1000, scoped, tag = 'input window, operand 0']
    #allocation3 [shape = 's32[2]{0}', space=sflag, size = 0x8, scoped, tag = 'scoped memory for tpu_custom_call.1']
    #allocation4 [shape = 's32[2]{0}', space=sflag, size = 0x8, scoped, tag = 'scoped memory for tpu_custom_call.1']
    #allocation5 [shape = 'u8[8192]{0}', space=vmem, size = 0x2000, scoped, tag = 'input window, operand 9, single buffered']
    #allocation6 [shape = 's32[1]{0}', space=sflag, size = 0x4, scoped, tag = 'scoped memory for tpu_custom_call.1']
    #allocation7 [shape = 'u8[8192]{0}', space=vmem, size = 0x2000, scoped, tag = 'input window, operand 10, single buffered']
    #allocation8 [shape = 'u8[8192]{0}', space=vmem, size = 0x2000, scoped, tag = 'input window, operand 11, single buffered']
    #allocation9 [shape = 's32[1]{0}', space=sflag, size = 0x4, scoped, tag = 'scoped memory for tpu_custom_call.1']
    #allocation10 [shape = 'u8[8192]{0}', space=vmem, size = 0x2000, scoped, tag = 'input window, operand 15, single buffered']
    #allocation11 [shape = 'u8[4096]{0}', space=vmem, size = 0x1000, scoped, tag = 'output window, operand 0']
    %26 = vsyncpa [#allocation3], 0
    %s27 = scalar_lea.sflag [#allocation3], 1
    %28 = vsyncpa %s27, 0
    %29 = vsyncpa [#allocation6], 0
    %30 = vsyncpa [#allocation9], 0
    %31 = vsyncpa [#allocation4], 0
    %s32 = scalar_lea.sflag [#allocation4], 1
    %33 = vsyncpa %s32, 0
    loop: start=0, step=1, limit=4
    $region2: #{tpu_custom_call.1} parent=1 // loop_pre_header
      _
    $region3: #{tpu_custom_call.1} parent=1 // loop_header
      %s35 = sphi 0, %s39
      %p36 = scmp.ge.s32.totalorder %s35, 4
      %s45 = sphi 0, %s47
      %s48 = sphi 0, %s45
      %s49 = sphi 0, %s48
      %s65 = sphi 0, %s49
      %s71 = sphi 0, %s73
      %s74 = sphi 0, %s71
      %s75 = sphi 0, %s74
      %s91 = sphi 0, %s75
      %s97 = sphi 0, %s99
      %s100 = sphi 0, %s97
      %s101 = sphi 0, %s100
      %s117 = sphi 0, %s101
      %s123 = sphi 0, %s125
      %s126 = sphi 0, %s123
      %s127 = sphi 0, %s126
      %s143 = sphi 0, %s127
      %s147 = sphi 0, %s147
      %s149 = sphi 0, %s147
      %s150 = sphi 0, %s149
      %s164 = sphi 0, %s150
      %s168 = sphi 0, %s168
      %s170 = sphi 0, %s168
      %s171 = sphi 0, %s170
      %s185 = sphi 0, %s171
      %s189 = sphi 0, %s189
      %s191 = sphi 0, %s189
      %s192 = sphi 0, %s191
      %s206 = sphi 0, %s192
      %s210 = sphi 0, %s210
      %s212 = sphi 0, %s210
      %s213 = sphi 0, %s212
      %s227 = sphi 0, %s213
      %s231 = sphi 0, %s231
      %s233 = sphi 0, %s231
      %s234 = sphi 0, %s233
      %s248 = sphi 0, %s234
      %s252 = sphi 0, %s252
      %s254 = sphi 0, %s252
      %s255 = sphi 0, %s254
      %s269 = sphi 0, %s255
      %s273 = sphi 0, %s273
      %s275 = sphi 0, %s273
      %s276 = sphi 0, %s275
      %s290 = sphi 0, %s276
      %s294 = sphi 0, %s294
      %s296 = sphi 0, %s294
      %s297 = sphi 0, %s296
      %s311 = sphi 0, %s297
      %s315 = sphi 0, %s315
      %s317 = sphi 0, %s315
      %s318 = sphi 0, %s317
      %s332 = sphi 0, %s318
      %s336 = sphi 0, %s336
      %s338 = sphi 0, %s336
      %s339 = sphi 0, %s338
      %s353 = sphi 0, %s339
      %s357 = sphi 0, %s357
      %s359 = sphi 0, %s357
      %s360 = sphi 0, %s359
      %s374 = sphi 0, %s360
      %s378 = sphi 0, %s378
      %s380 = sphi 0, %s378
      %s381 = sphi 0, %s380
      %s395 = sphi 0, %s381
      %s399 = sphi 0, %s399
      %s401 = sphi 0, %s399
      %s402 = sphi 0, %s401
      %s416 = sphi 0, %s402
      %s420 = sphi 0, %s420
      %s422 = sphi 0, %s420
      %s423 = sphi 0, %s422
      %s437 = sphi 0, %s423
      %s441 = sphi 0, %s441
      %s443 = sphi 0, %s441
      %s444 = sphi 0, %s443
      %s458 = sphi 0, %s444
      %s462 = sphi 0, %s462
      %s464 = sphi 0, %s462
      %s465 = sphi 0, %s464
      %s479 = sphi 0, %s465
      %s483 = sphi 0, %s483
      %s485 = sphi 0, %s483
      %s486 = sphi 0, %s485
      %s500 = sphi 0, %s486
      %s506 = sphi 0, %s508
      %s509 = sphi 0, %s506
      %s510 = sphi 0, %s509
      %s526 = sphi 0, %s510
    $region4: #{tpu_custom_call.1} parent=1 // loop_header_branch
      %38 = sbr.rel (%p36) target = $region8
    $region5: #{tpu_custom_call.1} parent=1 // loop_body
      %s40 = ssub.s32 %s35, 1
      %s41 = ssub.s32 %s35, 2
      %s42 = sadd.s32 %s35, 1
      %s43 = ssub.s32 %s35, %s42
      %p44 = scmp.eq.s32.totalorder %s43, 0
      %s46 = sadd.s32 %s45, 1
      %s47 = scalar_select %p44, %s45, %s46
      %p50 = pneg %p44
      %p51 = scmp.eq.s32.totalorder %s35, 1
      %p52 = por %p50, %p51
      %p53 = scmp.ne.s32.totalorder %s45, %s48
      %p54 = scmp.eq.s32.totalorder %s35, 0
      %p55 = por %p53, %p54
      %p56 = scmp.ne.s32.totalorder %s45, %s48
      %p57 = scmp.eq.s32.totalorder %s40, 1
      %p58 = por %p56, %p57
      %p59 = scmp.ne.s32.totalorder %s48, %s49
      %p60 = scmp.eq.s32.totalorder %s40, 0
      %p61 = por %p59, %p60
      %p62 = scmp.ne.s32.totalorder %s48, %s49
      %p63 = scmp.eq.s32.totalorder %s41, 1
      %p64 = por %p62, %p63
      %p66 = scmp.ne.s32.totalorder %s49, %s65
      %p67 = scmp.eq.s32.totalorder %s41, 0
      %p68 = por %p66, %p67
      %s69 = ssub.s32 %s35, %s42
      %p70 = scmp.eq.s32.totalorder %s69, 0
      %s72 = sadd.s32 %s71, 1
      %s73 = scalar_select %p70, %s71, %s72
      %p76 = pneg %p70
      %p77 = scmp.eq.s32.totalorder %s35, 1
      %p78 = por %p76, %p77
      %p79 = scmp.ne.s32.totalorder %s71, %s74
      %p80 = scmp.eq.s32.totalorder %s35, 0
      %p81 = por %p79, %p80
      %p82 = scmp.ne.s32.totalorder %s71, %s74
      %p83 = scmp.eq.s32.totalorder %s40, 1
      %p84 = por %p82, %p83
      %p85 = scmp.ne.s32.totalorder %s74, %s75
      %p86 = scmp.eq.s32.totalorder %s40, 0
      %p87 = por %p85, %p86
      %p88 = scmp.ne.s32.totalorder %s74, %s75
      %p89 = scmp.eq.s32.totalorder %s41, 1
      %p90 = por %p88, %p89
      %p92 = scmp.ne.s32.totalorder %s75, %s91
      %p93 = scmp.eq.s32.totalorder %s41, 0
      %p94 = por %p92, %p93
      %s95 = ssub.s32 %s35, %s42
      %p96 = scmp.eq.s32.totalorder %s95, 0
      %s98 = sadd.s32 %s97, 1
      %s99 = scalar_select %p96, %s97, %s98
      %p102 = pneg %p96
      %p103 = scmp.eq.s32.totalorder %s35, 1
      %p104 = por %p102, %p103
      %p105 = scmp.ne.s32.totalorder %s97, %s100
      %p106 = scmp.eq.s32.totalorder %s35, 0
      %p107 = por %p105, %p106
      %p108 = scmp.ne.s32.totalorder %s97, %s100
      %p109 = scmp.eq.s32.totalorder %s40, 1
      %p110 = por %p108, %p109
      %p111 = scmp.ne.s32.totalorder %s100, %s101
      %p112 = scmp.eq.s32.totalorder %s40, 0
      %p113 = por %p111, %p112
      %p114 = scmp.ne.s32.totalorder %s100, %s101
      %p115 = scmp.eq.s32.totalorder %s41, 1
      %p116 = por %p114, %p115
      %p118 = scmp.ne.s32.totalorder %s101, %s117
      %p119 = scmp.eq.s32.totalorder %s41, 0
      %p120 = por %p118, %p119
      %s121 = ssub.s32 %s35, %s42
      %p122 = scmp.eq.s32.totalorder %s121, 0
      %s124 = sadd.s32 %s123, 1
      %s125 = scalar_select %p122, %s123, %s124
      %p128 = pneg %p122
      %p129 = scmp.eq.s32.totalorder %s35, 1
      %p130 = por %p128, %p129
      %p131 = scmp.ne.s32.totalorder %s123, %s126
      %p132 = scmp.eq.s32.totalorder %s35, 0
      %p133 = por %p131, %p132
      %p134 = scmp.ne.s32.totalorder %s123, %s126
      %p135 = scmp.eq.s32.totalorder %s40, 1
      %p136 = por %p134, %p135
      %p137 = scmp.ne.s32.totalorder %s126, %s127
      %p138 = scmp.eq.s32.totalorder %s40, 0
      %p139 = por %p137, %p138
      %p140 = scmp.ne.s32.totalorder %s126, %s127
      %p141 = scmp.eq.s32.totalorder %s41, 1
      %p142 = por %p140, %p141
      %p144 = scmp.ne.s32.totalorder %s127, %s143
      %p145 = scmp.eq.s32.totalorder %s41, 0
      %p146 = por %p144, %p145
      %s148 = sadd.s32 %s147, 1
      %p151 = scmp.eq.s32.totalorder %s35, 1
      %p152 = scmp.ne.s32.totalorder %s147, %s149
      %p153 = scmp.eq.s32.totalorder %s35, 0
      %p154 = por %p152, %p153
      %p155 = scmp.ne.s32.totalorder %s147, %s149
      %p156 = scmp.eq.s32.totalorder %s40, 1
      %p157 = por %p155, %p156
      %p158 = scmp.ne.s32.totalorder %s149, %s150
      %p159 = scmp.eq.s32.totalorder %s40, 0
      %p160 = por %p158, %p159
      %p161 = scmp.ne.s32.totalorder %s149, %s150
      %p162 = scmp.eq.s32.totalorder %s41, 1
      %p163 = por %p161, %p162
      %p165 = scmp.ne.s32.totalorder %s150, %s164
      %p166 = scmp.eq.s32.totalorder %s41, 0
      %p167 = por %p165, %p166
      %s169 = sadd.s32 %s168, 1
      %p172 = scmp.eq.s32.totalorder %s35, 1
      %p173 = scmp.ne.s32.totalorder %s168, %s170
      %p174 = scmp.eq.s32.totalorder %s35, 0
      %p175 = por %p173, %p174
      %p176 = scmp.ne.s32.totalorder %s168, %s170
      %p177 = scmp.eq.s32.totalorder %s40, 1
      %p178 = por %p176, %p177
      %p179 = scmp.ne.s32.totalorder %s170, %s171
      %p180 = scmp.eq.s32.totalorder %s40, 0
      %p181 = por %p179, %p180
      %p182 = scmp.ne.s32.totalorder %s170, %s171
      %p183 = scmp.eq.s32.totalorder %s41, 1
      %p184 = por %p182, %p183
      %p186 = scmp.ne.s32.totalorder %s171, %s185
      %p187 = scmp.eq.s32.totalorder %s41, 0
      %p188 = por %p186, %p187
      %s190 = sadd.s32 %s189, 1
      %p193 = scmp.eq.s32.totalorder %s35, 1
      %p194 = scmp.ne.s32.totalorder %s189, %s191
      %p195 = scmp.eq.s32.totalorder %s35, 0
      %p196 = por %p194, %p195
      %p197 = scmp.ne.s32.totalorder %s189, %s191
      %p198 = scmp.eq.s32.totalorder %s40, 1
      %p199 = por %p197, %p198
      %p200 = scmp.ne.s32.totalorder %s191, %s192
      %p201 = scmp.eq.s32.totalorder %s40, 0
      %p202 = por %p200, %p201
      %p203 = scmp.ne.s32.totalorder %s191, %s192
      %p204 = scmp.eq.s32.totalorder %s41, 1
      %p205 = por %p203, %p204
      %p207 = scmp.ne.s32.totalorder %s192, %s206
      %p208 = scmp.eq.s32.totalorder %s41, 0
      %p209 = por %p207, %p208
      %s211 = sadd.s32 %s210, 1
      %p214 = scmp.eq.s32.totalorder %s35, 1
      %p215 = scmp.ne.s32.totalorder %s210, %s212
      %p216 = scmp.eq.s32.totalorder %s35, 0
      %p217 = por %p215, %p216
      %p218 = scmp.ne.s32.totalorder %s210, %s212
      %p219 = scmp.eq.s32.totalorder %s40, 1
      %p220 = por %p218, %p219
      %p221 = scmp.ne.s32.totalorder %s212, %s213
      %p222 = scmp.eq.s32.totalorder %s40, 0
      %p223 = por %p221, %p222
      %p224 = scmp.ne.s32.totalorder %s212, %s213
      %p225 = scmp.eq.s32.totalorder %s41, 1
      %p226 = por %p224, %p225
      %p228 = scmp.ne.s32.totalorder %s213, %s227
      %p229 = scmp.eq.s32.totalorder %s41, 0
      %p230 = por %p228, %p229
      %s232 = sadd.s32 %s231, 1
      %p235 = scmp.eq.s32.totalorder %s35, 1
      %p236 = scmp.ne.s32.totalorder %s231, %s233
      %p237 = scmp.eq.s32.totalorder %s35, 0
      %p238 = por %p236, %p237
      %p239 = scmp.ne.s32.totalorder %s231, %s233
      %p240 = scmp.eq.s32.totalorder %s40, 1
      %p241 = por %p239, %p240
      %p242 = scmp.ne.s32.totalorder %s233, %s234
      %p243 = scmp.eq.s32.totalorder %s40, 0
      %p244 = por %p242, %p243
      %p245 = scmp.ne.s32.totalorder %s233, %s234
      %p246 = scmp.eq.s32.totalorder %s41, 1
      %p247 = por %p245, %p246
      %p249 = scmp.ne.s32.totalorder %s234, %s248
      %p250 = scmp.eq.s32.totalorder %s41, 0
      %p251 = por %p249, %p250
      %s253 = sadd.s32 %s252, 1
      %p256 = scmp.eq.s32.totalorder %s35, 1
      %p257 = scmp.ne.s32.totalorder %s252, %s254
      %p258 = scmp.eq.s32.totalorder %s35, 0
      %p259 = por %p257, %p258
      %p260 = scmp.ne.s32.totalorder %s252, %s254
      %p261 = scmp.eq.s32.totalorder %s40, 1
      %p262 = por %p260, %p261
      %p263 = scmp.ne.s32.totalorder %s254, %s255
      %p264 = scmp.eq.s32.totalorder %s40, 0
      %p265 = por %p263, %p264
      %p266 = scmp.ne.s32.totalorder %s254, %s255
      %p267 = scmp.eq.s32.totalorder %s41, 1
      %p268 = por %p266, %p267
      %p270 = scmp.ne.s32.totalorder %s255, %s269
      %p271 = scmp.eq.s32.totalorder %s41, 0
      %p272 = por %p270, %p271
      %s274 = sadd.s32 %s273, 1
      %p277 = scmp.eq.s32.totalorder %s35, 1
      %p278 = scmp.ne.s32.totalorder %s273, %s275
      %p279 = scmp.eq.s32.totalorder %s35, 0
      %p280 = por %p278, %p279
      %p281 = scmp.ne.s32.totalorder %s273, %s275
      %p282 = scmp.eq.s32.totalorder %s40, 1
      %p283 = por %p281, %p282
      %p284 = scmp.ne.s32.totalorder %s275, %s276
      %p285 = scmp.eq.s32.totalorder %s40, 0
      %p286 = por %p284, %p285
      %p287 = scmp.ne.s32.totalorder %s275, %s276
      %p288 = scmp.eq.s32.totalorder %s41, 1
      %p289 = por %p287, %p288
      %p291 = scmp.ne.s32.totalorder %s276, %s290
      %p292 = scmp.eq.s32.totalorder %s41, 0
      %p293 = por %p291, %p292
      %s295 = sadd.s32 %s294, 1
      %p298 = scmp.eq.s32.totalorder %s35, 1
      %p299 = scmp.ne.s32.totalorder %s294, %s296
      %p300 = scmp.eq.s32.totalorder %s35, 0
      %p301 = por %p299, %p300
      %p302 = scmp.ne.s32.totalorder %s294, %s296
      %p303 = scmp.eq.s32.totalorder %s40, 1
      %p304 = por %p302, %p303
      %p305 = scmp.ne.s32.totalorder %s296, %s297
      %p306 = scmp.eq.s32.totalorder %s40, 0
      %p307 = por %p305, %p306
      %p308 = scmp.ne.s32.totalorder %s296, %s297
      %p309 = scmp.eq.s32.totalorder %s41, 1
      %p310 = por %p308, %p309
      %p312 = scmp.ne.s32.totalorder %s297, %s311
      %p313 = scmp.eq.s32.totalorder %s41, 0
      %p314 = por %p312, %p313
      %s316 = sadd.s32 %s315, 1
      %p319 = scmp.eq.s32.totalorder %s35, 1
      %p320 = scmp.ne.s32.totalorder %s315, %s317
      %p321 = scmp.eq.s32.totalorder %s35, 0
      %p322 = por %p320, %p321
      %p323 = scmp.ne.s32.totalorder %s315, %s317
      %p324 = scmp.eq.s32.totalorder %s40, 1
      %p325 = por %p323, %p324
      %p326 = scmp.ne.s32.totalorder %s317, %s318
      %p327 = scmp.eq.s32.totalorder %s40, 0
      %p328 = por %p326, %p327
      %p329 = scmp.ne.s32.totalorder %s317, %s318
      %p330 = scmp.eq.s32.totalorder %s41, 1
      %p331 = por %p329, %p330
      %p333 = scmp.ne.s32.totalorder %s318, %s332
      %p334 = scmp.eq.s32.totalorder %s41, 0
      %p335 = por %p333, %p334
      %s337 = sadd.s32 %s336, 1
      %p340 = scmp.eq.s32.totalorder %s35, 1
      %p341 = scmp.ne.s32.totalorder %s336, %s338
      %p342 = scmp.eq.s32.totalorder %s35, 0
      %p343 = por %p341, %p342
      %p344 = scmp.ne.s32.totalorder %s336, %s338
      %p345 = scmp.eq.s32.totalorder %s40, 1
      %p346 = por %p344, %p345
      %p347 = scmp.ne.s32.totalorder %s338, %s339
      %p348 = scmp.eq.s32.totalorder %s40, 0
      %p349 = por %p347, %p348
      %p350 = scmp.ne.s32.totalorder %s338, %s339
      %p351 = scmp.eq.s32.totalorder %s41, 1
      %p352 = por %p350, %p351
      %p354 = scmp.ne.s32.totalorder %s339, %s353
      %p355 = scmp.eq.s32.totalorder %s41, 0
      %p356 = por %p354, %p355
      %s358 = sadd.s32 %s357, 1
      %p361 = scmp.eq.s32.totalorder %s35, 1
      %p362 = scmp.ne.s32.totalorder %s357, %s359
      %p363 = scmp.eq.s32.totalorder %s35, 0
      %p364 = por %p362, %p363
      %p365 = scmp.ne.s32.totalorder %s357, %s359
      %p366 = scmp.eq.s32.totalorder %s40, 1
      %p367 = por %p365, %p366
      %p368 = scmp.ne.s32.totalorder %s359, %s360
      %p369 = scmp.eq.s32.totalorder %s40, 0
      %p370 = por %p368, %p369
      %p371 = scmp.ne.s32.totalorder %s359, %s360
      %p372 = scmp.eq.s32.totalorder %s41, 1
      %p373 = por %p371, %p372
      %p375 = scmp.ne.s32.totalorder %s360, %s374
      %p376 = scmp.eq.s32.totalorder %s41, 0
      %p377 = por %p375, %p376
      %s379 = sadd.s32 %s378, 1
      %p382 = scmp.eq.s32.totalorder %s35, 1
      %p383 = scmp.ne.s32.totalorder %s378, %s380
      %p384 = scmp.eq.s32.totalorder %s35, 0
      %p385 = por %p383, %p384
      %p386 = scmp.ne.s32.totalorder %s378, %s380
      %p387 = scmp.eq.s32.totalorder %s40, 1
      %p388 = por %p386, %p387
      %p389 = scmp.ne.s32.totalorder %s380, %s381
      %p390 = scmp.eq.s32.totalorder %s40, 0
      %p391 = por %p389, %p390
      %p392 = scmp.ne.s32.totalorder %s380, %s381
      %p393 = scmp.eq.s32.totalorder %s41, 1
      %p394 = por %p392, %p393
      %p396 = scmp.ne.s32.totalorder %s381, %s395
      %p397 = scmp.eq.s32.totalorder %s41, 0
      %p398 = por %p396, %p397
      %s400 = sadd.s32 %s399, 1
      %p403 = scmp.eq.s32.totalorder %s35, 1
      %p404 = scmp.ne.s32.totalorder %s399, %s401
      %p405 = scmp.eq.s32.totalorder %s35, 0
      %p406 = por %p404, %p405
      %p407 = scmp.ne.s32.totalorder %s399, %s401
      %p408 = scmp.eq.s32.totalorder %s40, 1
      %p409 = por %p407, %p408
      %p410 = scmp.ne.s32.totalorder %s401, %s402
      %p411 = scmp.eq.s32.totalorder %s40, 0
      %p412 = por %p410, %p411
      %p413 = scmp.ne.s32.totalorder %s401, %s402
      %p414 = scmp.eq.s32.totalorder %s41, 1
      %p415 = por %p413, %p414
      %p417 = scmp.ne.s32.totalorder %s402, %s416
      %p418 = scmp.eq.s32.totalorder %s41, 0
      %p419 = por %p417, %p418
      %s421 = sadd.s32 %s420, 1
      %p424 = scmp.eq.s32.totalorder %s35, 1
      %p425 = scmp.ne.s32.totalorder %s420, %s422
      %p426 = scmp.eq.s32.totalorder %s35, 0
      %p427 = por %p425, %p426
      %p428 = scmp.ne.s32.totalorder %s420, %s422
      %p429 = scmp.eq.s32.totalorder %s40, 1
      %p430 = por %p428, %p429
      %p431 = scmp.ne.s32.totalorder %s422, %s423
      %p432 = scmp.eq.s32.totalorder %s40, 0
      %p433 = por %p431, %p432
      %p434 = scmp.ne.s32.totalorder %s422, %s423
      %p435 = scmp.eq.s32.totalorder %s41, 1
      %p436 = por %p434, %p435
      %p438 = scmp.ne.s32.totalorder %s423, %s437
      %p439 = scmp.eq.s32.totalorder %s41, 0
      %p440 = por %p438, %p439
      %s442 = sadd.s32 %s441, 1
      %p445 = scmp.eq.s32.totalorder %s35, 1
      %p446 = scmp.ne.s32.totalorder %s441, %s443
      %p447 = scmp.eq.s32.totalorder %s35, 0
      %p448 = por %p446, %p447
      %p449 = scmp.ne.s32.totalorder %s441, %s443
      %p450 = scmp.eq.s32.totalorder %s40, 1
      %p451 = por %p449, %p450
      %p452 = scmp.ne.s32.totalorder %s443, %s444
      %p453 = scmp.eq.s32.totalorder %s40, 0
      %p454 = por %p452, %p453
      %p455 = scmp.ne.s32.totalorder %s443, %s444
      %p456 = scmp.eq.s32.totalorder %s41, 1
      %p457 = por %p455, %p456
      %p459 = scmp.ne.s32.totalorder %s444, %s458
      %p460 = scmp.eq.s32.totalorder %s41, 0
      %p461 = por %p459, %p460
      %s463 = sadd.s32 %s462, 1
      %p466 = scmp.eq.s32.totalorder %s35, 1
      %p467 = scmp.ne.s32.totalorder %s462, %s464
      %p468 = scmp.eq.s32.totalorder %s35, 0
      %p469 = por %p467, %p468
      %p470 = scmp.ne.s32.totalorder %s462, %s464
      %p471 = scmp.eq.s32.totalorder %s40, 1
      %p472 = por %p470, %p471
      %p473 = scmp.ne.s32.totalorder %s464, %s465
      %p474 = scmp.eq.s32.totalorder %s40, 0
      %p475 = por %p473, %p474
      %p476 = scmp.ne.s32.totalorder %s464, %s465
      %p477 = scmp.eq.s32.totalorder %s41, 1
      %p478 = por %p476, %p477
      %p480 = scmp.ne.s32.totalorder %s465, %s479
      %p481 = scmp.eq.s32.totalorder %s41, 0
      %p482 = por %p480, %p481
      %s484 = sadd.s32 %s483, 1
      %p487 = scmp.eq.s32.totalorder %s35, 1
      %p488 = scmp.ne.s32.totalorder %s483, %s485
      %p489 = scmp.eq.s32.totalorder %s35, 0
      %p490 = por %p488, %p489
      %p491 = scmp.ne.s32.totalorder %s483, %s485
      %p492 = scmp.eq.s32.totalorder %s40, 1
      %p493 = por %p491, %p492
      %p494 = scmp.ne.s32.totalorder %s485, %s486
      %p495 = scmp.eq.s32.totalorder %s40, 0
      %p496 = por %p494, %p495
      %p497 = scmp.ne.s32.totalorder %s485, %s486
      %p498 = scmp.eq.s32.totalorder %s41, 1
      %p499 = por %p497, %p498
      %p501 = scmp.ne.s32.totalorder %s486, %s500
      %p502 = scmp.eq.s32.totalorder %s41, 0
      %p503 = por %p501, %p502
      %s504 = ssub.s32 %s35, %s42
      %p505 = scmp.eq.s32.totalorder %s504, 0
      %s507 = sadd.s32 %s506, 1
      %s508 = scalar_select %p505, %s506, %s507
      %p511 = pneg %p505
      %p512 = scmp.eq.s32.totalorder %s35, 1
      %p513 = por %p511, %p512
      %p514 = scmp.ne.s32.totalorder %s506, %s509
      %p515 = scmp.eq.s32.totalorder %s35, 0
      %p516 = por %p514, %p515
      %p517 = scmp.ne.s32.totalorder %s506, %s509
      %p518 = scmp.eq.s32.totalorder %s40, 1
      %p519 = por %p517, %p518
      %p520 = scmp.ne.s32.totalorder %s509, %s510
      %p521 = scmp.eq.s32.totalorder %s40, 0
      %p522 = por %p520, %p521
      %p523 = scmp.ne.s32.totalorder %s509, %s510
      %p524 = scmp.eq.s32.totalorder %s41, 1
      %p525 = por %p523, %p524
      %p527 = scmp.ne.s32.totalorder %s510, %s526
      %p528 = scmp.eq.s32.totalorder %s41, 0
      %p529 = por %p527, %p528
      %p530 = scmp.le.s32.totalorder 1, %s35
      %p531 = scmp.lt.s32.totalorder %s35, 3
      %p532 = pnand %p530, %p531
      %p533 = pneg %p532
      // Predicated region
      $region9: #{tpu_custom_call.1} parent=5 // pred_check
        _
      $region10: #{tpu_custom_call.1} parent=5 // pred_check_branch
        %535 = sbr.rel (%p532) target = $region12
      $region11: #{tpu_custom_call.1} parent=5 // pred_region
        %s536 = ssub.s32 %s35, 1
        // Predicated region
        $region13: #{tpu_custom_call.1} parent=11 // pred_check
          %p537 = pneg %p160
        $region14: #{tpu_custom_call.1} parent=11 // pred_check_branch
          %539 = sbr.rel (%p537) target = $region16
        $region15: #{tpu_custom_call.1} parent=11 // pred_region
          _
        $region16: #{tpu_custom_call.1} parent=11 // pred_fallthru
          _
        // Predicated region
        $region17: #{tpu_custom_call.1} parent=11 // pred_check
          %p540 = pneg %p181
        $region18: #{tpu_custom_call.1} parent=11 // pred_check_branch
          %542 = sbr.rel (%p540) target = $region20
        $region19: #{tpu_custom_call.1} parent=11 // pred_region
          _
        $region20: #{tpu_custom_call.1} parent=11 // pred_fallthru
          _
        // Predicated region
        $region21: #{tpu_custom_call.1} parent=11 // pred_check
          %p543 = pneg %p202
        $region22: #{tpu_custom_call.1} parent=11 // pred_check_branch
          %545 = sbr.rel (%p543) target = $region24
        $region23: #{tpu_custom_call.1} parent=11 // pred_region
          _
        $region24: #{tpu_custom_call.1} parent=11 // pred_fallthru
          _
        // Predicated region
        $region25: #{tpu_custom_call.1} parent=11 // pred_check
          %p546 = pneg %p223
        $region26: #{tpu_custom_call.1} parent=11 // pred_check_branch
          %548 = sbr.rel (%p546) target = $region28
        $region27: #{tpu_custom_call.1} parent=11 // pred_region
          _
        $region28: #{tpu_custom_call.1} parent=11 // pred_fallthru
          _
        // Predicated region
        $region29: #{tpu_custom_call.1} parent=11 // pred_check
          %p549 = pneg %p244
        $region30: #{tpu_custom_call.1} parent=11 // pred_check_branch
          %551 = sbr.rel (%p549) target = $region32
        $region31: #{tpu_custom_call.1} parent=11 // pred_region
          _
        $region32: #{tpu_custom_call.1} parent=11 // pred_fallthru
          _
        // Predicated region
        $region33: #{tpu_custom_call.1} parent=11 // pred_check
          %p552 = pneg %p265
        $region34: #{tpu_custom_call.1} parent=11 // pred_check_branch
          %554 = sbr.rel (%p552) target = $region36
        $region35: #{tpu_custom_call.1} parent=11 // pred_region
          %s556 = ssub.s32 256, 256
          %557 = vsyncadd [#allocation6], %s556
          %s558 = sshll.u32 [#allocation5], 4
          %s559 = int_to_ptr.vmem [resolvable:$true] %s558
          %564 = dma.hbm_to_vmem [thread:$0]  %s9, 256, %s559, [#allocation6], 64, 64, 4
        $region36: #{tpu_custom_call.1} parent=11 // pred_fallthru
          _
        // Predicated region
        $region37: #{tpu_custom_call.1} parent=11 // pred_check
          %p565 = pneg %p286
        $region38: #{tpu_custom_call.1} parent=11 // pred_check_branch
          %567 = sbr.rel (%p565) target = $region40
        $region39: #{tpu_custom_call.1} parent=11 // pred_region
          %s569 = ssub.s32 256, 256
          %570 = vsyncadd [#allocation6], %s569
          %s571 = sshll.u32 [#allocation7], 4
          %s572 = int_to_ptr.vmem [resolvable:$true] %s571
          %577 = dma.hbm_to_vmem [thread:$0]  %s10, 256, %s572, [#allocation6], 64, 64, 4
        $region40: #{tpu_custom_call.1} parent=11 // pred_fallthru
          _
        // Predicated region
        $region41: #{tpu_custom_call.1} parent=11 // pred_check
          %p578 = pneg %p307
        $region42: #{tpu_custom_call.1} parent=11 // pred_check_branch
          %580 = sbr.rel (%p578) target = $region44
        $region43: #{tpu_custom_call.1} parent=11 // pred_region
          %s582 = ssub.s32 256, 256
          %583 = vsyncadd [#allocation9], %s582
          %s584 = sshll.u32 [#allocation8], 4
          %s585 = int_to_ptr.vmem [resolvable:$true] %s584
          %590 = dma.hbm_to_vmem [thread:$0]  %s11, 256, %s585, [#allocation9], 64, 64, 4
        $region44: #{tpu_custom_call.1} parent=11 // pred_fallthru
          _
        // Predicated region
        $region45: #{tpu_custom_call.1} parent=11 // pred_check
          %p591 = pneg %p328
        $region46: #{tpu_custom_call.1} parent=11 // pred_check_branch
          %593 = sbr.rel (%p591) target = $region48
        $region47: #{tpu_custom_call.1} parent=11 // pred_region
          _
        $region48: #{tpu_custom_call.1} parent=11 // pred_fallthru
          _
        // Predicated region
        $region49: #{tpu_custom_call.1} parent=11 // pred_check
          %p594 = pneg %p349
        $region50: #{tpu_custom_call.1} parent=11 // pred_check_branch
          %596 = sbr.rel (%p594) target = $region52
        $region51: #{tpu_custom_call.1} parent=11 // pred_region
          _
        $region52: #{tpu_custom_call.1} parent=11 // pred_fallthru
          _
        // Predicated region
        $region53: #{tpu_custom_call.1} parent=11 // pred_check
          %p597 = pneg %p370
        $region54: #{tpu_custom_call.1} parent=11 // pred_check_branch
          %599 = sbr.rel (%p597) target = $region56
        $region55: #{tpu_custom_call.1} parent=11 // pred_region
          _
        $region56: #{tpu_custom_call.1} parent=11 // pred_fallthru
          _
        // Predicated region
        $region57: #{tpu_custom_call.1} parent=11 // pred_check
          %p600 = pneg %p391
        $region58: #{tpu_custom_call.1} parent=11 // pred_check_branch
          %602 = sbr.rel (%p600) target = $region60
        $region59: #{tpu_custom_call.1} parent=11 // pred_region
          %s604 = ssub.s32 256, 256
          %605 = vsyncadd [#allocation9], %s604
          %s606 = sshll.u32 [#allocation10], 4
          %s607 = int_to_ptr.vmem [resolvable:$true] %s606
          %612 = dma.hbm_to_vmem [thread:$0]  %s15, 256, %s607, [#allocation9], 64, 64, 4
        $region60: #{tpu_custom_call.1} parent=11 // pred_fallthru
          _
        // Predicated region
        $region61: #{tpu_custom_call.1} parent=11 // pred_check
          %p613 = pneg %p412
        $region62: #{tpu_custom_call.1} parent=11 // pred_check_branch
          %615 = sbr.rel (%p613) target = $region64
        $region63: #{tpu_custom_call.1} parent=11 // pred_region
          _
        $region64: #{tpu_custom_call.1} parent=11 // pred_fallthru
          _
        // Predicated region
        $region65: #{tpu_custom_call.1} parent=11 // pred_check
          %p616 = pneg %p433
        $region66: #{tpu_custom_call.1} parent=11 // pred_check_branch
          %618 = sbr.rel (%p616) target = $region68
        $region67: #{tpu_custom_call.1} parent=11 // pred_region
          _
        $region68: #{tpu_custom_call.1} parent=11 // pred_fallthru
          _
        // Predicated region
        $region69: #{tpu_custom_call.1} parent=11 // pred_check
          %p619 = pneg %p454
        $region70: #{tpu_custom_call.1} parent=11 // pred_check_branch
          %621 = sbr.rel (%p619) target = $region72
        $region71: #{tpu_custom_call.1} parent=11 // pred_region
          _
        $region72: #{tpu_custom_call.1} parent=11 // pred_fallthru
          _
        // Predicated region
        $region73: #{tpu_custom_call.1} parent=11 // pred_check
          %p622 = pneg %p475
        $region74: #{tpu_custom_call.1} parent=11 // pred_check_branch
          %624 = sbr.rel (%p622) target = $region76
        $region75: #{tpu_custom_call.1} parent=11 // pred_region
          _
        $region76: #{tpu_custom_call.1} parent=11 // pred_fallthru
          _
        // Predicated region
        $region77: #{tpu_custom_call.1} parent=11 // pred_check
          %p625 = pneg %p496
        $region78: #{tpu_custom_call.1} parent=11 // pred_check_branch
          %627 = sbr.rel (%p625) target = $region80
        $region79: #{tpu_custom_call.1} parent=11 // pred_region
          _
        $region80: #{tpu_custom_call.1} parent=11 // pred_fallthru
          _
      $region12: #{tpu_custom_call.1} parent=5 // pred_fallthru
        _
      %p628 = scmp.lt.s32.totalorder %s35, 2
      // Predicated region
      $region81: #{tpu_custom_call.1} parent=5 // pred_check
        %p629 = pneg %p628
      $region82: #{tpu_custom_call.1} parent=5 // pred_check_branch
        %631 = sbr.rel (%p629) target = $region84
      $region83: #{tpu_custom_call.1} parent=5 // pred_region
        // Predicated region
        $region85: #{tpu_custom_call.1} parent=83 // pred_check
          %p632 = pneg %p55
        $region86: #{tpu_custom_call.1} parent=83 // pred_check_branch
          %634 = sbr.rel (%p632) target = $region88
        $region87: #{tpu_custom_call.1} parent=83 // pred_region
          %s635 = sand.u32 %s45, 1
          %s636 = scalar_lea.sflag [#allocation3], %s635
          %s637 = sand.u32 %s45, 1
          %s638 = smul.addr %s637, 4
          %s639 = scalar_lea.vmem [#allocation2], %s638
          %s641 = ssub.s32 64, 64
          %642 = vsyncadd %s636, %s641
          %s643 = smul.addr %s35, 64
          %s644 = scalar_lea.hbm %s0, %s643
          %s646 = sshll.u32 %s639, 4
          %s647 = int_to_ptr.vmem [resolvable:$true] %s646
          %649 = dma.hbm_to_vmem [thread:$0]  %s644, 64, %s647, %s636
        $region88: #{tpu_custom_call.1} parent=83 // pred_fallthru
          _
        // Predicated region
        $region89: #{tpu_custom_call.1} parent=83 // pred_check
          %p650 = pneg %p81
        $region90: #{tpu_custom_call.1} parent=83 // pred_check_branch
          %652 = sbr.rel (%p650) target = $region92
        $region91: #{tpu_custom_call.1} parent=83 // pred_region
          %p653 = scmp.lt.s32.totalorder %s35, 1
          %s654 = scalar_select %p653, %s35, 1
          %s655 = smul.addr %s654, 2
          %s656 = smul.addr %s655, 4
          %s657 = scalar_lea.vmem %s1, %s656
        $region92: #{tpu_custom_call.1} parent=83 // pred_fallthru
          _
        // Predicated region
        $region93: #{tpu_custom_call.1} parent=83 // pred_check
          %p658 = pneg %p107
        $region94: #{tpu_custom_call.1} parent=83 // pred_check_branch
          %660 = sbr.rel (%p658) target = $region96
        $region95: #{tpu_custom_call.1} parent=83 // pred_region
          %p661 = scmp.lt.s32.totalorder %s35, 1
          %s662 = scalar_select %p661, %s35, 1
          %s663 = scalar_lea.vmem %s2, %s662
        $region96: #{tpu_custom_call.1} parent=83 // pred_fallthru
          _
        // Predicated region
        $region97: #{tpu_custom_call.1} parent=83 // pred_check
          %p664 = pneg %p133
        $region98: #{tpu_custom_call.1} parent=83 // pred_check_branch
          %666 = sbr.rel (%p664) target = $region100
        $region99: #{tpu_custom_call.1} parent=83 // pred_region
          %p667 = scmp.lt.s32.totalorder %s35, 1
          %s668 = scalar_select %p667, %s35, 1
          %s669 = scalar_lea.vmem %s3, %s668
        $region100: #{tpu_custom_call.1} parent=83 // pred_fallthru
          _
      $region84: #{tpu_custom_call.1} parent=5 // pred_fallthru
        _
      %p670 = scmp.le.s32.totalorder 1, %s35
      %p671 = scmp.lt.s32.totalorder %s35, 3
      %p672 = pnand %p670, %p671
      %p673 = pneg %p672
      // Predicated region
      $region101: #{tpu_custom_call.1} parent=5 // pred_check
        _
      $region102: #{tpu_custom_call.1} parent=5 // pred_check_branch
        %675 = sbr.rel (%p672) target = $region104
      $region103: #{tpu_custom_call.1} parent=5 // pred_region
        %s676 = ssub.s32 %s35, 1
        %s677 = sand.u32 %s48, 1
        %s678 = scalar_lea.sflag [#allocation3], %s677
        %s679 = sand.u32 %s48, 1
        %s680 = smul.addr %s679, 4
        %s681 = scalar_lea.vmem [#allocation2], %s680
        // Predicated region
        $region105: #{tpu_custom_call.1} parent=103 // pred_check
          %p682 = pneg %p61
        $region106: #{tpu_custom_call.1} parent=103 // pred_check_branch
          %684 = sbr.rel (%p682) target = $region108
        $region107: #{tpu_custom_call.1} parent=103 // pred_region
          %685 = dma.done %s678, 64
        $region108: #{tpu_custom_call.1} parent=103 // pred_fallthru
          _
        // Predicated region
        $region109: #{tpu_custom_call.1} parent=103 // pred_check
          %p686 = pneg %p265
        $region110: #{tpu_custom_call.1} parent=103 // pred_check_branch
          %688 = sbr.rel (%p686) target = $region112
        $region111: #{tpu_custom_call.1} parent=103 // pred_region
          %689 = dma.done [#allocation6], 256
        $region112: #{tpu_custom_call.1} parent=103 // pred_fallthru
          _
        // Predicated region
        $region113: #{tpu_custom_call.1} parent=103 // pred_check
          %p690 = pneg %p286
        $region114: #{tpu_custom_call.1} parent=103 // pred_check_branch
          %692 = sbr.rel (%p690) target = $region116
        $region115: #{tpu_custom_call.1} parent=103 // pred_region
          %693 = dma.done [#allocation6], 256
        $region116: #{tpu_custom_call.1} parent=103 // pred_fallthru
          _
        // Predicated region
        $region117: #{tpu_custom_call.1} parent=103 // pred_check
          %p694 = pneg %p307
        $region118: #{tpu_custom_call.1} parent=103 // pred_check_branch
          %696 = sbr.rel (%p694) target = $region120
        $region119: #{tpu_custom_call.1} parent=103 // pred_region
          %697 = dma.done [#allocation9], 256
        $region120: #{tpu_custom_call.1} parent=103 // pred_fallthru
          _
        // Predicated region
        $region121: #{tpu_custom_call.1} parent=103 // pred_check
          %p698 = pneg %p391
        $region122: #{tpu_custom_call.1} parent=103 // pred_check_branch
          %700 = sbr.rel (%p698) target = $region124
        $region123: #{tpu_custom_call.1} parent=103 // pred_region
          %701 = dma.done [#allocation9], 256
        $region124: #{tpu_custom_call.1} parent=103 // pred_fallthru
          _
        %s702 = sand.u32 %s48, 1
        %s703 = scalar_lea.sflag [#allocation3], %s702
        %s704 = sand.u32 %s48, 1
        %s705 = smul.addr %s704, 4
        %s706 = scalar_lea.vmem [#allocation2], %s705
        %p707 = pneg %p61
        %p708 = pneg %p58
        %p709 = scmp.lt.s32.totalorder %s40, 1
        %s710 = scalar_select %p709, %s40, 1
        %s711 = smul.addr %s710, 2
        %s712 = smul.addr %s711, 4
        %s713 = scalar_lea.vmem %s1, %s712
        %p714 = pneg %p87
        %p715 = pneg %p84
        %p716 = scmp.lt.s32.totalorder %s40, 1
        %s717 = scalar_select %p716, %s40, 1
        %s718 = scalar_lea.vmem %s2, %s717
        %p719 = pneg %p113
        %p720 = pneg %p110
        %p721 = scmp.lt.s32.totalorder %s40, 1
        %s722 = scalar_select %p721, %s40, 1
        %s723 = scalar_lea.vmem %s3, %s722
        %p724 = pneg %p139
        %p725 = pneg %p136
        %p726 = pneg %p160
        %p727 = pneg %p157
        %p728 = pneg %p181
        %p729 = pneg %p178
        %p730 = pneg %p202
        %p731 = pneg %p199
        %p732 = pneg %p223
        %p733 = pneg %p220
        %p734 = pneg %p244
        %p735 = pneg %p241
        %p736 = pneg %p265
        %p737 = pneg %p262
        %p738 = pneg %p286
        %p739 = pneg %p283
        %p740 = pneg %p307
        %p741 = pneg %p304
        %p742 = pneg %p328
        %p743 = pneg %p325
        %p744 = pneg %p349
        %p745 = pneg %p346
        %p746 = pneg %p370
        %p747 = pneg %p367
        %p748 = pneg %p391
        %p749 = pneg %p388
        %p750 = pneg %p412
        %p751 = pneg %p409
        %p752 = pneg %p433
        %p753 = pneg %p430
        %p754 = pneg %p454
        %p755 = pneg %p451
        %p756 = pneg %p475
        %p757 = pneg %p472
        %p758 = pneg %p496
        %p759 = pneg %p493
        %p760 = pneg %p522
        %p761 = pneg %p519
        %s762 = sand.u32 %s509, 1
        %s763 = scalar_lea.sflag [#allocation4], %s762
        %s764 = sand.u32 %s509, 1
        %s765 = smul.addr %s764, 4
        %s766 = scalar_lea.vmem [#allocation11], %s765
        %p767 = scmp.lt.s32.totalorder %s40, 1
        %s768 = scalar_select %p767, %s40, 1
        %s769 = smul.addr %s768, 2
        %s770 = smul.addr %s769, 4
        %s771 = scalar_lea.vmem %s1, %s770
        %p772 = scmp.lt.s32.totalorder %s40, 1
        %s773 = scalar_select %p772, %s40, 1
        %s774 = scalar_lea.vmem %s2, %s773
        %p775 = scmp.lt.s32.totalorder %s40, 1
        %s776 = scalar_select %p775, %s40, 1
        %s777 = scalar_lea.vmem %s3, %s776
        %v779 = vld [vmem:[%s681] sm:$0xf]
        %v780 = vld [vmem:[%s771] sm:$0xf]
        %v781 = vld [vmem:[%s771 + $0x4] sm:$0xf]
        %v782 = vlaneseq
        %v783 = vshrl.u32 %v782, 7
        %v784 = vlaneseq
        %v785 = vand.u32 %v784, 127
        %vm786 = vcmp.gt.s32.totalorder %v785, %v783
        %v787 = vld [vmem:[%s4] sm:$0xf]
        %v788 = vld [vmem:[%s4 + $0x4] sm:$0xf]
        %v789 = vld [vmem:[%s4 + $0x8] sm:$0xf]
        %v790 = vld [vmem:[%s4 + $0xc] sm:$0xf]
        %v795 = vunpack.c.l.b16 %v787
        %v796 = vunpack.c.l.b16 %v788
        %v797 = vunpack.c.l.b16 %v789
        %v798 = vunpack.c.l.b16 %v790
        %v799 = vpack.c.b16 %v796, %v795
        %v800 = vpack.c.b16 %v798, %v797
        %vm803 = vcmask 261120
        %v805 = vsel %vm803, %v779, 0
        %807 = vmatprep.subr.bf16.mxu0 0
        %808 = vmatpush1.bf16.msra.mxu0 0
        %809 = vmatprep.subr.bf16.mxu0 0
        %810 = vmatpush1.bf16.msra.mxu0 0
        %811 = vmatprep.subr.bf16.mxu0 0
        %812 = vmatpush1.bf16.msra.mxu0 0
        %813 = vmatprep.subr.bf16.mxu0 0
        %814 = vmatpush1.bf16.msra.mxu0 0
        %815 = vmatprep.subr.bf16.mxu0 0
        %816 = vmatpush1.bf16.msra.mxu0 0
        %817 = vmatprep.subr.bf16.mxu0 0
        %818 = vmatpush1.bf16.msra.mxu0 0
        %819 = vmatprep.subr.bf16.mxu0 0
        %820 = vmatpush1.bf16.msra.mxu0 %v800
        %821 = vmatprep.subr.bf16.mxu0 0
        %822 = vmatpush1.bf16.msra.mxu0 %v799
        %823 = vmatprep.subr.bf16.mxu0 0
        %824 = vmatpush2.bf16.msra.mxu0 0
        %825 = vmatprep.subr.bf16.mxu0 0
        %826 = vmatpush2.bf16.msra.mxu0 0
        %827 = vmatprep.subr.bf16.mxu0 0
        %828 = vmatpush2.bf16.msra.mxu0 0
        %829 = vmatprep.subr.bf16.mxu0 0
        %830 = vmatpush2.bf16.msra.mxu0 0
        %831 = vmatprep.subr.bf16.mxu0 0
        %832 = vmatpush2.bf16.msra.mxu0 0
        %833 = vmatprep.subr.bf16.mxu0 0
        %834 = vmatpush2.bf16.msra.mxu0 0
        %835 = vmatprep.subr.bf16.mxu0 0
        %836 = vmatpush2.bf16.msra.mxu0 0
        %837 = vmatprep.subr.bf16.mxu0 0
        %838 = vmatpush2.bf16.msra.mxu0 0
        %839 = vmatprep.mubr.bf16.mxu0 0
        %840 = vmatmul.mubr.bf16.gmra.mxu0 %v805
        %v841 = vpop.f32.mrf.mxu0
        %v842 = vadd.f32 0.0, %v841
        %v843 = vpop.f32.mrf.mxu0
        %v844 = vpop.f32.mrf.mxu0
        %v845 = vpop.f32.mrf.mxu0
        %846 = vdwg.mxu0
        %v847 = vpack.c.bf16 %v842, %v842
        %v848 = vld [vmem:[%s774] sm:$0x1]
        %vm849 = vcmp.eq.s32.totalorder %v848, 0
        %v850 = vsel %vm849, 1, 0
        %v851 = vlaneseq
        %v852 = vshrl.u32 %v851, 7
        %v853 = vsub.s32 0, %v852
        %v854 = vrot.slane %v850, %v853
        %vm855 = vcmp.eq.s32.totalorder %v854, 1
        %vm856 = vmor %vm786, %vm855
        %v857 = vsel %vm856, -1e+30, 0.0
        %859 = vrot.lane.b32.xlu0 %v847, 120
        %v860 = vpop.permute.xlu0 %859
        %861 = vrot.lane.b32.xlu0 %v847, 112
        %v862 = vpop.permute.xlu0 %861
        %863 = vrot.lane.b32.xlu0 %v847, 104
        %v864 = vpop.permute.xlu0 %863
        %865 = vrot.lane.b32.xlu0 %v847, 96
        %v866 = vpop.permute.xlu0 %865
        %867 = vrot.lane.b32.xlu0 %v860, 96
        %v868 = vpop.permute.xlu0 %867
        %869 = vrot.lane.b32.xlu0 %v862, 96
        %v870 = vpop.permute.xlu0 %869
        %871 = vrot.lane.b32.xlu0 %v864, 96
        %v872 = vpop.permute.xlu0 %871
        %877 = vxpose.xlu0.c.b16.start [1/8] %v866, 128
        %878 = vxpose.xlu0.c.b16.cont [2/8] 0, 128
        %879 = vxpose.xlu0.c.b16.cont [3/8] 0, 128
        %880 = vxpose.xlu0.c.b16.cont [4/8] 0, 128
        %881 = vxpose.xlu0.c.b16.cont [5/8] 0, 128
        %882 = vxpose.xlu0.c.b16.cont [6/8] 0, 128
        %883 = vxpose.xlu0.c.b16.cont [7/8] 0, 128
        %884 = vxpose.xlu0.c.b16.end [8/8] 0, 128
        %v885 = vpop.trf.xlu0
        %v886 = vpop.trf.xlu0
        %v887 = vpop.trf.xlu0
        %v888 = vpop.trf.xlu0
        %v889 = vpop.trf.xlu0
        %v890 = vpop.trf.xlu0
        %v891 = vpop.trf.xlu0
        %v892 = vpop.trf.xlu0
        %893 = vxpose.xlu0.c.b16.start [1/8] %v868, 128
        %894 = vxpose.xlu0.c.b16.cont [2/8] 0, 128
        %895 = vxpose.xlu0.c.b16.cont [3/8] 0, 128
        %896 = vxpose.xlu0.c.b16.cont [4/8] 0, 128
        %897 = vxpose.xlu0.c.b16.cont [5/8] 0, 128
        %898 = vxpose.xlu0.c.b16.cont [6/8] 0, 128
        %899 = vxpose.xlu0.c.b16.cont [7/8] 0, 128
        %900 = vxpose.xlu0.c.b16.end [8/8] 0, 128
        %v901 = vpop.trf.xlu0
        %v902 = vpop.trf.xlu0
        %v903 = vpop.trf.xlu0
        %v904 = vpop.trf.xlu0
        %v905 = vpop.trf.xlu0
        %v906 = vpop.trf.xlu0
        %v907 = vpop.trf.xlu0
        %v908 = vpop.trf.xlu0
        %909 = vxpose.xlu0.c.b16.start [1/8] %v870, 128
        %910 = vxpose.xlu0.c.b16.cont [2/8] 0, 128
        %911 = vxpose.xlu0.c.b16.cont [3/8] 0, 128
        %912 = vxpose.xlu0.c.b16.cont [4/8] 0, 128
        %913 = vxpose.xlu0.c.b16.cont [5/8] 0, 128
        %914 = vxpose.xlu0.c.b16.cont [6/8] 0, 128
        %915 = vxpose.xlu0.c.b16.cont [7/8] 0, 128
        %916 = vxpose.xlu0.c.b16.end [8/8] 0, 128
        %v917 = vpop.trf.xlu0
        %v918 = vpop.trf.xlu0
        %v919 = vpop.trf.xlu0
        %v920 = vpop.trf.xlu0
        %v921 = vpop.trf.xlu0
        %v922 = vpop.trf.xlu0
        %v923 = vpop.trf.xlu0
        %v924 = vpop.trf.xlu0
        %925 = vxpose.xlu0.c.b16.start [1/8] %v872, 128
        %926 = vxpose.xlu0.c.b16.cont [2/8] 0, 128
        %927 = vxpose.xlu0.c.b16.cont [3/8] 0, 128
        %928 = vxpose.xlu0.c.b16.cont [4/8] 0, 128
        %929 = vxpose.xlu0.c.b16.cont [5/8] 0, 128
        %930 = vxpose.xlu0.c.b16.cont [6/8] 0, 128
        %931 = vxpose.xlu0.c.b16.cont [7/8] 0, 128
        %932 = vxpose.xlu0.c.b16.end [8/8] 0, 128
        %v933 = vpop.trf.xlu0
        %v934 = vpop.trf.xlu0
        %v935 = vpop.trf.xlu0
        %v936 = vpop.trf.xlu0
        %v937 = vpop.trf.xlu0
        %v938 = vpop.trf.xlu0
        %v939 = vpop.trf.xlu0
        %v940 = vpop.trf.xlu0
        %vm941 = vcmask 64512
        %v943 = vsel %vm941, %v847, 0
        %vm945 = vcmask 1043456
        %v947 = vsel %vm945, %v885, 0
        %949 = vmatprep.subr.bf16.mxu0 0
        %950 = vmatpush1.bf16.msra.mxu0 0
        %951 = vmatprep.subr.bf16.mxu0 0
        %952 = vmatpush1.bf16.msra.mxu0 0
        %953 = vmatprep.subr.bf16.mxu0 0
        %954 = vmatpush1.bf16.msra.mxu0 0
        %955 = vmatprep.subr.bf16.mxu0 0
        %956 = vmatpush1.bf16.msra.mxu0 0
        %957 = vmatprep.subr.bf16.mxu0 0
        %958 = vmatpush1.bf16.msra.mxu0 0
        %959 = vmatprep.subr.bf16.mxu0 0
        %960 = vmatpush1.bf16.msra.mxu0 0
        %961 = vmatprep.subr.bf16.mxu0 0
        %962 = vmatpush1.bf16.msra.mxu0 0
        %963 = vmatprep.subr.bf16.mxu0 0
        %964 = vmatpush1.bf16.msra.mxu0 %v947
        %965 = vmatprep.subr.bf16.mxu0 0
        %966 = vmatpush2.bf16.msra.mxu0 0
        %967 = vmatprep.subr.bf16.mxu0 0
        %968 = vmatpush2.bf16.msra.mxu0 0
        %969 = vmatprep.subr.bf16.mxu0 0
        %970 = vmatpush2.bf16.msra.mxu0 0
        %971 = vmatprep.subr.bf16.mxu0 0
        %972 = vmatpush2.bf16.msra.mxu0 0
        %973 = vmatprep.subr.bf16.mxu0 0
        %974 = vmatpush2.bf16.msra.mxu0 0
        %975 = vmatprep.subr.bf16.mxu0 0
        %976 = vmatpush2.bf16.msra.mxu0 0
        %977 = vmatprep.subr.bf16.mxu0 0
        %978 = vmatpush2.bf16.msra.mxu0 0
        %979 = vmatprep.subr.bf16.mxu0 0
        %980 = vmatpush2.bf16.msra.mxu0 0
        %981 = vmatprep.mubr.bf16.mxu0 0
        %982 = vmatmul.mubr.bf16.gmra.mxu0 %v943
        %v983 = vpop.f32.mrf.mxu0
        %v984 = vadd.f32 %v857, %v983
        %v985 = vpop.f32.mrf.mxu0
        %v986 = vpop.f32.mrf.mxu0
        %v987 = vpop.f32.mrf.mxu0
        %988 = vdwg.mxu0
        %v990 = vsel %vm941, %v860, 0
        %v993 = vsel %vm945, %v901, 0
        %995 = vmatprep.subr.bf16.mxu0 0
        %996 = vmatpush1.bf16.msra.mxu0 0
        %997 = vmatprep.subr.bf16.mxu0 0
        %998 = vmatpush1.bf16.msra.mxu0 0
        %999 = vmatprep.subr.bf16.mxu0 0
        %1000 = vmatpush1.bf16.msra.mxu0 0
        %1001 = vmatprep.subr.bf16.mxu0 0
        %1002 = vmatpush1.bf16.msra.mxu0 0
        %1003 = vmatprep.subr.bf16.mxu0 0
        %1004 = vmatpush1.bf16.msra.mxu0 0
        %1005 = vmatprep.subr.bf16.mxu0 0
        %1006 = vmatpush1.bf16.msra.mxu0 0
        %1007 = vmatprep.subr.bf16.mxu0 0
        %1008 = vmatpush1.bf16.msra.mxu0 0
        %1009 = vmatprep.subr.bf16.mxu0 0
        %1010 = vmatpush1.bf16.msra.mxu0 %v993
        %1011 = vmatprep.subr.bf16.mxu0 0
        %1012 = vmatpush2.bf16.msra.mxu0 0
        %1013 = vmatprep.subr.bf16.mxu0 0
        %1014 = vmatpush2.bf16.msra.mxu0 0
        %1015 = vmatprep.subr.bf16.mxu0 0
        %1016 = vmatpush2.bf16.msra.mxu0 0
        %1017 = vmatprep.subr.bf16.mxu0 0
        %1018 = vmatpush2.bf16.msra.mxu0 0
        %1019 = vmatprep.subr.bf16.mxu0 0
        %1020 = vmatpush2.bf16.msra.mxu0 0
        %1021 = vmatprep.subr.bf16.mxu0 0
        %1022 = vmatpush2.bf16.msra.mxu0 0
        %1023 = vmatprep.subr.bf16.mxu0 0
        %1024 = vmatpush2.bf16.msra.mxu0 0
        %1025 = vmatprep.subr.bf16.mxu0 0
        %1026 = vmatpush2.bf16.msra.mxu0 0
        %1027 = vmatprep.mubr.bf16.mxu0 0
        %1028 = vmatmul.mubr.bf16.gmra.mxu0 %v990
        %v1029 = vpop.f32.mrf.mxu0
        %v1030 = vadd.f32 %v857, %v1029
        %v1031 = vpop.f32.mrf.mxu0
        %v1032 = vpop.f32.mrf.mxu0
        %v1033 = vpop.f32.mrf.mxu0
        %1034 = vdwg.mxu0
        %v1036 = vsel %vm941, %v862, 0
        %v1039 = vsel %vm945, %v917, 0
        %1041 = vmatprep.subr.bf16.mxu0 0
        %1042 = vmatpush1.bf16.msra.mxu0 0
        %1043 = vmatprep.subr.bf16.mxu0 0
        %1044 = vmatpush1.bf16.msra.mxu0 0
        %1045 = vmatprep.subr.bf16.mxu0 0
        %1046 = vmatpush1.bf16.msra.mxu0 0
        %1047 = vmatprep.subr.bf16.mxu0 0
        %1048 = vmatpush1.bf16.msra.mxu0 0
        %1049 = vmatprep.subr.bf16.mxu0 0
        %1050 = vmatpush1.bf16.msra.mxu0 0
        %1051 = vmatprep.subr.bf16.mxu0 0
        %1052 = vmatpush1.bf16.msra.mxu0 0
        %1053 = vmatprep.subr.bf16.mxu0 0
        %1054 = vmatpush1.bf16.msra.mxu0 0
        %1055 = vmatprep.subr.bf16.mxu0 0
        %1056 = vmatpush1.bf16.msra.mxu0 %v1039
        %1057 = vmatprep.subr.bf16.mxu0 0
        %1058 = vmatpush2.bf16.msra.mxu0 0
        %1059 = vmatprep.subr.bf16.mxu0 0
        %1060 = vmatpush2.bf16.msra.mxu0 0
        %1061 = vmatprep.subr.bf16.mxu0 0
        %1062 = vmatpush2.bf16.msra.mxu0 0
        %1063 = vmatprep.subr.bf16.mxu0 0
        %1064 = vmatpush2.bf16.msra.mxu0 0
        %1065 = vmatprep.subr.bf16.mxu0 0
        %1066 = vmatpush2.bf16.msra.mxu0 0
        %1067 = vmatprep.subr.bf16.mxu0 0
        %1068 = vmatpush2.bf16.msra.mxu0 0
        %1069 = vmatprep.subr.bf16.mxu0 0
        %1070 = vmatpush2.bf16.msra.mxu0 0
        %1071 = vmatprep.subr.bf16.mxu0 0
        %1072 = vmatpush2.bf16.msra.mxu0 0
        %1073 = vmatprep.mubr.bf16.mxu0 0
        %1074 = vmatmul.mubr.bf16.gmra.mxu0 %v1036
        %v1075 = vpop.f32.mrf.mxu0
        %v1076 = vadd.f32 %v857, %v1075
        %v1077 = vpop.f32.mrf.mxu0
        %v1078 = vpop.f32.mrf.mxu0
        %v1079 = vpop.f32.mrf.mxu0
        %1080 = vdwg.mxu0
        %v1082 = vsel %vm941, %v864, 0
        %v1085 = vsel %vm945, %v933, 0
        %1087 = vmatprep.subr.bf16.mxu0 0
        %1088 = vmatpush1.bf16.msra.mxu0 0
        %1089 = vmatprep.subr.bf16.mxu0 0
        %1090 = vmatpush1.bf16.msra.mxu0 0
        %1091 = vmatprep.subr.bf16.mxu0 0
        %1092 = vmatpush1.bf16.msra.mxu0 0
        %1093 = vmatprep.subr.bf16.mxu0 0
        %1094 = vmatpush1.bf16.msra.mxu0 0
        %1095 = vmatprep.subr.bf16.mxu0 0
        %1096 = vmatpush1.bf16.msra.mxu0 0
        %1097 = vmatprep.subr.bf16.mxu0 0
        %1098 = vmatpush1.bf16.msra.mxu0 0
        %1099 = vmatprep.subr.bf16.mxu0 0
        %1100 = vmatpush1.bf16.msra.mxu0 0
        %1101 = vmatprep.subr.bf16.mxu0 0
        %1102 = vmatpush1.bf16.msra.mxu0 %v1085
        %1103 = vmatprep.subr.bf16.mxu0 0
        %1104 = vmatpush2.bf16.msra.mxu0 0
        %1105 = vmatprep.subr.bf16.mxu0 0
        %1106 = vmatpush2.bf16.msra.mxu0 0
        %1107 = vmatprep.subr.bf16.mxu0 0
        %1108 = vmatpush2.bf16.msra.mxu0 0
        %1109 = vmatprep.subr.bf16.mxu0 0
        %1110 = vmatpush2.bf16.msra.mxu0 0
        %1111 = vmatprep.subr.bf16.mxu0 0
        %1112 = vmatpush2.bf16.msra.mxu0 0
        %1113 = vmatprep.subr.bf16.mxu0 0
        %1114 = vmatpush2.bf16.msra.mxu0 0
        %1115 = vmatprep.subr.bf16.mxu0 0
        %1116 = vmatpush2.bf16.msra.mxu0 0
        %1117 = vmatprep.subr.bf16.mxu0 0
        %1118 = vmatpush2.bf16.msra.mxu0 0
        %1119 = vmatprep.mubr.bf16.mxu0 0
        %1120 = vmatmul.mubr.bf16.gmra.mxu0 %v1082
        %v1121 = vpop.f32.mrf.mxu0
        %v1122 = vadd.f32 %v857, %v1121
        %v1123 = vpop.f32.mrf.mxu0
        %v1124 = vpop.f32.mrf.mxu0
        %v1125 = vpop.f32.mrf.mxu0
        %1126 = vdwg.mxu0
        %v1127 = vsel %vm941, %v984, -inf
        %1128 = vmax.xlane.f32.xlu0 %v1127
        %v1129 = vpop.xlane.xlu0 %1128
        %v1130 = vsel %vm941, %v1030, -inf
        %1131 = vmax.xlane.f32.xlu0 %v1130
        %v1132 = vpop.xlane.xlu0 %1131
        %v1133 = vsel %vm941, %v1076, -inf
        %1134 = vmax.xlane.f32.xlu0 %v1133
        %v1135 = vpop.xlane.xlu0 %1134
        %v1136 = vsel %vm941, %v1122, -inf
        %1137 = vmax.xlane.f32.xlu0 %v1136
        %v1138 = vpop.xlane.xlu0 %1137
        %v1139 = vsub.f32 %v984, %v1129
        %v1140 = vsub.f32 %v1030, %v1132
        %v1141 = vsub.f32 %v1076, %v1135
        %v1142 = vsub.f32 %v1122, %v1138
        %v1143 = vmul.f32 %v1139, 1.442695
        %v1144 = vpow.pop %v1143
        %v1145 = vmul.f32 %v1140, 1.442695
        %v1146 = vpow.pop %v1145
        %v1147 = vmul.f32 %v1141, 1.442695
        %v1148 = vpow.pop %v1147
        %v1149 = vmul.f32 %v1142, 1.442695
        %v1150 = vpow.pop %v1149
        %v1151 = vsel %vm941, %v1144, 0.0
        %1152 = vadd.xlane.f32.xlu0 %v1151
        %v1153 = vpop.xlane.xlu0 %1152
        %v1154 = vsel %vm941, %v1146, 0.0
        %1155 = vadd.xlane.f32.xlu0 %v1154
        %v1156 = vpop.xlane.xlu0 %1155
        %v1157 = vsel %vm941, %v1148, 0.0
        %1158 = vadd.xlane.f32.xlu0 %v1157
        %v1159 = vpop.xlane.xlu0 %1158
        %v1160 = vsel %vm941, %v1150, 0.0
        %1161 = vadd.xlane.f32.xlu0 %v1160
        %v1162 = vpop.xlane.xlu0 %1161
        %v1163 = vrcp.pop %v1153
        %v1164 = vrcp.pop %v1156
        %v1165 = vrcp.pop %v1159
        %v1166 = vrcp.pop %v1162
        %v1167 = vmul.f32 %v1144, %v1163
        %v1168 = vmul.f32 %v1146, %v1164
        %v1169 = vmul.f32 %v1148, %v1165
        %v1170 = vmul.f32 %v1150, %v1166
        %v1171 = vpack.c.bf16 %v1167, %v1167
        %v1172 = vpack.c.bf16 %v1168, %v1168
        %v1173 = vpack.c.bf16 %v1169, %v1169
        %v1174 = vpack.c.bf16 %v1170, %v1170
        %1175 = vrot.lane.b32.xlu0 %v847, 64
        %v1176 = vpop.permute.xlu0 %1175
        %1177 = vrot.lane.b32.xlu0 %v860, 64
        %v1178 = vpop.permute.xlu0 %1177
        %1179 = vrot.lane.b32.xlu0 %v862, 64
        %v1180 = vpop.permute.xlu0 %1179
        %1181 = vrot.lane.b32.xlu0 %v864, 64
        %v1182 = vpop.permute.xlu0 %1181
        %1187 = vxpose.xlu0.c.b16.start [1/8] %v1176, 128
        %1188 = vxpose.xlu0.c.b16.cont [2/8] 0, 128
        %1189 = vxpose.xlu0.c.b16.cont [3/8] 0, 128
        %1190 = vxpose.xlu0.c.b16.cont [4/8] 0, 128
        %1191 = vxpose.xlu0.c.b16.cont [5/8] 0, 128
        %1192 = vxpose.xlu0.c.b16.cont [6/8] 0, 128
        %1193 = vxpose.xlu0.c.b16.cont [7/8] 0, 128
        %1194 = vxpose.xlu0.c.b16.end [8/8] 0, 128
        %v1195 = vpop.trf.xlu0
        %v1196 = vpop.trf.xlu0
        %v1197 = vpop.trf.xlu0
        %v1198 = vpop.trf.xlu0
        %v1199 = vpop.trf.xlu0
        %v1200 = vpop.trf.xlu0
        %v1201 = vpop.trf.xlu0
        %v1202 = vpop.trf.xlu0
        %1203 = vxpose.xlu0.c.b16.start [1/8] %v1178, 128
        %1204 = vxpose.xlu0.c.b16.cont [2/8] 0, 128
        %1205 = vxpose.xlu0.c.b16.cont [3/8] 0, 128
        %1206 = vxpose.xlu0.c.b16.cont [4/8] 0, 128
        %1207 = vxpose.xlu0.c.b16.cont [5/8] 0, 128
        %1208 = vxpose.xlu0.c.b16.cont [6/8] 0, 128
        %1209 = vxpose.xlu0.c.b16.cont [7/8] 0, 128
        %1210 = vxpose.xlu0.c.b16.end [8/8] 0, 128
        %v1211 = vpop.trf.xlu0
        %v1212 = vpop.trf.xlu0
        %v1213 = vpop.trf.xlu0
        %v1214 = vpop.trf.xlu0
        %v1215 = vpop.trf.xlu0
        %v1216 = vpop.trf.xlu0
        %v1217 = vpop.trf.xlu0
        %v1218 = vpop.trf.xlu0
        %1219 = vxpose.xlu0.c.b16.start [1/8] %v1180, 128
        %1220 = vxpose.xlu0.c.b16.cont [2/8] 0, 128
        %1221 = vxpose.xlu0.c.b16.cont [3/8] 0, 128
        %1222 = vxpose.xlu0.c.b16.cont [4/8] 0, 128
        %1223 = vxpose.xlu0.c.b16.cont [5/8] 0, 128
        %1224 = vxpose.xlu0.c.b16.cont [6/8] 0, 128
        %1225 = vxpose.xlu0.c.b16.cont [7/8] 0, 128
        %1226 = vxpose.xlu0.c.b16.end [8/8] 0, 128
        %v1227 = vpop.trf.xlu0
        %v1228 = vpop.trf.xlu0
        %v1229 = vpop.trf.xlu0
        %v1230 = vpop.trf.xlu0
        %v1231 = vpop.trf.xlu0
        %v1232 = vpop.trf.xlu0
        %v1233 = vpop.trf.xlu0
        %v1234 = vpop.trf.xlu0
        %1235 = vxpose.xlu0.c.b16.start [1/8] %v1182, 128
        %1236 = vxpose.xlu0.c.b16.cont [2/8] 0, 128
        %1237 = vxpose.xlu0.c.b16.cont [3/8] 0, 128
        %1238 = vxpose.xlu0.c.b16.cont [4/8] 0, 128
        %1239 = vxpose.xlu0.c.b16.cont [5/8] 0, 128
        %1240 = vxpose.xlu0.c.b16.cont [6/8] 0, 128
        %1241 = vxpose.xlu0.c.b16.cont [7/8] 0, 128
        %1242 = vxpose.xlu0.c.b16.end [8/8] 0, 128
        %v1243 = vpop.trf.xlu0
        %v1244 = vpop.trf.xlu0
        %v1245 = vpop.trf.xlu0
        %v1246 = vpop.trf.xlu0
        %v1247 = vpop.trf.xlu0
        %v1248 = vpop.trf.xlu0
        %v1249 = vpop.trf.xlu0
        %v1250 = vpop.trf.xlu0
        %v1252 = vsel %vm941, %v1195, 0
        %v1255 = vsel %vm941, %v1171, 0
        %1257 = vmatprep.subr.bf16.mxu0 0
        %1258 = vmatpush1.bf16.xpose.msra.mxu0 0
        %1259 = vmatprep.subr.bf16.mxu0 0
        %1260 = vmatpush1.bf16.xpose.msra.mxu0 0
        %1261 = vmatprep.subr.bf16.mxu0 0
        %1262 = vmatpush1.bf16.xpose.msra.mxu0 0
        %1263 = vmatprep.subr.bf16.mxu0 0
        %1264 = vmatpush1.bf16.xpose.msra.mxu0 0
        %1265 = vmatprep.subr.bf16.mxu0 0
        %1266 = vmatpush1.bf16.xpose.msra.mxu0 0
        %1267 = vmatprep.subr.bf16.mxu0 0
        %1268 = vmatpush1.bf16.xpose.msra.mxu0 0
        %1269 = vmatprep.subr.bf16.mxu0 0
        %1270 = vmatpush1.bf16.xpose.msra.mxu0 0
        %1271 = vmatprep.subr.bf16.mxu0 0
        %1272 = vmatpush1.bf16.xpose.msra.mxu0 %v1255
        %1273 = vmatprep.subr.bf16.mxu0 0
        %1274 = vmatpush2.bf16.xpose.msra.mxu0 0
        %1275 = vmatprep.subr.bf16.mxu0 0
        %1276 = vmatpush2.bf16.xpose.msra.mxu0 0
        %1277 = vmatprep.subr.bf16.mxu0 0
        %1278 = vmatpush2.bf16.xpose.msra.mxu0 0
        %1279 = vmatprep.subr.bf16.mxu0 0
        %1280 = vmatpush2.bf16.xpose.msra.mxu0 0
        %1281 = vmatprep.subr.bf16.mxu0 0
        %1282 = vmatpush2.bf16.xpose.msra.mxu0 0
        %1283 = vmatprep.subr.bf16.mxu0 0
        %1284 = vmatpush2.bf16.xpose.msra.mxu0 0
        %1285 = vmatprep.subr.bf16.mxu0 0
        %1286 = vmatpush2.bf16.xpose.msra.mxu0 0
        %1287 = vmatprep.subr.bf16.mxu0 0
        %1288 = vmatpush2.bf16.xpose.msra.mxu0 0
        %1289 = vmatprep.mubr.bf16.mxu0 0
        %1290 = vmatmul.mubr.bf16.gmra.mxu0 %v1252
        %v1291 = vpop.f32.mrf.mxu0
        %v1292 = vadd.f32 0.0, %v1291
        %v1293 = vpop.f32.mrf.mxu0
        %v1294 = vpop.f32.mrf.mxu0
        %v1295 = vpop.f32.mrf.mxu0
        %1296 = vdwg.mxu0
        %v1298 = vsel %vm941, %v1211, 0
        %v1301 = vsel %vm941, %v1172, 0
        %1303 = vmatprep.subr.bf16.mxu0 0
        %1304 = vmatpush1.bf16.xpose.msra.mxu0 0
        %1305 = vmatprep.subr.bf16.mxu0 0
        %1306 = vmatpush1.bf16.xpose.msra.mxu0 0
        %1307 = vmatprep.subr.bf16.mxu0 0
        %1308 = vmatpush1.bf16.xpose.msra.mxu0 0
        %1309 = vmatprep.subr.bf16.mxu0 0
        %1310 = vmatpush1.bf16.xpose.msra.mxu0 0
        %1311 = vmatprep.subr.bf16.mxu0 0
        %1312 = vmatpush1.bf16.xpose.msra.mxu0 0
        %1313 = vmatprep.subr.bf16.mxu0 0
        %1314 = vmatpush1.bf16.xpose.msra.mxu0 0
        %1315 = vmatprep.subr.bf16.mxu0 0
        %1316 = vmatpush1.bf16.xpose.msra.mxu0 0
        %1317 = vmatprep.subr.bf16.mxu0 0
        %1318 = vmatpush1.bf16.xpose.msra.mxu0 %v1301
        %1319 = vmatprep.subr.bf16.mxu0 0
        %1320 = vmatpush2.bf16.xpose.msra.mxu0 0
        %1321 = vmatprep.subr.bf16.mxu0 0
        %1322 = vmatpush2.bf16.xpose.msra.mxu0 0
        %1323 = vmatprep.subr.bf16.mxu0 0
        %1324 = vmatpush2.bf16.xpose.msra.mxu0 0
        %1325 = vmatprep.subr.bf16.mxu0 0
        %1326 = vmatpush2.bf16.xpose.msra.mxu0 0
        %1327 = vmatprep.subr.bf16.mxu0 0
        %1328 = vmatpush2.bf16.xpose.msra.mxu0 0
        %1329 = vmatprep.subr.bf16.mxu0 0
        %1330 = vmatpush2.bf16.xpose.msra.mxu0 0
        %1331 = vmatprep.subr.bf16.mxu0 0
        %1332 = vmatpush2.bf16.xpose.msra.mxu0 0
        %1333 = vmatprep.subr.bf16.mxu0 0
        %1334 = vmatpush2.bf16.xpose.msra.mxu0 0
        %1335 = vmatprep.mubr.bf16.mxu0 0
        %1336 = vmatmul.mubr.bf16.gmra.mxu0 %v1298
        %v1337 = vpop.f32.mrf.mxu0
        %v1338 = vadd.f32 0.0, %v1337
        %v1339 = vpop.f32.mrf.mxu0
        %v1340 = vpop.f32.mrf.mxu0
        %v1341 = vpop.f32.mrf.mxu0
        %1342 = vdwg.mxu0
        %v1344 = vsel %vm941, %v1227, 0
        %v1347 = vsel %vm941, %v1173, 0
        %1349 = vmatprep.subr.bf16.mxu0 0
        %1350 = vmatpush1.bf16.xpose.msra.mxu0 0
        %1351 = vmatprep.subr.bf16.mxu0 0
        %1352 = vmatpush1.bf16.xpose.msra.mxu0 0
        %1353 = vmatprep.subr.bf16.mxu0 0
        %1354 = vmatpush1.bf16.xpose.msra.mxu0 0
        %1355 = vmatprep.subr.bf16.mxu0 0
        %1356 = vmatpush1.bf16.xpose.msra.mxu0 0
        %1357 = vmatprep.subr.bf16.mxu0 0
        %1358 = vmatpush1.bf16.xpose.msra.mxu0 0
        %1359 = vmatprep.subr.bf16.mxu0 0
        %1360 = vmatpush1.bf16.xpose.msra.mxu0 0
        %1361 = vmatprep.subr.bf16.mxu0 0
        %1362 = vmatpush1.bf16.xpose.msra.mxu0 0
        %1363 = vmatprep.subr.bf16.mxu0 0
        %1364 = vmatpush1.bf16.xpose.msra.mxu0 %v1347
        %1365 = vmatprep.subr.bf16.mxu0 0
        %1366 = vmatpush2.bf16.xpose.msra.mxu0 0
        %1367 = vmatprep.subr.bf16.mxu0 0
        %1368 = vmatpush2.bf16.xpose.msra.mxu0 0
        %1369 = vmatprep.subr.bf16.mxu0 0
        %1370 = vmatpush2.bf16.xpose.msra.mxu0 0
        %1371 = vmatprep.subr.bf16.mxu0 0
        %1372 = vmatpush2.bf16.xpose.msra.mxu0 0
        %1373 = vmatprep.subr.bf16.mxu0 0
        %1374 = vmatpush2.bf16.xpose.msra.mxu0 0
        %1375 = vmatprep.subr.bf16.mxu0 0
        %1376 = vmatpush2.bf16.xpose.msra.mxu0 0
        %1377 = vmatprep.subr.bf16.mxu0 0
        %1378 = vmatpush2.bf16.xpose.msra.mxu0 0
        %1379 = vmatprep.subr.bf16.mxu0 0
        %1380 = vmatpush2.bf16.xpose.msra.mxu0 0
        %1381 = vmatprep.mubr.bf16.mxu0 0
        %1382 = vmatmul.mubr.bf16.gmra.mxu0 %v1344
        %v1383 = vpop.f32.mrf.mxu0
        %v1384 = vadd.f32 0.0, %v1383
        %v1385 = vpop.f32.mrf.mxu0
        %v1386 = vpop.f32.mrf.mxu0
        %v1387 = vpop.f32.mrf.mxu0
        %1388 = vdwg.mxu0
        %v1390 = vsel %vm941, %v1243, 0
        %v1393 = vsel %vm941, %v1174, 0
        %1395 = vmatprep.subr.bf16.mxu0 0
        %1396 = vmatpush1.bf16.xpose.msra.mxu0 0
        %1397 = vmatprep.subr.bf16.mxu0 0
        %1398 = vmatpush1.bf16.xpose.msra.mxu0 0
        %1399 = vmatprep.subr.bf16.mxu0 0
        %1400 = vmatpush1.bf16.xpose.msra.mxu0 0
        %1401 = vmatprep.subr.bf16.mxu0 0
        %1402 = vmatpush1.bf16.xpose.msra.mxu0 0
        %1403 = vmatprep.subr.bf16.mxu0 0
        %1404 = vmatpush1.bf16.xpose.msra.mxu0 0
        %1405 = vmatprep.subr.bf16.mxu0 0
        %1406 = vmatpush1.bf16.xpose.msra.mxu0 0
        %1407 = vmatprep.subr.bf16.mxu0 0
        %1408 = vmatpush1.bf16.xpose.msra.mxu0 0
        %1409 = vmatprep.subr.bf16.mxu0 0
        %1410 = vmatpush1.bf16.xpose.msra.mxu0 %v1393
        %1411 = vmatprep.subr.bf16.mxu0 0
        %1412 = vmatpush2.bf16.xpose.msra.mxu0 0
        %1413 = vmatprep.subr.bf16.mxu0 0
        %1414 = vmatpush2.bf16.xpose.msra.mxu0 0
        %1415 = vmatprep.subr.bf16.mxu0 0
        %1416 = vmatpush2.bf16.xpose.msra.mxu0 0
        %1417 = vmatprep.subr.bf16.mxu0 0
        %1418 = vmatpush2.bf16.xpose.msra.mxu0 0
        %1419 = vmatprep.subr.bf16.mxu0 0
        %1420 = vmatpush2.bf16.xpose.msra.mxu0 0
        %1421 = vmatprep.subr.bf16.mxu0 0
        %1422 = vmatpush2.bf16.xpose.msra.mxu0 0
        %1423 = vmatprep.subr.bf16.mxu0 0
        %1424 = vmatpush2.bf16.xpose.msra.mxu0 0
        %1425 = vmatprep.subr.bf16.mxu0 0
        %1426 = vmatpush2.bf16.xpose.msra.mxu0 0
        %1427 = vmatprep.mubr.bf16.mxu0 0
        %1428 = vmatmul.mubr.bf16.gmra.mxu0 %v1390
        %v1429 = vpop.f32.mrf.mxu0
        %v1430 = vadd.f32 0.0, %v1429
        %v1431 = vpop.f32.mrf.mxu0
        %v1432 = vpop.f32.mrf.mxu0
        %v1433 = vpop.f32.mrf.mxu0
        %1434 = vdwg.mxu0
        %1435 = vxpose.xlu0.b32.start [1/16] %v1292, 128
        %1436 = vxpose.xlu0.b32.cont [2/16] 0.0, 128
        %1437 = vxpose.xlu0.b32.cont [3/16] 0.0, 128
        %1438 = vxpose.xlu0.b32.cont [4/16] 0.0, 128
        %1439 = vxpose.xlu0.b32.cont [5/16] 0.0, 128
        %1440 = vxpose.xlu0.b32.cont [6/16] 0.0, 128
        %1441 = vxpose.xlu0.b32.cont [7/16] 0.0, 128
        %1442 = vxpose.xlu0.b32.cont [8/16] 0.0, 128
        %1443 = vxpose.xlu0.b32.cont [9/16] 0.0, 128
        %1444 = vxpose.xlu0.b32.cont [10/16] 0.0, 128
        %1445 = vxpose.xlu0.b32.cont [11/16] 0.0, 128
        %1446 = vxpose.xlu0.b32.cont [12/16] 0.0, 128
        %1447 = vxpose.xlu0.b32.cont [13/16] 0.0, 128
        %1448 = vxpose.xlu0.b32.cont [14/16] 0.0, 128
        %1449 = vxpose.xlu0.b32.cont [15/16] 0.0, 128
        %1450 = vxpose.xlu0.b32.end [16/16] 0.0, 128
        %v1451 = vpop.trf.xlu0
        %v1452 = vpop.trf.xlu0
        %v1453 = vpop.trf.xlu0
        %v1454 = vpop.trf.xlu0
        %v1455 = vpop.trf.xlu0
        %v1456 = vpop.trf.xlu0
        %v1457 = vpop.trf.xlu0
        %v1458 = vpop.trf.xlu0
        %v1459 = vpop.trf.xlu0
        %v1460 = vpop.trf.xlu0
        %v1461 = vpop.trf.xlu0
        %v1462 = vpop.trf.xlu0
        %v1463 = vpop.trf.xlu0
        %v1464 = vpop.trf.xlu0
        %v1465 = vpop.trf.xlu0
        %v1466 = vpop.trf.xlu0
        %1467 = vxpose.xlu0.b32.start [1/16] %v1338, 128
        %1468 = vxpose.xlu0.b32.cont [2/16] 0.0, 128
        %1469 = vxpose.xlu0.b32.cont [3/16] 0.0, 128
        %1470 = vxpose.xlu0.b32.cont [4/16] 0.0, 128
        %1471 = vxpose.xlu0.b32.cont [5/16] 0.0, 128
        %1472 = vxpose.xlu0.b32.cont [6/16] 0.0, 128
        %1473 = vxpose.xlu0.b32.cont [7/16] 0.0, 128
        %1474 = vxpose.xlu0.b32.cont [8/16] 0.0, 128
        %1475 = vxpose.xlu0.b32.cont [9/16] 0.0, 128
        %1476 = vxpose.xlu0.b32.cont [10/16] 0.0, 128
        %1477 = vxpose.xlu0.b32.cont [11/16] 0.0, 128
        %1478 = vxpose.xlu0.b32.cont [12/16] 0.0, 128
        %1479 = vxpose.xlu0.b32.cont [13/16] 0.0, 128
        %1480 = vxpose.xlu0.b32.cont [14/16] 0.0, 128
        %1481 = vxpose.xlu0.b32.cont [15/16] 0.0, 128
        %1482 = vxpose.xlu0.b32.end [16/16] 0.0, 128
        %v1483 = vpop.trf.xlu0
        %v1484 = vpop.trf.xlu0
        %v1485 = vpop.trf.xlu0
        %v1486 = vpop.trf.xlu0
        %v1487 = vpop.trf.xlu0
        %v1488 = vpop.trf.xlu0
        %v1489 = vpop.trf.xlu0
        %v1490 = vpop.trf.xlu0
        %v1491 = vpop.trf.xlu0
        %v1492 = vpop.trf.xlu0
        %v1493 = vpop.trf.xlu0
        %v1494 = vpop.trf.xlu0
        %v1495 = vpop.trf.xlu0
        %v1496 = vpop.trf.xlu0
        %v1497 = vpop.trf.xlu0
        %v1498 = vpop.trf.xlu0
        %1499 = vxpose.xlu0.b32.start [1/16] %v1384, 128
        %1500 = vxpose.xlu0.b32.cont [2/16] 0.0, 128
        %1501 = vxpose.xlu0.b32.cont [3/16] 0.0, 128
        %1502 = vxpose.xlu0.b32.cont [4/16] 0.0, 128
        %1503 = vxpose.xlu0.b32.cont [5/16] 0.0, 128
        %1504 = vxpose.xlu0.b32.cont [6/16] 0.0, 128
        %1505 = vxpose.xlu0.b32.cont [7/16] 0.0, 128
        %1506 = vxpose.xlu0.b32.cont [8/16] 0.0, 128
        %1507 = vxpose.xlu0.b32.cont [9/16] 0.0, 128
        %1508 = vxpose.xlu0.b32.cont [10/16] 0.0, 128
        %1509 = vxpose.xlu0.b32.cont [11/16] 0.0, 128
        %1510 = vxpose.xlu0.b32.cont [12/16] 0.0, 128
        %1511 = vxpose.xlu0.b32.cont [13/16] 0.0, 128
        %1512 = vxpose.xlu0.b32.cont [14/16] 0.0, 128
        %1513 = vxpose.xlu0.b32.cont [15/16] 0.0, 128
        %1514 = vxpose.xlu0.b32.end [16/16] 0.0, 128
        %v1515 = vpop.trf.xlu0
        %v1516 = vpop.trf.xlu0
        %v1517 = vpop.trf.xlu0
        %v1518 = vpop.trf.xlu0
        %v1519 = vpop.trf.xlu0
        %v1520 = vpop.trf.xlu0
        %v1521 = vpop.trf.xlu0
        %v1522 = vpop.trf.xlu0
        %v1523 = vpop.trf.xlu0
        %v1524 = vpop.trf.xlu0
        %v1525 = vpop.trf.xlu0
        %v1526 = vpop.trf.xlu0
        %v1527 = vpop.trf.xlu0
        %v1528 = vpop.trf.xlu0
        %v1529 = vpop.trf.xlu0
        %v1530 = vpop.trf.xlu0
        %1531 = vxpose.xlu0.b32.start [1/16] %v1430, 128
        %1532 = vxpose.xlu0.b32.cont [2/16] 0.0, 128
        %1533 = vxpose.xlu0.b32.cont [3/16] 0.0, 128
        %1534 = vxpose.xlu0.b32.cont [4/16] 0.0, 128
        %1535 = vxpose.xlu0.b32.cont [5/16] 0.0, 128
        %1536 = vxpose.xlu0.b32.cont [6/16] 0.0, 128
        %1537 = vxpose.xlu0.b32.cont [7/16] 0.0, 128
        %1538 = vxpose.xlu0.b32.cont [8/16] 0.0, 128
        %1539 = vxpose.xlu0.b32.cont [9/16] 0.0, 128
        %1540 = vxpose.xlu0.b32.cont [10/16] 0.0, 128
        %1541 = vxpose.xlu0.b32.cont [11/16] 0.0, 128
        %1542 = vxpose.xlu0.b32.cont [12/16] 0.0, 128
        %1543 = vxpose.xlu0.b32.cont [13/16] 0.0, 128
        %1544 = vxpose.xlu0.b32.cont [14/16] 0.0, 128
        %1545 = vxpose.xlu0.b32.cont [15/16] 0.0, 128
        %1546 = vxpose.xlu0.b32.end [16/16] 0.0, 128
        %v1547 = vpop.trf.xlu0
        %v1548 = vpop.trf.xlu0
        %v1549 = vpop.trf.xlu0
        %v1550 = vpop.trf.xlu0
        %v1551 = vpop.trf.xlu0
        %v1552 = vpop.trf.xlu0
        %v1553 = vpop.trf.xlu0
        %v1554 = vpop.trf.xlu0
        %v1555 = vpop.trf.xlu0
        %v1556 = vpop.trf.xlu0
        %v1557 = vpop.trf.xlu0
        %v1558 = vpop.trf.xlu0
        %v1559 = vpop.trf.xlu0
        %v1560 = vpop.trf.xlu0
        %v1561 = vpop.trf.xlu0
        %v1562 = vpop.trf.xlu0
        %v1563 = vcombine.low %v1451, %v1515
        %v1564 = vcombine.high %v1451, %v1515
        %v1566 = vunpack.c.l.s4 1983009808
        %v1567 = vunpack.c.0.s8 %v1566
        %v1568 = vlaneseq
        %v1569 = vshrl.u32 %v1568, 7
        %v1570 = vsub.s32 %v1567, %v1569
        %v1571 = vrot.slane %v1563, %v1570
        %v1573 = vunpack.c.l.s4 1983009808
        %v1574 = vunpack.c.0.s8 %v1573
        %v1575 = vlaneseq
        %v1576 = vshrl.u32 %v1575, 7
        %v1577 = vsub.s32 %v1574, %v1576
        %v1578 = vrot.slane %v1564, %v1577
        %v1579 = vcombine.low %v1483, %v1547
        %v1580 = vcombine.high %v1483, %v1547
        %v1582 = vunpack.c.l.s4 1983009808
        %v1583 = vunpack.c.0.s8 %v1582
        %v1584 = vlaneseq
        %v1585 = vshrl.u32 %v1584, 7
        %v1586 = vsub.s32 %v1583, %v1585
        %v1587 = vrot.slane %v1579, %v1586
        %v1589 = vunpack.c.l.s4 1983009808
        %v1590 = vunpack.c.0.s8 %v1589
        %v1591 = vlaneseq
        %v1592 = vshrl.u32 %v1591, 7
        %v1593 = vsub.s32 %v1590, %v1592
        %v1594 = vrot.slane %v1580, %v1593
        %v1595 = vcombine.low %v1571, %v1587
        %v1596 = vcombine.high %v1571, %v1587
        %v1598 = vunpack.c.l.s4 1934713408
        %v1599 = vunpack.c.0.s8 %v1598
        %v1600 = vlaneseq
        %v1601 = vshrl.u32 %v1600, 7
        %v1602 = vsub.s32 %v1599, %v1601
        %v1603 = vrot.slane %v1595, %v1602
        %v1605 = vunpack.c.l.s4 1934713408
        %v1606 = vunpack.c.0.s8 %v1605
        %v1607 = vlaneseq
        %v1608 = vshrl.u32 %v1607, 7
        %v1609 = vsub.s32 %v1606, %v1608
        %v1610 = vrot.slane %v1596, %v1609
        %v1611 = vcombine.low %v1578, %v1594
        %v1612 = vcombine.high %v1578, %v1594
        %v1614 = vunpack.c.l.s4 1934713408
        %v1615 = vunpack.c.0.s8 %v1614
        %v1616 = vlaneseq
        %v1617 = vshrl.u32 %v1616, 7
        %v1618 = vsub.s32 %v1615, %v1617
        %v1619 = vrot.slane %v1611, %v1618
        %v1621 = vunpack.c.l.s4 1934713408
        %v1622 = vunpack.c.0.s8 %v1621
        %v1623 = vlaneseq
        %v1624 = vshrl.u32 %v1623, 7
        %v1625 = vsub.s32 %v1622, %v1624
        %v1626 = vrot.slane %v1612, %v1625
        %v1627 = vcombine.high %v1603, 0.0
        %v1628 = vcombine.high %v1610, 0.0
        %v1629 = vcombine.high %v1619, 0.0
        %v1630 = vcombine.high %v1626, 0.0
        %v1631 = vcombine.low %v1603, %v1610
        %v1633 = vunpack.c.l.s4 1983009808
        %v1634 = vunpack.c.0.s8 %v1633
        %v1635 = vlaneseq
        %v1636 = vshrl.u32 %v1635, 7
        %v1637 = vsub.s32 %v1634, %v1636
        %v1638 = vrot.slane %v1631, %v1637
        %v1639 = vcombine.low %v1627, %v1628
        %v1641 = vunpack.c.l.s4 1983009808
        %v1642 = vunpack.c.0.s8 %v1641
        %v1643 = vlaneseq
        %v1644 = vshrl.u32 %v1643, 7
        %v1645 = vsub.s32 %v1642, %v1644
        %v1646 = vrot.slane %v1639, %v1645
        %v1647 = vcombine.low %v1619, %v1626
        %v1649 = vunpack.c.l.s4 1983009808
        %v1650 = vunpack.c.0.s8 %v1649
        %v1651 = vlaneseq
        %v1652 = vshrl.u32 %v1651, 7
        %v1653 = vsub.s32 %v1650, %v1652
        %v1654 = vrot.slane %v1647, %v1653
        %v1655 = vcombine.low %v1629, %v1630
        %v1657 = vunpack.c.l.s4 1983009808
        %v1658 = vunpack.c.0.s8 %v1657
        %v1659 = vlaneseq
        %v1660 = vshrl.u32 %v1659, 7
        %v1661 = vsub.s32 %v1658, %v1660
        %v1662 = vrot.slane %v1655, %v1661
        %v1663 = vcombine.low %v1638, %v1646
        %v1664 = vcombine.high %v1638, %v1646
        %v1666 = vunpack.c.l.s4 1934713408
        %v1667 = vunpack.c.0.s8 %v1666
        %v1668 = vlaneseq
        %v1669 = vshrl.u32 %v1668, 7
        %v1670 = vsub.s32 %v1667, %v1669
        %v1671 = vrot.slane %v1663, %v1670
        %v1673 = vunpack.c.l.s4 1934713408
        %v1674 = vunpack.c.0.s8 %v1673
        %v1675 = vlaneseq
        %v1676 = vshrl.u32 %v1675, 7
        %v1677 = vsub.s32 %v1674, %v1676
        %v1678 = vrot.slane %v1664, %v1677
        %v1679 = vcombine.low %v1654, %v1662
        %v1680 = vcombine.high %v1654, %v1662
        %v1682 = vunpack.c.l.s4 1934713408
        %v1683 = vunpack.c.0.s8 %v1682
        %v1684 = vlaneseq
        %v1685 = vshrl.u32 %v1684, 7
        %v1686 = vsub.s32 %v1683, %v1685
        %v1687 = vrot.slane %v1679, %v1686
        %v1689 = vunpack.c.l.s4 1934713408
        %v1690 = vunpack.c.0.s8 %v1689
        %v1691 = vlaneseq
        %v1692 = vshrl.u32 %v1691, 7
        %v1693 = vsub.s32 %v1690, %v1692
        %v1694 = vrot.slane %v1680, %v1693
        %v1695 = vcombine.low %v1671, %v1687
        %v1696 = vcombine.high %v1671, %v1687
        %v1697 = vcombine.low %v1678, %v1694
        %v1698 = vcombine.high %v1678, %v1694
        %1700 = vrot.lane.b32.xlu0 %v1696, 8
        %v1701 = vpop.permute.xlu0 %1700
        %1704 = vrot.lane.b32.xlu0 %v1697, 16
        %v1705 = vpop.permute.xlu0 %1704
        %1708 = vrot.lane.b32.xlu0 %v1698, 24
        %v1709 = vpop.permute.xlu0 %1708
        %v1711 = vsel %vm941, %v1695, %v1701
        %vm1712 = vcmask 130048
        %v1713 = vsel %vm1712, %v1711, %v1705
        %vm1714 = vcmask 195584
        %v1715 = vsel %vm1714, %v1713, %v1709
        %v1716 = vpack.c.bf16 %v1715, %v1715
        %v1717 = vld [vmem:[%s5] sm:$0xf]
        %v1718 = vld [vmem:[%s5 + $0x4] sm:$0xf]
        %v1719 = vld [vmem:[%s5 + $0x8] sm:$0xf]
        %v1720 = vld [vmem:[%s5 + $0xc] sm:$0xf]
        %v1721 = vld [vmem:[%s6] sm:$0x1]
        %v1723 = vlaneseq
        %v1724 = vshrl.u32 %v1723, 7
        %v1725 = vsub.s32 0, %v1724
        %v1726 = vrot.slane %v1721, %v1725
        %v1732 = vunpack.c.l.b16 %v1717
        %v1733 = vunpack.c.l.b16 %v1718
        %v1734 = vunpack.c.l.b16 %v1719
        %v1735 = vunpack.c.l.b16 %v1720
        %v1736 = vpack.c.b16 %v1733, %v1732
        %v1737 = vpack.c.b16 %v1735, %v1734
        %v1741 = vsel %vm803, %v1716, 0
        %1743 = vmatprep.subr.bf16.mxu0 0
        %1744 = vmatpush1.bf16.msra.mxu0 0
        %1745 = vmatprep.subr.bf16.mxu0 0
        %1746 = vmatpush1.bf16.msra.mxu0 0
        %1747 = vmatprep.subr.bf16.mxu0 0
        %1748 = vmatpush1.bf16.msra.mxu0 0
        %1749 = vmatprep.subr.bf16.mxu0 0
        %1750 = vmatpush1.bf16.msra.mxu0 0
        %1751 = vmatprep.subr.bf16.mxu0 0
        %1752 = vmatpush1.bf16.msra.mxu0 0
        %1753 = vmatprep.subr.bf16.mxu0 0
        %1754 = vmatpush1.bf16.msra.mxu0 0
        %1755 = vmatprep.subr.bf16.mxu0 0
        %1756 = vmatpush1.bf16.msra.mxu0 %v1737
        %1757 = vmatprep.subr.bf16.mxu0 0
        %1758 = vmatpush1.bf16.msra.mxu0 %v1736
        %1759 = vmatprep.subr.bf16.mxu0 0
        %1760 = vmatpush2.bf16.msra.mxu0 0
        %1761 = vmatprep.subr.bf16.mxu0 0
        %1762 = vmatpush2.bf16.msra.mxu0 0
        %1763 = vmatprep.subr.bf16.mxu0 0
        %1764 = vmatpush2.bf16.msra.mxu0 0
        %1765 = vmatprep.subr.bf16.mxu0 0
        %1766 = vmatpush2.bf16.msra.mxu0 0
        %1767 = vmatprep.subr.bf16.mxu0 0
        %1768 = vmatpush2.bf16.msra.mxu0 0
        %1769 = vmatprep.subr.bf16.mxu0 0
        %1770 = vmatpush2.bf16.msra.mxu0 0
        %1771 = vmatprep.subr.bf16.mxu0 0
        %1772 = vmatpush2.bf16.msra.mxu0 0
        %1773 = vmatprep.subr.bf16.mxu0 0
        %1774 = vmatpush2.bf16.msra.mxu0 0
        %1775 = vmatprep.mubr.bf16.mxu0 0
        %1776 = vmatmul.mubr.bf16.gmra.mxu0 %v1741
        %v1777 = vpop.f32.mrf.mxu0
        %v1778 = vadd.f32 %v1726, %v1777
        %v1779 = vpop.f32.mrf.mxu0
        %v1780 = vpop.f32.mrf.mxu0
        %v1781 = vpop.f32.mrf.mxu0
        %1782 = vdwg.mxu0
        %v1783 = vunpack.c.l.bf16 %v779
        %v1784 = vadd.f32 %v1778, %v1783
        %v1785 = vsel %vm803, %v1784, 0.0
        %1786 = vadd.xlane.f32.xlu0 %v1785
        %v1787 = vpop.xlane.xlu0 %1786
        %v1788 = vrcp.pop 32.0
        %v1789 = vmul.f32 %v1787, %v1788
        %v1790 = vsub.f32 %v1784, %v1789
        %v1791 = vmul.f32 %v1790, %v1790
        %v1792 = vsel %vm803, %v1791, 0.0
        %1793 = vadd.xlane.f32.xlu0 %v1792
        %v1794 = vpop.xlane.xlu0 %1793
        %v1795 = vmul.f32 %v1794, %v1788
        %v1796 = vadd.f32 %v1795, 1e-06
        %v1797 = vrsqrt.pop %v1796
        %v1798 = vmul.f32 %v1790, %v1797
        %v1799 = vld [vmem:[%s7] sm:$0x1]
        %v1801 = vlaneseq
        %v1802 = vshrl.u32 %v1801, 7
        %v1803 = vsub.s32 0, %v1802
        %v1804 = vrot.slane %v1799, %v1803
        %v1806 = vmul.f32 %v1798, %v1804
        %v1807 = vld [vmem:[%s8] sm:$0x1]
        %v1809 = vlaneseq
        %v1810 = vshrl.u32 %v1809, 7
        %v1811 = vsub.s32 0, %v1810
        %v1812 = vrot.slane %v1807, %v1811
        %v1814 = vadd.f32 %v1806, %v1812
        %v1815 = vpack.c.bf16 %v1814, %v1814
        %v1816 = vld [vmem:[#allocation5] sm:$0xf]
        %v1817 = vld [vmem:[#allocation5 + $0x4] sm:$0xf]
        %v1818 = vld [vmem:[#allocation5 + $0x8] sm:$0xf]
        %v1819 = vld [vmem:[#allocation5 + $0xc] sm:$0xf]
        %v1824 = vunpack.c.l.b16 %v1816
        %v1825 = vunpack.c.l.b16 %v1817
        %v1826 = vunpack.c.l.b16 %v1818
        %v1827 = vunpack.c.l.b16 %v1819
        %v1828 = vpack.c.b16 %v1825, %v1824
        %v1829 = vpack.c.b16 %v1827, %v1826
        %v1833 = vsel %vm803, %v1815, 0
        %1835 = vmatprep.subr.bf16.mxu0 0
        %1836 = vmatpush1.bf16.msra.mxu0 0
        %1837 = vmatprep.subr.bf16.mxu0 0
        %1838 = vmatpush1.bf16.msra.mxu0 0
        %1839 = vmatprep.subr.bf16.mxu0 0
        %1840 = vmatpush1.bf16.msra.mxu0 0
        %1841 = vmatprep.subr.bf16.mxu0 0
        %1842 = vmatpush1.bf16.msra.mxu0 0
        %1843 = vmatprep.subr.bf16.mxu0 0
        %1844 = vmatpush1.bf16.msra.mxu0 0
        %1845 = vmatprep.subr.bf16.mxu0 0
        %1846 = vmatpush1.bf16.msra.mxu0 0
        %1847 = vmatprep.subr.bf16.mxu0 0
        %1848 = vmatpush1.bf16.msra.mxu0 %v1829
        %1849 = vmatprep.subr.bf16.mxu0 0
        %1850 = vmatpush1.bf16.msra.mxu0 %v1828
        %1851 = vmatprep.subr.bf16.mxu0 0
        %1852 = vmatpush2.bf16.msra.mxu0 0
        %1853 = vmatprep.subr.bf16.mxu0 0
        %1854 = vmatpush2.bf16.msra.mxu0 0
        %1855 = vmatprep.subr.bf16.mxu0 0
        %1856 = vmatpush2.bf16.msra.mxu0 0
        %1857 = vmatprep.subr.bf16.mxu0 0
        %1858 = vmatpush2.bf16.msra.mxu0 0
        %1859 = vmatprep.subr.bf16.mxu0 0
        %1860 = vmatpush2.bf16.msra.mxu0 0
        %1861 = vmatprep.subr.bf16.mxu0 0
        %1862 = vmatpush2.bf16.msra.mxu0 0
        %1863 = vmatprep.subr.bf16.mxu0 0
        %1864 = vmatpush2.bf16.msra.mxu0 0
        %1865 = vmatprep.subr.bf16.mxu0 0
        %1866 = vmatpush2.bf16.msra.mxu0 0
        %1867 = vmatprep.mubr.bf16.mxu0 0
        %1868 = vmatmul.mubr.bf16.gmra.mxu0 %v1833
        %v1869 = vpop.f32.mrf.mxu0
        %v1870 = vadd.f32 0.0, %v1869
        %v1871 = vpop.f32.mrf.mxu0
        %v1872 = vpop.f32.mrf.mxu0
        %v1873 = vpop.f32.mrf.mxu0
        %1874 = vdwg.mxu0
        %v1875 = vpack.c.bf16 %v1870, %v1870
        %v1876 = vld [vmem:[#allocation7] sm:$0xf]
        %v1877 = vld [vmem:[#allocation7 + $0x4] sm:$0xf]
        %v1878 = vld [vmem:[#allocation7 + $0x8] sm:$0xf]
        %v1879 = vld [vmem:[#allocation7 + $0xc] sm:$0xf]
        %v1882 = vunpack.c.l.b16 %v780
        %v1883 = vunpack.c.l.b16 %v781
        %v1884 = vpack.c.b16 %v1883, %v1882
        %v1889 = vunpack.c.l.b16 %v1876
        %v1890 = vunpack.c.l.b16 %v1877
        %v1891 = vunpack.c.l.b16 %v1878
        %v1892 = vunpack.c.l.b16 %v1879
        %v1893 = vpack.c.b16 %v1890, %v1889
        %v1894 = vpack.c.b16 %v1892, %v1891
        %v1898 = vsel %vm803, %v1884, 0
        %1900 = vmatprep.subr.bf16.mxu0 0
        %1901 = vmatpush1.bf16.msra.mxu0 0
        %1902 = vmatprep.subr.bf16.mxu0 0
        %1903 = vmatpush1.bf16.msra.mxu0 0
        %1904 = vmatprep.subr.bf16.mxu0 0
        %1905 = vmatpush1.bf16.msra.mxu0 0
        %1906 = vmatprep.subr.bf16.mxu0 0
        %1907 = vmatpush1.bf16.msra.mxu0 0
        %1908 = vmatprep.subr.bf16.mxu0 0
        %1909 = vmatpush1.bf16.msra.mxu0 0
        %1910 = vmatprep.subr.bf16.mxu0 0
        %1911 = vmatpush1.bf16.msra.mxu0 0
        %1912 = vmatprep.subr.bf16.mxu0 0
        %1913 = vmatpush1.bf16.msra.mxu0 %v1894
        %1914 = vmatprep.subr.bf16.mxu0 0
        %1915 = vmatpush1.bf16.msra.mxu0 %v1893
        %1916 = vmatprep.subr.bf16.mxu0 0
        %1917 = vmatpush2.bf16.msra.mxu0 0
        %1918 = vmatprep.subr.bf16.mxu0 0
        %1919 = vmatpush2.bf16.msra.mxu0 0
        %1920 = vmatprep.subr.bf16.mxu0 0
        %1921 = vmatpush2.bf16.msra.mxu0 0
        %1922 = vmatprep.subr.bf16.mxu0 0
        %1923 = vmatpush2.bf16.msra.mxu0 0
        %1924 = vmatprep.subr.bf16.mxu0 0
        %1925 = vmatpush2.bf16.msra.mxu0 0
        %1926 = vmatprep.subr.bf16.mxu0 0
        %1927 = vmatpush2.bf16.msra.mxu0 0
        %1928 = vmatprep.subr.bf16.mxu0 0
        %1929 = vmatpush2.bf16.msra.mxu0 0
        %1930 = vmatprep.subr.bf16.mxu0 0
        %1931 = vmatpush2.bf16.msra.mxu0 0
        %1932 = vmatprep.mubr.bf16.mxu0 0
        %1933 = vmatmul.mubr.bf16.gmra.mxu0 %v1898
        %v1934 = vpop.f32.mrf.mxu0
        %v1935 = vadd.f32 0.0, %v1934
        %v1936 = vpop.f32.mrf.mxu0
        %v1937 = vpop.f32.mrf.mxu0
        %v1938 = vadd.f32 0.0, %v1937
        %v1939 = vpop.f32.mrf.mxu0
        %1940 = vdwg.mxu0
        %v1941 = vpack.c.bf16 %v1938, %v1935
        %v1942 = vld [vmem:[%s777] sm:$0x1]
        %vm1943 = vcmp.eq.s32.totalorder %v1942, 0
        %v1944 = vsel %vm1943, -1e+30, 0.0
        %1946 = vrot.lane.b32.xlu0 %v1875, 120
        %v1947 = vpop.permute.xlu0 %1946
        %1948 = vrot.lane.b32.xlu0 %v1875, 112
        %v1949 = vpop.permute.xlu0 %1948
        %1950 = vrot.lane.b32.xlu0 %v1875, 104
        %v1951 = vpop.permute.xlu0 %1950
        %1953 = vrot.lane.b32.xlu0 %v1941, 120
        %v1954 = vpop.permute.xlu0 %1953
        %1956 = vrot.lane.b32.xlu0 %v1941, 112
        %v1957 = vpop.permute.xlu0 %1956
        %1959 = vrot.lane.b32.xlu0 %v1941, 104
        %v1960 = vpop.permute.xlu0 %1959
        %v1963 = vlaneseq
        %v1964 = vshrl.u32 %v1963, 7
        %v1965 = vsub.s32 0, %v1964
        %v1966 = vrot.slane %v1944, %v1965
        %1968 = vxpose.xlu0.c.b16.start [1/8] %v1941, 128
        %1969 = vxpose.xlu0.c.b16.cont [2/8] 0, 128
        %1970 = vxpose.xlu0.c.b16.cont [3/8] 0, 128
        %1971 = vxpose.xlu0.c.b16.cont [4/8] 0, 128
        %1972 = vxpose.xlu0.c.b16.cont [5/8] 0, 128
        %1973 = vxpose.xlu0.c.b16.cont [6/8] 0, 128
        %1974 = vxpose.xlu0.c.b16.cont [7/8] 0, 128
        %1975 = vxpose.xlu0.c.b16.end [8/8] 0, 128
        %v1976 = vpop.trf.xlu0
        %v1977 = vpop.trf.xlu0
        %v1978 = vpop.trf.xlu0
        %v1979 = vpop.trf.xlu0
        %v1980 = vpop.trf.xlu0
        %v1981 = vpop.trf.xlu0
        %v1982 = vpop.trf.xlu0
        %v1983 = vpop.trf.xlu0
        %1984 = vxpose.xlu0.c.b16.start [1/8] %v1954, 128
        %1985 = vxpose.xlu0.c.b16.cont [2/8] 0, 128
        %1986 = vxpose.xlu0.c.b16.cont [3/8] 0, 128
        %1987 = vxpose.xlu0.c.b16.cont [4/8] 0, 128
        %1988 = vxpose.xlu0.c.b16.cont [5/8] 0, 128
        %1989 = vxpose.xlu0.c.b16.cont [6/8] 0, 128
        %1990 = vxpose.xlu0.c.b16.cont [7/8] 0, 128
        %1991 = vxpose.xlu0.c.b16.end [8/8] 0, 128
        %v1992 = vpop.trf.xlu0
        %v1993 = vpop.trf.xlu0
        %v1994 = vpop.trf.xlu0
        %v1995 = vpop.trf.xlu0
        %v1996 = vpop.trf.xlu0
        %v1997 = vpop.trf.xlu0
        %v1998 = vpop.trf.xlu0
        %v1999 = vpop.trf.xlu0
        %2000 = vxpose.xlu0.c.b16.start [1/8] %v1957, 128
        %2001 = vxpose.xlu0.c.b16.cont [2/8] 0, 128
        %2002 = vxpose.xlu0.c.b16.cont [3/8] 0, 128
        %2003 = vxpose.xlu0.c.b16.cont [4/8] 0, 128
        %2004 = vxpose.xlu0.c.b16.cont [5/8] 0, 128
        %2005 = vxpose.xlu0.c.b16.cont [6/8] 0, 128
        %2006 = vxpose.xlu0.c.b16.cont [7/8] 0, 128
        %2007 = vxpose.xlu0.c.b16.end [8/8] 0, 128
        %v2008 = vpop.trf.xlu0
        %v2009 = vpop.trf.xlu0
        %v2010 = vpop.trf.xlu0
        %v2011 = vpop.trf.xlu0
        %v2012 = vpop.trf.xlu0
        %v2013 = vpop.trf.xlu0
        %v2014 = vpop.trf.xlu0
        %v2015 = vpop.trf.xlu0
        %2016 = vxpose.xlu0.c.b16.start [1/8] %v1960, 128
        %2017 = vxpose.xlu0.c.b16.cont [2/8] 0, 128
        %2018 = vxpose.xlu0.c.b16.cont [3/8] 0, 128
        %2019 = vxpose.xlu0.c.b16.cont [4/8] 0, 128
        %2020 = vxpose.xlu0.c.b16.cont [5/8] 0, 128
        %2021 = vxpose.xlu0.c.b16.cont [6/8] 0, 128
        %2022 = vxpose.xlu0.c.b16.cont [7/8] 0, 128
        %2023 = vxpose.xlu0.c.b16.end [8/8] 0, 128
        %v2024 = vpop.trf.xlu0
        %v2025 = vpop.trf.xlu0
        %v2026 = vpop.trf.xlu0
        %v2027 = vpop.trf.xlu0
        %v2028 = vpop.trf.xlu0
        %v2029 = vpop.trf.xlu0
        %v2030 = vpop.trf.xlu0
        %v2031 = vpop.trf.xlu0
        %v2033 = vsel %vm941, %v1875, 0
        %v2036 = vsel %vm945, %v1976, 0
        %2038 = vmatprep.subr.bf16.mxu0 0
        %2039 = vmatpush1.bf16.msra.mxu0 0
        %2040 = vmatprep.subr.bf16.mxu0 0
        %2041 = vmatpush1.bf16.msra.mxu0 0
        %2042 = vmatprep.subr.bf16.mxu0 0
        %2043 = vmatpush1.bf16.msra.mxu0 0
        %2044 = vmatprep.subr.bf16.mxu0 0
        %2045 = vmatpush1.bf16.msra.mxu0 0
        %2046 = vmatprep.subr.bf16.mxu0 0
        %2047 = vmatpush1.bf16.msra.mxu0 0
        %2048 = vmatprep.subr.bf16.mxu0 0
        %2049 = vmatpush1.bf16.msra.mxu0 0
        %2050 = vmatprep.subr.bf16.mxu0 0
        %2051 = vmatpush1.bf16.msra.mxu0 0
        %2052 = vmatprep.subr.bf16.mxu0 0
        %2053 = vmatpush1.bf16.msra.mxu0 %v2036
        %2054 = vmatprep.subr.bf16.mxu0 0
        %2055 = vmatpush2.bf16.msra.mxu0 0
        %2056 = vmatprep.subr.bf16.mxu0 0
        %2057 = vmatpush2.bf16.msra.mxu0 0
        %2058 = vmatprep.subr.bf16.mxu0 0
        %2059 = vmatpush2.bf16.msra.mxu0 0
        %2060 = vmatprep.subr.bf16.mxu0 0
        %2061 = vmatpush2.bf16.msra.mxu0 0
        %2062 = vmatprep.subr.bf16.mxu0 0
        %2063 = vmatpush2.bf16.msra.mxu0 0
        %2064 = vmatprep.subr.bf16.mxu0 0
        %2065 = vmatpush2.bf16.msra.mxu0 0
        %2066 = vmatprep.subr.bf16.mxu0 0
        %2067 = vmatpush2.bf16.msra.mxu0 0
        %2068 = vmatprep.subr.bf16.mxu0 0
        %2069 = vmatpush2.bf16.msra.mxu0 0
        %2070 = vmatprep.mubr.bf16.mxu0 0
        %2071 = vmatmul.mubr.bf16.gmra.mxu0 %v2033
        %v2072 = vpop.f32.mrf.mxu0
        %v2073 = vadd.f32 %v1966, %v2072
        %v2074 = vpop.f32.mrf.mxu0
        %v2075 = vpop.f32.mrf.mxu0
        %v2076 = vpop.f32.mrf.mxu0
        %2077 = vdwg.mxu0
        %v2079 = vsel %vm941, %v1947, 0
        %v2082 = vsel %vm945, %v1992, 0
        %2084 = vmatprep.subr.bf16.mxu0 0
        %2085 = vmatpush1.bf16.msra.mxu0 0
        %2086 = vmatprep.subr.bf16.mxu0 0
        %2087 = vmatpush1.bf16.msra.mxu0 0
        %2088 = vmatprep.subr.bf16.mxu0 0
        %2089 = vmatpush1.bf16.msra.mxu0 0
        %2090 = vmatprep.subr.bf16.mxu0 0
        %2091 = vmatpush1.bf16.msra.mxu0 0
        %2092 = vmatprep.subr.bf16.mxu0 0
        %2093 = vmatpush1.bf16.msra.mxu0 0
        %2094 = vmatprep.subr.bf16.mxu0 0
        %2095 = vmatpush1.bf16.msra.mxu0 0
        %2096 = vmatprep.subr.bf16.mxu0 0
        %2097 = vmatpush1.bf16.msra.mxu0 0
        %2098 = vmatprep.subr.bf16.mxu0 0
        %2099 = vmatpush1.bf16.msra.mxu0 %v2082
        %2100 = vmatprep.subr.bf16.mxu0 0
        %2101 = vmatpush2.bf16.msra.mxu0 0
        %2102 = vmatprep.subr.bf16.mxu0 0
        %2103 = vmatpush2.bf16.msra.mxu0 0
        %2104 = vmatprep.subr.bf16.mxu0 0
        %2105 = vmatpush2.bf16.msra.mxu0 0
        %2106 = vmatprep.subr.bf16.mxu0 0
        %2107 = vmatpush2.bf16.msra.mxu0 0
        %2108 = vmatprep.subr.bf16.mxu0 0
        %2109 = vmatpush2.bf16.msra.mxu0 0
        %2110 = vmatprep.subr.bf16.mxu0 0
        %2111 = vmatpush2.bf16.msra.mxu0 0
        %2112 = vmatprep.subr.bf16.mxu0 0
        %2113 = vmatpush2.bf16.msra.mxu0 0
        %2114 = vmatprep.subr.bf16.mxu0 0
        %2115 = vmatpush2.bf16.msra.mxu0 0
        %2116 = vmatprep.mubr.bf16.mxu0 0
        %2117 = vmatmul.mubr.bf16.gmra.mxu0 %v2079
        %v2118 = vpop.f32.mrf.mxu0
        %v2119 = vadd.f32 %v1966, %v2118
        %v2120 = vpop.f32.mrf.mxu0
        %v2121 = vpop.f32.mrf.mxu0
        %v2122 = vpop.f32.mrf.mxu0
        %2123 = vdwg.mxu0
        %v2125 = vsel %vm941, %v1949, 0
        %v2128 = vsel %vm945, %v2008, 0
        %2130 = vmatprep.subr.bf16.mxu0 0
        %2131 = vmatpush1.bf16.msra.mxu0 0
        %2132 = vmatprep.subr.bf16.mxu0 0
        %2133 = vmatpush1.bf16.msra.mxu0 0
        %2134 = vmatprep.subr.bf16.mxu0 0
        %2135 = vmatpush1.bf16.msra.mxu0 0
        %2136 = vmatprep.subr.bf16.mxu0 0
        %2137 = vmatpush1.bf16.msra.mxu0 0
        %2138 = vmatprep.subr.bf16.mxu0 0
        %2139 = vmatpush1.bf16.msra.mxu0 0
        %2140 = vmatprep.subr.bf16.mxu0 0
        %2141 = vmatpush1.bf16.msra.mxu0 0
        %2142 = vmatprep.subr.bf16.mxu0 0
        %2143 = vmatpush1.bf16.msra.mxu0 0
        %2144 = vmatprep.subr.bf16.mxu0 0
        %2145 = vmatpush1.bf16.msra.mxu0 %v2128
        %2146 = vmatprep.subr.bf16.mxu0 0
        %2147 = vmatpush2.bf16.msra.mxu0 0
        %2148 = vmatprep.subr.bf16.mxu0 0
        %2149 = vmatpush2.bf16.msra.mxu0 0
        %2150 = vmatprep.subr.bf16.mxu0 0
        %2151 = vmatpush2.bf16.msra.mxu0 0
        %2152 = vmatprep.subr.bf16.mxu0 0
        %2153 = vmatpush2.bf16.msra.mxu0 0
        %2154 = vmatprep.subr.bf16.mxu0 0
        %2155 = vmatpush2.bf16.msra.mxu0 0
        %2156 = vmatprep.subr.bf16.mxu0 0
        %2157 = vmatpush2.bf16.msra.mxu0 0
        %2158 = vmatprep.subr.bf16.mxu0 0
        %2159 = vmatpush2.bf16.msra.mxu0 0
        %2160 = vmatprep.subr.bf16.mxu0 0
        %2161 = vmatpush2.bf16.msra.mxu0 0
        %2162 = vmatprep.mubr.bf16.mxu0 0
        %2163 = vmatmul.mubr.bf16.gmra.mxu0 %v2125
        %v2164 = vpop.f32.mrf.mxu0
        %v2165 = vadd.f32 %v1966, %v2164
        %v2166 = vpop.f32.mrf.mxu0
        %v2167 = vpop.f32.mrf.mxu0
        %v2168 = vpop.f32.mrf.mxu0
        %2169 = vdwg.mxu0
        %v2171 = vsel %vm941, %v1951, 0
        %v2174 = vsel %vm945, %v2024, 0
        %2176 = vmatprep.subr.bf16.mxu0 0
        %2177 = vmatpush1.bf16.msra.mxu0 0
        %2178 = vmatprep.subr.bf16.mxu0 0
        %2179 = vmatpush1.bf16.msra.mxu0 0
        %2180 = vmatprep.subr.bf16.mxu0 0
        %2181 = vmatpush1.bf16.msra.mxu0 0
        %2182 = vmatprep.subr.bf16.mxu0 0
        %2183 = vmatpush1.bf16.msra.mxu0 0
        %2184 = vmatprep.subr.bf16.mxu0 0
        %2185 = vmatpush1.bf16.msra.mxu0 0
        %2186 = vmatprep.subr.bf16.mxu0 0
        %2187 = vmatpush1.bf16.msra.mxu0 0
        %2188 = vmatprep.subr.bf16.mxu0 0
        %2189 = vmatpush1.bf16.msra.mxu0 0
        %2190 = vmatprep.subr.bf16.mxu0 0
        %2191 = vmatpush1.bf16.msra.mxu0 %v2174
        %2192 = vmatprep.subr.bf16.mxu0 0
        %2193 = vmatpush2.bf16.msra.mxu0 0
        %2194 = vmatprep.subr.bf16.mxu0 0
        %2195 = vmatpush2.bf16.msra.mxu0 0
        %2196 = vmatprep.subr.bf16.mxu0 0
        %2197 = vmatpush2.bf16.msra.mxu0 0
        %2198 = vmatprep.subr.bf16.mxu0 0
        %2199 = vmatpush2.bf16.msra.mxu0 0
        %2200 = vmatprep.subr.bf16.mxu0 0
        %2201 = vmatpush2.bf16.msra.mxu0 0
        %2202 = vmatprep.subr.bf16.mxu0 0
        %2203 = vmatpush2.bf16.msra.mxu0 0
        %2204 = vmatprep.subr.bf16.mxu0 0
        %2205 = vmatpush2.bf16.msra.mxu0 0
        %2206 = vmatprep.subr.bf16.mxu0 0
        %2207 = vmatpush2.bf16.msra.mxu0 0
        %2208 = vmatprep.mubr.bf16.mxu0 0
        %2209 = vmatmul.mubr.bf16.gmra.mxu0 %v2171
        %v2210 = vpop.f32.mrf.mxu0
        %v2211 = vadd.f32 %v1966, %v2210
        %v2212 = vpop.f32.mrf.mxu0
        %v2213 = vpop.f32.mrf.mxu0
        %v2214 = vpop.f32.mrf.mxu0
        %2215 = vdwg.mxu0
        %v2216 = vsel %vm1712, %v2073, -inf
        %2217 = vmax.xlane.f32.xlu0 %v2216
        %v2218 = vpop.xlane.xlu0 %2217
        %v2219 = vsel %vm1712, %v2119, -inf
        %2220 = vmax.xlane.f32.xlu0 %v2219
        %v2221 = vpop.xlane.xlu0 %2220
        %v2222 = vsel %vm1712, %v2165, -inf
        %2223 = vmax.xlane.f32.xlu0 %v2222
        %v2224 = vpop.xlane.xlu0 %2223
        %v2225 = vsel %vm1712, %v2211, -inf
        %2226 = vmax.xlane.f32.xlu0 %v2225
        %v2227 = vpop.xlane.xlu0 %2226
        %v2228 = vsub.f32 %v2073, %v2218
        %v2229 = vsub.f32 %v2119, %v2221
        %v2230 = vsub.f32 %v2165, %v2224
        %v2231 = vsub.f32 %v2211, %v2227
        %v2232 = vmul.f32 %v2228, 1.442695
        %v2233 = vpow.pop %v2232
        %v2234 = vmul.f32 %v2229, 1.442695
        %v2235 = vpow.pop %v2234
        %v2236 = vmul.f32 %v2230, 1.442695
        %v2237 = vpow.pop %v2236
        %v2238 = vmul.f32 %v2231, 1.442695
        %v2239 = vpow.pop %v2238
        %v2240 = vsel %vm1712, %v2233, 0.0
        %2241 = vadd.xlane.f32.xlu0 %v2240
        %v2242 = vpop.xlane.xlu0 %2241
        %v2243 = vsel %vm1712, %v2235, 0.0
        %2244 = vadd.xlane.f32.xlu0 %v2243
        %v2245 = vpop.xlane.xlu0 %2244
        %v2246 = vsel %vm1712, %v2237, 0.0
        %2247 = vadd.xlane.f32.xlu0 %v2246
        %v2248 = vpop.xlane.xlu0 %2247
        %v2249 = vsel %vm1712, %v2239, 0.0
        %2250 = vadd.xlane.f32.xlu0 %v2249
        %v2251 = vpop.xlane.xlu0 %2250
        %v2252 = vrcp.pop %v2242
        %v2253 = vrcp.pop %v2245
        %v2254 = vrcp.pop %v2248
        %v2255 = vrcp.pop %v2251
        %v2256 = vmul.f32 %v2233, %v2252
        %v2257 = vmul.f32 %v2235, %v2253
        %v2258 = vmul.f32 %v2237, %v2254
        %v2259 = vmul.f32 %v2239, %v2255
        %v2260 = vpack.c.bf16 %v2256, %v2256
        %v2261 = vpack.c.bf16 %v2257, %v2257
        %v2262 = vpack.c.bf16 %v2258, %v2258
        %v2263 = vpack.c.bf16 %v2259, %v2259
        %2264 = vrot.lane.b32.xlu0 %v1941, 96
        %v2265 = vpop.permute.xlu0 %2264
        %2266 = vrot.lane.b32.xlu0 %v1954, 96
        %v2267 = vpop.permute.xlu0 %2266
        %2268 = vrot.lane.b32.xlu0 %v1957, 96
        %v2269 = vpop.permute.xlu0 %2268
        %2270 = vrot.lane.b32.xlu0 %v1960, 96
        %v2271 = vpop.permute.xlu0 %2270
        %2276 = vxpose.xlu0.c.b16.start [1/8] %v2265, 128
        %2277 = vxpose.xlu0.c.b16.cont [2/8] 0, 128
        %2278 = vxpose.xlu0.c.b16.cont [3/8] 0, 128
        %2279 = vxpose.xlu0.c.b16.cont [4/8] 0, 128
        %2280 = vxpose.xlu0.c.b16.cont [5/8] 0, 128
        %2281 = vxpose.xlu0.c.b16.cont [6/8] 0, 128
        %2282 = vxpose.xlu0.c.b16.cont [7/8] 0, 128
        %2283 = vxpose.xlu0.c.b16.end [8/8] 0, 128
        %v2284 = vpop.trf.xlu0
        %v2285 = vpop.trf.xlu0
        %v2286 = vpop.trf.xlu0
        %v2287 = vpop.trf.xlu0
        %v2288 = vpop.trf.xlu0
        %v2289 = vpop.trf.xlu0
        %v2290 = vpop.trf.xlu0
        %v2291 = vpop.trf.xlu0
        %2292 = vxpose.xlu0.c.b16.start [1/8] %v2267, 128
        %2293 = vxpose.xlu0.c.b16.cont [2/8] 0, 128
        %2294 = vxpose.xlu0.c.b16.cont [3/8] 0, 128
        %2295 = vxpose.xlu0.c.b16.cont [4/8] 0, 128
        %2296 = vxpose.xlu0.c.b16.cont [5/8] 0, 128
        %2297 = vxpose.xlu0.c.b16.cont [6/8] 0, 128
        %2298 = vxpose.xlu0.c.b16.cont [7/8] 0, 128
        %2299 = vxpose.xlu0.c.b16.end [8/8] 0, 128
        %v2300 = vpop.trf.xlu0
        %v2301 = vpop.trf.xlu0
        %v2302 = vpop.trf.xlu0
        %v2303 = vpop.trf.xlu0
        %v2304 = vpop.trf.xlu0
        %v2305 = vpop.trf.xlu0
        %v2306 = vpop.trf.xlu0
        %v2307 = vpop.trf.xlu0
        %2308 = vxpose.xlu0.c.b16.start [1/8] %v2269, 128
        %2309 = vxpose.xlu0.c.b16.cont [2/8] 0, 128
        %2310 = vxpose.xlu0.c.b16.cont [3/8] 0, 128
        %2311 = vxpose.xlu0.c.b16.cont [4/8] 0, 128
        %2312 = vxpose.xlu0.c.b16.cont [5/8] 0, 128
        %2313 = vxpose.xlu0.c.b16.cont [6/8] 0, 128
        %2314 = vxpose.xlu0.c.b16.cont [7/8] 0, 128
        %2315 = vxpose.xlu0.c.b16.end [8/8] 0, 128
        %v2316 = vpop.trf.xlu0
        %v2317 = vpop.trf.xlu0
        %v2318 = vpop.trf.xlu0
        %v2319 = vpop.trf.xlu0
        %v2320 = vpop.trf.xlu0
        %v2321 = vpop.trf.xlu0
        %v2322 = vpop.trf.xlu0
        %v2323 = vpop.trf.xlu0
        %2324 = vxpose.xlu0.c.b16.start [1/8] %v2271, 128
        %2325 = vxpose.xlu0.c.b16.cont [2/8] 0, 128
        %2326 = vxpose.xlu0.c.b16.cont [3/8] 0, 128
        %2327 = vxpose.xlu0.c.b16.cont [4/8] 0, 128
        %2328 = vxpose.xlu0.c.b16.cont [5/8] 0, 128
        %2329 = vxpose.xlu0.c.b16.cont [6/8] 0, 128
        %2330 = vxpose.xlu0.c.b16.cont [7/8] 0, 128
        %2331 = vxpose.xlu0.c.b16.end [8/8] 0, 128
        %v2332 = vpop.trf.xlu0
        %v2333 = vpop.trf.xlu0
        %v2334 = vpop.trf.xlu0
        %v2335 = vpop.trf.xlu0
        %v2336 = vpop.trf.xlu0
        %v2337 = vpop.trf.xlu0
        %v2338 = vpop.trf.xlu0
        %v2339 = vpop.trf.xlu0
        %v2341 = vsel %vm1712, %v2284, 0
        %v2344 = vsel %vm1712, %v2260, 0
        %2346 = vmatprep.subr.bf16.mxu0 0
        %2347 = vmatpush1.bf16.xpose.msra.mxu0 0
        %2348 = vmatprep.subr.bf16.mxu0 0
        %2349 = vmatpush1.bf16.xpose.msra.mxu0 0
        %2350 = vmatprep.subr.bf16.mxu0 0
        %2351 = vmatpush1.bf16.xpose.msra.mxu0 0
        %2352 = vmatprep.subr.bf16.mxu0 0
        %2353 = vmatpush1.bf16.xpose.msra.mxu0 0
        %2354 = vmatprep.subr.bf16.mxu0 0
        %2355 = vmatpush1.bf16.xpose.msra.mxu0 0
        %2356 = vmatprep.subr.bf16.mxu0 0
        %2357 = vmatpush1.bf16.xpose.msra.mxu0 0
        %2358 = vmatprep.subr.bf16.mxu0 0
        %2359 = vmatpush1.bf16.xpose.msra.mxu0 0
        %2360 = vmatprep.subr.bf16.mxu0 0
        %2361 = vmatpush1.bf16.xpose.msra.mxu0 %v2344
        %2362 = vmatprep.subr.bf16.mxu0 0
        %2363 = vmatpush2.bf16.xpose.msra.mxu0 0
        %2364 = vmatprep.subr.bf16.mxu0 0
        %2365 = vmatpush2.bf16.xpose.msra.mxu0 0
        %2366 = vmatprep.subr.bf16.mxu0 0
        %2367 = vmatpush2.bf16.xpose.msra.mxu0 0
        %2368 = vmatprep.subr.bf16.mxu0 0
        %2369 = vmatpush2.bf16.xpose.msra.mxu0 0
        %2370 = vmatprep.subr.bf16.mxu0 0
        %2371 = vmatpush2.bf16.xpose.msra.mxu0 0
        %2372 = vmatprep.subr.bf16.mxu0 0
        %2373 = vmatpush2.bf16.xpose.msra.mxu0 0
        %2374 = vmatprep.subr.bf16.mxu0 0
        %2375 = vmatpush2.bf16.xpose.msra.mxu0 0
        %2376 = vmatprep.subr.bf16.mxu0 0
        %2377 = vmatpush2.bf16.xpose.msra.mxu0 0
        %2378 = vmatprep.mubr.bf16.mxu0 0
        %2379 = vmatmul.mubr.bf16.gmra.mxu0 %v2341
        %v2380 = vpop.f32.mrf.mxu0
        %v2381 = vadd.f32 0.0, %v2380
        %v2382 = vpop.f32.mrf.mxu0
        %v2383 = vpop.f32.mrf.mxu0
        %v2384 = vpop.f32.mrf.mxu0
        %2385 = vdwg.mxu0
        %v2387 = vsel %vm1712, %v2300, 0
        %v2390 = vsel %vm1712, %v2261, 0
        %2392 = vmatprep.subr.bf16.mxu0 0
        %2393 = vmatpush1.bf16.xpose.msra.mxu0 0
        %2394 = vmatprep.subr.bf16.mxu0 0
        %2395 = vmatpush1.bf16.xpose.msra.mxu0 0
        %2396 = vmatprep.subr.bf16.mxu0 0
        %2397 = vmatpush1.bf16.xpose.msra.mxu0 0
        %2398 = vmatprep.subr.bf16.mxu0 0
        %2399 = vmatpush1.bf16.xpose.msra.mxu0 0
        %2400 = vmatprep.subr.bf16.mxu0 0
        %2401 = vmatpush1.bf16.xpose.msra.mxu0 0
        %2402 = vmatprep.subr.bf16.mxu0 0
        %2403 = vmatpush1.bf16.xpose.msra.mxu0 0
        %2404 = vmatprep.subr.bf16.mxu0 0
        %2405 = vmatpush1.bf16.xpose.msra.mxu0 0
        %2406 = vmatprep.subr.bf16.mxu0 0
        %2407 = vmatpush1.bf16.xpose.msra.mxu0 %v2390
        %2408 = vmatprep.subr.bf16.mxu0 0
        %2409 = vmatpush2.bf16.xpose.msra.mxu0 0
        %2410 = vmatprep.subr.bf16.mxu0 0
        %2411 = vmatpush2.bf16.xpose.msra.mxu0 0
        %2412 = vmatprep.subr.bf16.mxu0 0
        %2413 = vmatpush2.bf16.xpose.msra.mxu0 0
        %2414 = vmatprep.subr.bf16.mxu0 0
        %2415 = vmatpush2.bf16.xpose.msra.mxu0 0
        %2416 = vmatprep.subr.bf16.mxu0 0
        %2417 = vmatpush2.bf16.xpose.msra.mxu0 0
        %2418 = vmatprep.subr.bf16.mxu0 0
        %2419 = vmatpush2.bf16.xpose.msra.mxu0 0
        %2420 = vmatprep.subr.bf16.mxu0 0
        %2421 = vmatpush2.bf16.xpose.msra.mxu0 0
        %2422 = vmatprep.subr.bf16.mxu0 0
        %2423 = vmatpush2.bf16.xpose.msra.mxu0 0
        %2424 = vmatprep.mubr.bf16.mxu0 0
        %2425 = vmatmul.mubr.bf16.gmra.mxu0 %v2387
        %v2426 = vpop.f32.mrf.mxu0
        %v2427 = vadd.f32 0.0, %v2426
        %v2428 = vpop.f32.mrf.mxu0
        %v2429 = vpop.f32.mrf.mxu0
        %v2430 = vpop.f32.mrf.mxu0
        %2431 = vdwg.mxu0
        %v2433 = vsel %vm1712, %v2316, 0
        %v2436 = vsel %vm1712, %v2262, 0
        %2438 = vmatprep.subr.bf16.mxu0 0
        %2439 = vmatpush1.bf16.xpose.msra.mxu0 0
        %2440 = vmatprep.subr.bf16.mxu0 0
        %2441 = vmatpush1.bf16.xpose.msra.mxu0 0
        %2442 = vmatprep.subr.bf16.mxu0 0
        %2443 = vmatpush1.bf16.xpose.msra.mxu0 0
        %2444 = vmatprep.subr.bf16.mxu0 0
        %2445 = vmatpush1.bf16.xpose.msra.mxu0 0
        %2446 = vmatprep.subr.bf16.mxu0 0
        %2447 = vmatpush1.bf16.xpose.msra.mxu0 0
        %2448 = vmatprep.subr.bf16.mxu0 0
        %2449 = vmatpush1.bf16.xpose.msra.mxu0 0
        %2450 = vmatprep.subr.bf16.mxu0 0
        %2451 = vmatpush1.bf16.xpose.msra.mxu0 0
        %2452 = vmatprep.subr.bf16.mxu0 0
        %2453 = vmatpush1.bf16.xpose.msra.mxu0 %v2436
        %2454 = vmatprep.subr.bf16.mxu0 0
        %2455 = vmatpush2.bf16.xpose.msra.mxu0 0
        %2456 = vmatprep.subr.bf16.mxu0 0
        %2457 = vmatpush2.bf16.xpose.msra.mxu0 0
        %2458 = vmatprep.subr.bf16.mxu0 0
        %2459 = vmatpush2.bf16.xpose.msra.mxu0 0
        %2460 = vmatprep.subr.bf16.mxu0 0
        %2461 = vmatpush2.bf16.xpose.msra.mxu0 0
        %2462 = vmatprep.subr.bf16.mxu0 0
        %2463 = vmatpush2.bf16.xpose.msra.mxu0 0
        %2464 = vmatprep.subr.bf16.mxu0 0
        %2465 = vmatpush2.bf16.xpose.msra.mxu0 0
        %2466 = vmatprep.subr.bf16.mxu0 0
        %2467 = vmatpush2.bf16.xpose.msra.mxu0 0
        %2468 = vmatprep.subr.bf16.mxu0 0
        %2469 = vmatpush2.bf16.xpose.msra.mxu0 0
        %2470 = vmatprep.mubr.bf16.mxu0 0
        %2471 = vmatmul.mubr.bf16.gmra.mxu0 %v2433
        %v2472 = vpop.f32.mrf.mxu0
        %v2473 = vadd.f32 0.0, %v2472
        %v2474 = vpop.f32.mrf.mxu0
        %v2475 = vpop.f32.mrf.mxu0
        %v2476 = vpop.f32.mrf.mxu0
        %2477 = vdwg.mxu0
        %v2479 = vsel %vm1712, %v2332, 0
        %v2482 = vsel %vm1712, %v2263, 0
        %2484 = vmatprep.subr.bf16.mxu0 0
        %2485 = vmatpush1.bf16.xpose.msra.mxu0 0
        %2486 = vmatprep.subr.bf16.mxu0 0
        %2487 = vmatpush1.bf16.xpose.msra.mxu0 0
        %2488 = vmatprep.subr.bf16.mxu0 0
        %2489 = vmatpush1.bf16.xpose.msra.mxu0 0
        %2490 = vmatprep.subr.bf16.mxu0 0
        %2491 = vmatpush1.bf16.xpose.msra.mxu0 0
        %2492 = vmatprep.subr.bf16.mxu0 0
        %2493 = vmatpush1.bf16.xpose.msra.mxu0 0
        %2494 = vmatprep.subr.bf16.mxu0 0
        %2495 = vmatpush1.bf16.xpose.msra.mxu0 0
        %2496 = vmatprep.subr.bf16.mxu0 0
        %2497 = vmatpush1.bf16.xpose.msra.mxu0 0
        %2498 = vmatprep.subr.bf16.mxu0 0
        %2499 = vmatpush1.bf16.xpose.msra.mxu0 %v2482
        %2500 = vmatprep.subr.bf16.mxu0 0
        %2501 = vmatpush2.bf16.xpose.msra.mxu0 0
        %2502 = vmatprep.subr.bf16.mxu0 0
        %2503 = vmatpush2.bf16.xpose.msra.mxu0 0
        %2504 = vmatprep.subr.bf16.mxu0 0
        %2505 = vmatpush2.bf16.xpose.msra.mxu0 0
        %2506 = vmatprep.subr.bf16.mxu0 0
        %2507 = vmatpush2.bf16.xpose.msra.mxu0 0
        %2508 = vmatprep.subr.bf16.mxu0 0
        %2509 = vmatpush2.bf16.xpose.msra.mxu0 0
        %2510 = vmatprep.subr.bf16.mxu0 0
        %2511 = vmatpush2.bf16.xpose.msra.mxu0 0
        %2512 = vmatprep.subr.bf16.mxu0 0
        %2513 = vmatpush2.bf16.xpose.msra.mxu0 0
        %2514 = vmatprep.subr.bf16.mxu0 0
        %2515 = vmatpush2.bf16.xpose.msra.mxu0 0
        %2516 = vmatprep.mubr.bf16.mxu0 0
        %2517 = vmatmul.mubr.bf16.gmra.mxu0 %v2479
        %v2518 = vpop.f32.mrf.mxu0
        %v2519 = vadd.f32 0.0, %v2518
        %v2520 = vpop.f32.mrf.mxu0
        %v2521 = vpop.f32.mrf.mxu0
        %v2522 = vpop.f32.mrf.mxu0
        %2523 = vdwg.mxu0
        %2524 = vxpose.xlu0.b32.start [1/16] %v2381, 128
        %2525 = vxpose.xlu0.b32.cont [2/16] 0.0, 128
        %2526 = vxpose.xlu0.b32.cont [3/16] 0.0, 128
        %2527 = vxpose.xlu0.b32.cont [4/16] 0.0, 128
        %2528 = vxpose.xlu0.b32.cont [5/16] 0.0, 128
        %2529 = vxpose.xlu0.b32.cont [6/16] 0.0, 128
        %2530 = vxpose.xlu0.b32.cont [7/16] 0.0, 128
        %2531 = vxpose.xlu0.b32.cont [8/16] 0.0, 128
        %2532 = vxpose.xlu0.b32.cont [9/16] 0.0, 128
        %2533 = vxpose.xlu0.b32.cont [10/16] 0.0, 128
        %2534 = vxpose.xlu0.b32.cont [11/16] 0.0, 128
        %2535 = vxpose.xlu0.b32.cont [12/16] 0.0, 128
        %2536 = vxpose.xlu0.b32.cont [13/16] 0.0, 128
        %2537 = vxpose.xlu0.b32.cont [14/16] 0.0, 128
        %2538 = vxpose.xlu0.b32.cont [15/16] 0.0, 128
        %2539 = vxpose.xlu0.b32.end [16/16] 0.0, 128
        %v2540 = vpop.trf.xlu0
        %v2541 = vpop.trf.xlu0
        %v2542 = vpop.trf.xlu0
        %v2543 = vpop.trf.xlu0
        %v2544 = vpop.trf.xlu0
        %v2545 = vpop.trf.xlu0
        %v2546 = vpop.trf.xlu0
        %v2547 = vpop.trf.xlu0
        %v2548 = vpop.trf.xlu0
        %v2549 = vpop.trf.xlu0
        %v2550 = vpop.trf.xlu0
        %v2551 = vpop.trf.xlu0
        %v2552 = vpop.trf.xlu0
        %v2553 = vpop.trf.xlu0
        %v2554 = vpop.trf.xlu0
        %v2555 = vpop.trf.xlu0
        %2556 = vxpose.xlu0.b32.start [1/16] %v2427, 128
        %2557 = vxpose.xlu0.b32.cont [2/16] 0.0, 128
        %2558 = vxpose.xlu0.b32.cont [3/16] 0.0, 128
        %2559 = vxpose.xlu0.b32.cont [4/16] 0.0, 128
        %2560 = vxpose.xlu0.b32.cont [5/16] 0.0, 128
        %2561 = vxpose.xlu0.b32.cont [6/16] 0.0, 128
        %2562 = vxpose.xlu0.b32.cont [7/16] 0.0, 128
        %2563 = vxpose.xlu0.b32.cont [8/16] 0.0, 128
        %2564 = vxpose.xlu0.b32.cont [9/16] 0.0, 128
        %2565 = vxpose.xlu0.b32.cont [10/16] 0.0, 128
        %2566 = vxpose.xlu0.b32.cont [11/16] 0.0, 128
        %2567 = vxpose.xlu0.b32.cont [12/16] 0.0, 128
        %2568 = vxpose.xlu0.b32.cont [13/16] 0.0, 128
        %2569 = vxpose.xlu0.b32.cont [14/16] 0.0, 128
        %2570 = vxpose.xlu0.b32.cont [15/16] 0.0, 128
        %2571 = vxpose.xlu0.b32.end [16/16] 0.0, 128
        %v2572 = vpop.trf.xlu0
        %v2573 = vpop.trf.xlu0
        %v2574 = vpop.trf.xlu0
        %v2575 = vpop.trf.xlu0
        %v2576 = vpop.trf.xlu0
        %v2577 = vpop.trf.xlu0
        %v2578 = vpop.trf.xlu0
        %v2579 = vpop.trf.xlu0
        %v2580 = vpop.trf.xlu0
        %v2581 = vpop.trf.xlu0
        %v2582 = vpop.trf.xlu0
        %v2583 = vpop.trf.xlu0
        %v2584 = vpop.trf.xlu0
        %v2585 = vpop.trf.xlu0
        %v2586 = vpop.trf.xlu0
        %v2587 = vpop.trf.xlu0
        %2588 = vxpose.xlu0.b32.start [1/16] %v2473, 128
        %2589 = vxpose.xlu0.b32.cont [2/16] 0.0, 128
        %2590 = vxpose.xlu0.b32.cont [3/16] 0.0, 128
        %2591 = vxpose.xlu0.b32.cont [4/16] 0.0, 128
        %2592 = vxpose.xlu0.b32.cont [5/16] 0.0, 128
        %2593 = vxpose.xlu0.b32.cont [6/16] 0.0, 128
        %2594 = vxpose.xlu0.b32.cont [7/16] 0.0, 128
        %2595 = vxpose.xlu0.b32.cont [8/16] 0.0, 128
        %2596 = vxpose.xlu0.b32.cont [9/16] 0.0, 128
        %2597 = vxpose.xlu0.b32.cont [10/16] 0.0, 128
        %2598 = vxpose.xlu0.b32.cont [11/16] 0.0, 128
        %2599 = vxpose.xlu0.b32.cont [12/16] 0.0, 128
        %2600 = vxpose.xlu0.b32.cont [13/16] 0.0, 128
        %2601 = vxpose.xlu0.b32.cont [14/16] 0.0, 128
        %2602 = vxpose.xlu0.b32.cont [15/16] 0.0, 128
        %2603 = vxpose.xlu0.b32.end [16/16] 0.0, 128
        %v2604 = vpop.trf.xlu0
        %v2605 = vpop.trf.xlu0
        %v2606 = vpop.trf.xlu0
        %v2607 = vpop.trf.xlu0
        %v2608 = vpop.trf.xlu0
        %v2609 = vpop.trf.xlu0
        %v2610 = vpop.trf.xlu0
        %v2611 = vpop.trf.xlu0
        %v2612 = vpop.trf.xlu0
        %v2613 = vpop.trf.xlu0
        %v2614 = vpop.trf.xlu0
        %v2615 = vpop.trf.xlu0
        %v2616 = vpop.trf.xlu0
        %v2617 = vpop.trf.xlu0
        %v2618 = vpop.trf.xlu0
        %v2619 = vpop.trf.xlu0
        %2620 = vxpose.xlu0.b32.start [1/16] %v2519, 128
        %2621 = vxpose.xlu0.b32.cont [2/16] 0.0, 128
        %2622 = vxpose.xlu0.b32.cont [3/16] 0.0, 128
        %2623 = vxpose.xlu0.b32.cont [4/16] 0.0, 128
        %2624 = vxpose.xlu0.b32.cont [5/16] 0.0, 128
        %2625 = vxpose.xlu0.b32.cont [6/16] 0.0, 128
        %2626 = vxpose.xlu0.b32.cont [7/16] 0.0, 128
        %2627 = vxpose.xlu0.b32.cont [8/16] 0.0, 128
        %2628 = vxpose.xlu0.b32.cont [9/16] 0.0, 128
        %2629 = vxpose.xlu0.b32.cont [10/16] 0.0, 128
        %2630 = vxpose.xlu0.b32.cont [11/16] 0.0, 128
        %2631 = vxpose.xlu0.b32.cont [12/16] 0.0, 128
        %2632 = vxpose.xlu0.b32.cont [13/16] 0.0, 128
        %2633 = vxpose.xlu0.b32.cont [14/16] 0.0, 128
        %2634 = vxpose.xlu0.b32.cont [15/16] 0.0, 128
        %2635 = vxpose.xlu0.b32.end [16/16] 0.0, 128
        %v2636 = vpop.trf.xlu0
        %v2637 = vpop.trf.xlu0
        %v2638 = vpop.trf.xlu0
        %v2639 = vpop.trf.xlu0
        %v2640 = vpop.trf.xlu0
        %v2641 = vpop.trf.xlu0
        %v2642 = vpop.trf.xlu0
        %v2643 = vpop.trf.xlu0
        %v2644 = vpop.trf.xlu0
        %v2645 = vpop.trf.xlu0
        %v2646 = vpop.trf.xlu0
        %v2647 = vpop.trf.xlu0
        %v2648 = vpop.trf.xlu0
        %v2649 = vpop.trf.xlu0
        %v2650 = vpop.trf.xlu0
        %v2651 = vpop.trf.xlu0
        %v2652 = vcombine.low %v2540, %v2604
        %v2653 = vcombine.high %v2540, %v2604
        %v2655 = vunpack.c.l.s4 1983009808
        %v2656 = vunpack.c.0.s8 %v2655
        %v2657 = vlaneseq
        %v2658 = vshrl.u32 %v2657, 7
        %v2659 = vsub.s32 %v2656, %v2658
        %v2660 = vrot.slane %v2652, %v2659
        %v2662 = vunpack.c.l.s4 1983009808
        %v2663 = vunpack.c.0.s8 %v2662
        %v2664 = vlaneseq
        %v2665 = vshrl.u32 %v2664, 7
        %v2666 = vsub.s32 %v2663, %v2665
        %v2667 = vrot.slane %v2653, %v2666
        %v2668 = vcombine.low %v2572, %v2636
        %v2669 = vcombine.high %v2572, %v2636
        %v2671 = vunpack.c.l.s4 1983009808
        %v2672 = vunpack.c.0.s8 %v2671
        %v2673 = vlaneseq
        %v2674 = vshrl.u32 %v2673, 7
        %v2675 = vsub.s32 %v2672, %v2674
        %v2676 = vrot.slane %v2668, %v2675
        %v2678 = vunpack.c.l.s4 1983009808
        %v2679 = vunpack.c.0.s8 %v2678
        %v2680 = vlaneseq
        %v2681 = vshrl.u32 %v2680, 7
        %v2682 = vsub.s32 %v2679, %v2681
        %v2683 = vrot.slane %v2669, %v2682
        %v2684 = vcombine.low %v2660, %v2676
        %v2685 = vcombine.high %v2660, %v2676
        %v2687 = vunpack.c.l.s4 1934713408
        %v2688 = vunpack.c.0.s8 %v2687
        %v2689 = vlaneseq
        %v2690 = vshrl.u32 %v2689, 7
        %v2691 = vsub.s32 %v2688, %v2690
        %v2692 = vrot.slane %v2684, %v2691
        %v2694 = vunpack.c.l.s4 1934713408
        %v2695 = vunpack.c.0.s8 %v2694
        %v2696 = vlaneseq
        %v2697 = vshrl.u32 %v2696, 7
        %v2698 = vsub.s32 %v2695, %v2697
        %v2699 = vrot.slane %v2685, %v2698
        %v2700 = vcombine.low %v2667, %v2683
        %v2701 = vcombine.high %v2667, %v2683
        %v2703 = vunpack.c.l.s4 1934713408
        %v2704 = vunpack.c.0.s8 %v2703
        %v2705 = vlaneseq
        %v2706 = vshrl.u32 %v2705, 7
        %v2707 = vsub.s32 %v2704, %v2706
        %v2708 = vrot.slane %v2700, %v2707
        %v2710 = vunpack.c.l.s4 1934713408
        %v2711 = vunpack.c.0.s8 %v2710
        %v2712 = vlaneseq
        %v2713 = vshrl.u32 %v2712, 7
        %v2714 = vsub.s32 %v2711, %v2713
        %v2715 = vrot.slane %v2701, %v2714
        %v2716 = vcombine.high %v2692, 0.0
        %v2717 = vcombine.high %v2699, 0.0
        %v2718 = vcombine.high %v2708, 0.0
        %v2719 = vcombine.high %v2715, 0.0
        %v2720 = vcombine.low %v2692, %v2699
        %v2722 = vunpack.c.l.s4 1983009808
        %v2723 = vunpack.c.0.s8 %v2722
        %v2724 = vlaneseq
        %v2725 = vshrl.u32 %v2724, 7
        %v2726 = vsub.s32 %v2723, %v2725
        %v2727 = vrot.slane %v2720, %v2726
        %v2728 = vcombine.low %v2716, %v2717
        %v2730 = vunpack.c.l.s4 1983009808
        %v2731 = vunpack.c.0.s8 %v2730
        %v2732 = vlaneseq
        %v2733 = vshrl.u32 %v2732, 7
        %v2734 = vsub.s32 %v2731, %v2733
        %v2735 = vrot.slane %v2728, %v2734
        %v2736 = vcombine.low %v2708, %v2715
        %v2738 = vunpack.c.l.s4 1983009808
        %v2739 = vunpack.c.0.s8 %v2738
        %v2740 = vlaneseq
        %v2741 = vshrl.u32 %v2740, 7
        %v2742 = vsub.s32 %v2739, %v2741
        %v2743 = vrot.slane %v2736, %v2742
        %v2744 = vcombine.low %v2718, %v2719
        %v2746 = vunpack.c.l.s4 1983009808
        %v2747 = vunpack.c.0.s8 %v2746
        %v2748 = vlaneseq
        %v2749 = vshrl.u32 %v2748, 7
        %v2750 = vsub.s32 %v2747, %v2749
        %v2751 = vrot.slane %v2744, %v2750
        %v2752 = vcombine.low %v2727, %v2735
        %v2753 = vcombine.high %v2727, %v2735
        %v2755 = vunpack.c.l.s4 1934713408
        %v2756 = vunpack.c.0.s8 %v2755
        %v2757 = vlaneseq
        %v2758 = vshrl.u32 %v2757, 7
        %v2759 = vsub.s32 %v2756, %v2758
        %v2760 = vrot.slane %v2752, %v2759
        %v2762 = vunpack.c.l.s4 1934713408
        %v2763 = vunpack.c.0.s8 %v2762
        %v2764 = vlaneseq
        %v2765 = vshrl.u32 %v2764, 7
        %v2766 = vsub.s32 %v2763, %v2765
        %v2767 = vrot.slane %v2753, %v2766
        %v2768 = vcombine.low %v2743, %v2751
        %v2769 = vcombine.high %v2743, %v2751
        %v2771 = vunpack.c.l.s4 1934713408
        %v2772 = vunpack.c.0.s8 %v2771
        %v2773 = vlaneseq
        %v2774 = vshrl.u32 %v2773, 7
        %v2775 = vsub.s32 %v2772, %v2774
        %v2776 = vrot.slane %v2768, %v2775
        %v2778 = vunpack.c.l.s4 1934713408
        %v2779 = vunpack.c.0.s8 %v2778
        %v2780 = vlaneseq
        %v2781 = vshrl.u32 %v2780, 7
        %v2782 = vsub.s32 %v2779, %v2781
        %v2783 = vrot.slane %v2769, %v2782
        %v2784 = vcombine.low %v2760, %v2776
        %v2785 = vcombine.high %v2760, %v2776
        %v2786 = vcombine.low %v2767, %v2783
        %v2787 = vcombine.high %v2767, %v2783
        %2789 = vrot.lane.b32.xlu0 %v2785, 8
        %v2790 = vpop.permute.xlu0 %2789
        %2793 = vrot.lane.b32.xlu0 %v2786, 16
        %v2794 = vpop.permute.xlu0 %2793
        %2797 = vrot.lane.b32.xlu0 %v2787, 24
        %v2798 = vpop.permute.xlu0 %2797
        %v2800 = vsel %vm941, %v2784, %v2790
        %v2801 = vsel %vm1712, %v2800, %v2794
        %v2802 = vsel %vm1714, %v2801, %v2798
        %v2803 = vpack.c.bf16 %v2802, %v2802
        %v2804 = vld [vmem:[#allocation8] sm:$0xf]
        %v2805 = vld [vmem:[#allocation8 + $0x4] sm:$0xf]
        %v2806 = vld [vmem:[#allocation8 + $0x8] sm:$0xf]
        %v2807 = vld [vmem:[#allocation8 + $0xc] sm:$0xf]
        %v2808 = vld [vmem:[%s12] sm:$0x1]
        %v2810 = vlaneseq
        %v2811 = vshrl.u32 %v2810, 7
        %v2812 = vsub.s32 0, %v2811
        %v2813 = vrot.slane %v2808, %v2812
        %v2819 = vunpack.c.l.b16 %v2804
        %v2820 = vunpack.c.l.b16 %v2805
        %v2821 = vunpack.c.l.b16 %v2806
        %v2822 = vunpack.c.l.b16 %v2807
        %v2823 = vpack.c.b16 %v2820, %v2819
        %v2824 = vpack.c.b16 %v2822, %v2821
        %v2828 = vsel %vm803, %v2803, 0
        %2830 = vmatprep.subr.bf16.mxu0 0
        %2831 = vmatpush1.bf16.msra.mxu0 0
        %2832 = vmatprep.subr.bf16.mxu0 0
        %2833 = vmatpush1.bf16.msra.mxu0 0
        %2834 = vmatprep.subr.bf16.mxu0 0
        %2835 = vmatpush1.bf16.msra.mxu0 0
        %2836 = vmatprep.subr.bf16.mxu0 0
        %2837 = vmatpush1.bf16.msra.mxu0 0
        %2838 = vmatprep.subr.bf16.mxu0 0
        %2839 = vmatpush1.bf16.msra.mxu0 0
        %2840 = vmatprep.subr.bf16.mxu0 0
        %2841 = vmatpush1.bf16.msra.mxu0 0
        %2842 = vmatprep.subr.bf16.mxu0 0
        %2843 = vmatpush1.bf16.msra.mxu0 %v2824
        %2844 = vmatprep.subr.bf16.mxu0 0
        %2845 = vmatpush1.bf16.msra.mxu0 %v2823
        %2846 = vmatprep.subr.bf16.mxu0 0
        %2847 = vmatpush2.bf16.msra.mxu0 0
        %2848 = vmatprep.subr.bf16.mxu0 0
        %2849 = vmatpush2.bf16.msra.mxu0 0
        %2850 = vmatprep.subr.bf16.mxu0 0
        %2851 = vmatpush2.bf16.msra.mxu0 0
        %2852 = vmatprep.subr.bf16.mxu0 0
        %2853 = vmatpush2.bf16.msra.mxu0 0
        %2854 = vmatprep.subr.bf16.mxu0 0
        %2855 = vmatpush2.bf16.msra.mxu0 0
        %2856 = vmatprep.subr.bf16.mxu0 0
        %2857 = vmatpush2.bf16.msra.mxu0 0
        %2858 = vmatprep.subr.bf16.mxu0 0
        %2859 = vmatpush2.bf16.msra.mxu0 0
        %2860 = vmatprep.subr.bf16.mxu0 0
        %2861 = vmatpush2.bf16.msra.mxu0 0
        %2862 = vmatprep.mubr.bf16.mxu0 0
        %2863 = vmatmul.mubr.bf16.gmra.mxu0 %v2828
        %v2864 = vpop.f32.mrf.mxu0
        %v2865 = vadd.f32 %v2813, %v2864
        %v2866 = vpop.f32.mrf.mxu0
        %v2867 = vpop.f32.mrf.mxu0
        %v2868 = vpop.f32.mrf.mxu0
        %2869 = vdwg.mxu0
        %v2870 = vunpack.c.l.bf16 %v1815
        %v2871 = vadd.f32 %v2865, %v2870
        %v2872 = vsel %vm803, %v2871, 0.0
        %2873 = vadd.xlane.f32.xlu0 %v2872
        %v2874 = vpop.xlane.xlu0 %2873
        %v2875 = vmul.f32 %v2874, %v1788
        %v2876 = vsub.f32 %v2871, %v2875
        %v2877 = vmul.f32 %v2876, %v2876
        %v2878 = vsel %vm803, %v2877, 0.0
        %2879 = vadd.xlane.f32.xlu0 %v2878
        %v2880 = vpop.xlane.xlu0 %2879
        %v2881 = vmul.f32 %v2880, %v1788
        %v2882 = vadd.f32 %v2881, 1e-06
        %v2883 = vrsqrt.pop %v2882
        %v2884 = vmul.f32 %v2876, %v2883
        %v2885 = vld [vmem:[%s13] sm:$0x1]
        %v2887 = vlaneseq
        %v2888 = vshrl.u32 %v2887, 7
        %v2889 = vsub.s32 0, %v2888
        %v2890 = vrot.slane %v2885, %v2889
        %v2892 = vmul.f32 %v2884, %v2890
        %v2893 = vld [vmem:[%s14] sm:$0x1]
        %v2895 = vlaneseq
        %v2896 = vshrl.u32 %v2895, 7
        %v2897 = vsub.s32 0, %v2896
        %v2898 = vrot.slane %v2893, %v2897
        %v2900 = vadd.f32 %v2892, %v2898
        %v2901 = vpack.c.bf16 %v2900, %v2900
        %v2902 = vld [vmem:[#allocation10] sm:$0xf]
        %v2903 = vld [vmem:[#allocation10 + $0x4] sm:$0xf]
        %v2904 = vld [vmem:[#allocation10 + $0x8] sm:$0xf]
        %v2905 = vld [vmem:[#allocation10 + $0xc] sm:$0xf]
        %v2906 = vld [vmem:[%s16] sm:$0x1]
        %v2908 = vlaneseq
        %v2909 = vshrl.u32 %v2908, 7
        %v2910 = vsub.s32 0, %v2909
        %v2911 = vrot.slane %v2906, %v2910
        %v2917 = vunpack.c.l.b16 %v2902
        %v2918 = vunpack.c.l.b16 %v2903
        %v2919 = vunpack.c.l.b16 %v2904
        %v2920 = vunpack.c.l.b16 %v2905
        %v2921 = vpack.c.b16 %v2918, %v2917
        %v2922 = vpack.c.b16 %v2920, %v2919
        %v2926 = vsel %vm803, %v2901, 0
        %2928 = vmatprep.subr.bf16.mxu0 0
        %2929 = vmatpush1.bf16.msra.mxu0 0
        %2930 = vmatprep.subr.bf16.mxu0 0
        %2931 = vmatpush1.bf16.msra.mxu0 0
        %2932 = vmatprep.subr.bf16.mxu0 0
        %2933 = vmatpush1.bf16.msra.mxu0 0
        %2934 = vmatprep.subr.bf16.mxu0 0
        %2935 = vmatpush1.bf16.msra.mxu0 0
        %2936 = vmatprep.subr.bf16.mxu0 0
        %2937 = vmatpush1.bf16.msra.mxu0 0
        %2938 = vmatprep.subr.bf16.mxu0 0
        %2939 = vmatpush1.bf16.msra.mxu0 0
        %2940 = vmatprep.subr.bf16.mxu0 0
        %2941 = vmatpush1.bf16.msra.mxu0 %v2922
        %2942 = vmatprep.subr.bf16.mxu0 0
        %2943 = vmatpush1.bf16.msra.mxu0 %v2921
        %2944 = vmatprep.subr.bf16.mxu0 0
        %2945 = vmatpush2.bf16.msra.mxu0 0
        %2946 = vmatprep.subr.bf16.mxu0 0
        %2947 = vmatpush2.bf16.msra.mxu0 0
        %2948 = vmatprep.subr.bf16.mxu0 0
        %2949 = vmatpush2.bf16.msra.mxu0 0
        %2950 = vmatprep.subr.bf16.mxu0 0
        %2951 = vmatpush2.bf16.msra.mxu0 0
        %2952 = vmatprep.subr.bf16.mxu0 0
        %2953 = vmatpush2.bf16.msra.mxu0 0
        %2954 = vmatprep.subr.bf16.mxu0 0
        %2955 = vmatpush2.bf16.msra.mxu0 0
        %2956 = vmatprep.subr.bf16.mxu0 0
        %2957 = vmatpush2.bf16.msra.mxu0 0
        %2958 = vmatprep.subr.bf16.mxu0 0
        %2959 = vmatpush2.bf16.msra.mxu0 0
        %2960 = vmatprep.mubr.bf16.mxu0 0
        %2961 = vmatmul.mubr.bf16.gmra.mxu0 %v2926
        %v2962 = vpop.f32.mrf.mxu0
        %v2963 = vadd.f32 %v2911, %v2962
        %v2964 = vpop.f32.mrf.mxu0
        %v2965 = vpop.f32.mrf.mxu0
        %v2966 = vpop.f32.mrf.mxu0
        %2967 = vdwg.mxu0
        %v2968 = vmax.f32 %v2963, 0.0
        %v2969 = vpack.c.bf16 %v2968, %v2968
        %v2970 = vld [vmem:[%s17] sm:$0xf]
        %v2971 = vld [vmem:[%s17 + $0x4] sm:$0xf]
        %v2972 = vld [vmem:[%s17 + $0x8] sm:$0xf]
        %v2973 = vld [vmem:[%s17 + $0xc] sm:$0xf]
        %v2974 = vld [vmem:[%s17 + $0x10] sm:$0xf]
        %v2975 = vld [vmem:[%s17 + $0x14] sm:$0xf]
        %v2976 = vld [vmem:[%s17 + $0x18] sm:$0xf]
        %v2977 = vld [vmem:[%s17 + $0x1c] sm:$0xf]
        %v2978 = vld [vmem:[%s18] sm:$0x1]
        %v2980 = vlaneseq
        %v2981 = vshrl.u32 %v2980, 7
        %v2982 = vsub.s32 0, %v2981
        %v2983 = vrot.slane %v2978, %v2982
        %v2993 = vunpack.c.l.b16 %v2970
        %v2994 = vunpack.c.l.b16 %v2971
        %v2995 = vunpack.c.l.b16 %v2972
        %v2996 = vunpack.c.l.b16 %v2973
        %v2997 = vunpack.c.l.b16 %v2974
        %v2998 = vunpack.c.l.b16 %v2975
        %v2999 = vunpack.c.l.b16 %v2976
        %v3000 = vunpack.c.l.b16 %v2977
        %v3001 = vpack.c.b16 %v2994, %v2993
        %v3002 = vpack.c.b16 %v2996, %v2995
        %v3003 = vpack.c.b16 %v2998, %v2997
        %v3004 = vpack.c.b16 %v3000, %v2999
        %vm3009 = vcmask 523264
        %v3011 = vsel %vm3009, %v2969, 0
        %3013 = vmatprep.subr.bf16.mxu0 0
        %3014 = vmatpush1.bf16.msra.mxu0 0
        %3015 = vmatprep.subr.bf16.mxu0 0
        %3016 = vmatpush1.bf16.msra.mxu0 0
        %3017 = vmatprep.subr.bf16.mxu0 0
        %3018 = vmatpush1.bf16.msra.mxu0 0
        %3019 = vmatprep.subr.bf16.mxu0 0
        %3020 = vmatpush1.bf16.msra.mxu0 0
        %3021 = vmatprep.subr.bf16.mxu0 0
        %3022 = vmatpush1.bf16.msra.mxu0 %v3004
        %3023 = vmatprep.subr.bf16.mxu0 0
        %3024 = vmatpush1.bf16.msra.mxu0 %v3003
        %3025 = vmatprep.subr.bf16.mxu0 0
        %3026 = vmatpush1.bf16.msra.mxu0 %v3002
        %3027 = vmatprep.subr.bf16.mxu0 0
        %3028 = vmatpush1.bf16.msra.mxu0 %v3001
        %3029 = vmatprep.subr.bf16.mxu0 0
        %3030 = vmatpush2.bf16.msra.mxu0 0
        %3031 = vmatprep.subr.bf16.mxu0 0
        %3032 = vmatpush2.bf16.msra.mxu0 0
        %3033 = vmatprep.subr.bf16.mxu0 0
        %3034 = vmatpush2.bf16.msra.mxu0 0
        %3035 = vmatprep.subr.bf16.mxu0 0
        %3036 = vmatpush2.bf16.msra.mxu0 0
        %3037 = vmatprep.subr.bf16.mxu0 0
        %3038 = vmatpush2.bf16.msra.mxu0 0
        %3039 = vmatprep.subr.bf16.mxu0 0
        %3040 = vmatpush2.bf16.msra.mxu0 0
        %3041 = vmatprep.subr.bf16.mxu0 0
        %3042 = vmatpush2.bf16.msra.mxu0 0
        %3043 = vmatprep.subr.bf16.mxu0 0
        %3044 = vmatpush2.bf16.msra.mxu0 0
        %3045 = vmatprep.mubr.bf16.mxu0 0
        %3046 = vmatmul.mubr.bf16.gmra.mxu0 %v3011
        %v3047 = vpop.f32.mrf.mxu0
        %v3048 = vadd.f32 %v2983, %v3047
        %v3049 = vpop.f32.mrf.mxu0
        %v3050 = vpop.f32.mrf.mxu0
        %v3051 = vpop.f32.mrf.mxu0
        %3052 = vdwg.mxu0
        %v3053 = vunpack.c.l.bf16 %v2901
        %v3054 = vadd.f32 %v3048, %v3053
        %v3055 = vsel %vm803, %v3054, 0.0
        %3056 = vadd.xlane.f32.xlu0 %v3055
        %v3057 = vpop.xlane.xlu0 %3056
        %v3058 = vmul.f32 %v3057, %v1788
        %v3059 = vsub.f32 %v3054, %v3058
        %v3060 = vmul.f32 %v3059, %v3059
        %v3061 = vsel %vm803, %v3060, 0.0
        %3062 = vadd.xlane.f32.xlu0 %v3061
        %v3063 = vpop.xlane.xlu0 %3062
        %v3064 = vmul.f32 %v3063, %v1788
        %v3065 = vadd.f32 %v3064, 1e-06
        %v3066 = vrsqrt.pop %v3065
        %v3067 = vmul.f32 %v3059, %v3066
        %v3068 = vld [vmem:[%s19] sm:$0x1]
        %v3070 = vlaneseq
        %v3071 = vshrl.u32 %v3070, 7
        %v3072 = vsub.s32 0, %v3071
        %v3073 = vrot.slane %v3068, %v3072
        %v3075 = vmul.f32 %v3067, %v3073
        %v3076 = vld [vmem:[%s20] sm:$0x1]
        %v3078 = vlaneseq
        %v3079 = vshrl.u32 %v3078, 7
        %v3080 = vsub.s32 0, %v3079
        %v3081 = vrot.slane %v3076, %v3080
        %v3083 = vadd.f32 %v3075, %v3081
        %v3084 = vpack.c.bf16 %v3083, %v3083
        %vm3085 = vcmask 257024
        %3086 = vst.msk [vmem:[%s766] sm:$0xf] %vm3085, %v3084
        %s3087 = sand.u32 %s509, 1
        %s3088 = scalar_lea.sflag [#allocation4], %s3087
        %s3089 = sand.u32 %s509, 1
        %s3090 = smul.addr %s3089, 4
        %s3091 = scalar_lea.vmem [#allocation11], %s3090
        // Predicated region
        $region125: #{tpu_custom_call.1} parent=103 // pred_check
          %p3092 = pneg %p519
        $region126: #{tpu_custom_call.1} parent=103 // pred_check_branch
          %3094 = sbr.rel (%p3092) target = $region128
        $region127: #{tpu_custom_call.1} parent=103 // pred_region
          %s3096 = ssub.s32 64, 64
          %3097 = vsyncadd %s3088, %s3096
          %s3098 = smul.addr %s40, 64
          %s3099 = scalar_lea.hbm %s21, %s3098
          %s3101 = sshll.u32 %s3091, 4
          %s3102 = int_to_ptr.vmem [resolvable:$true] %s3101
          %3104 = dma.vmem_to_hbm [thread:$0]  %s3102, 64, %s3099, %s3088
        $region128: #{tpu_custom_call.1} parent=103 // pred_fallthru
          _
      $region104: #{tpu_custom_call.1} parent=5 // pred_fallthru
        _
      %p3105 = scmp.le.s32.totalorder 2, %s35
      // Predicated region
      $region129: #{tpu_custom_call.1} parent=5 // pred_check
        %p3106 = pneg %p3105
      $region130: #{tpu_custom_call.1} parent=5 // pred_check_branch
        %3108 = sbr.rel (%p3106) target = $region132
      $region131: #{tpu_custom_call.1} parent=5 // pred_region
        %s3109 = ssub.s32 %s35, 2
        // Predicated region
        $region133: #{tpu_custom_call.1} parent=131 // pred_check
          %p3110 = pneg %p525
        $region134: #{tpu_custom_call.1} parent=131 // pred_check_branch
          %3112 = sbr.rel (%p3110) target = $region136
        $region135: #{tpu_custom_call.1} parent=131 // pred_region
          %s3113 = sand.u32 %s510, 1
          %s3114 = scalar_lea.sflag [#allocation4], %s3113
          %s3115 = sand.u32 %s510, 1
          %s3116 = smul.addr %s3115, 4
          %s3117 = scalar_lea.vmem [#allocation11], %s3116
          %3118 = dma.done %s3114, 64
        $region136: #{tpu_custom_call.1} parent=131 // pred_fallthru
          _
      $region132: #{tpu_custom_call.1} parent=5 // pred_fallthru
        _
    $region6: #{tpu_custom_call.1} parent=1 // loop_footer
      %s39 = sadd.s32 1, %s35
    $region7: #{tpu_custom_call.1} parent=1 // loop_footer_branch
      %34 = sbr.rel target = $region3
    $region8: #{tpu_custom_call.1} parent=1 // loop_exit
      _
    %3119 = vsyncpa [#allocation3], 1
    %s3120 = scalar_lea.sflag [#allocation3], 1
    %3121 = vsyncpa %s3120, 1
    %3122 = vsyncpa [#allocation6], 1
    %3123 = vsyncpa [#allocation9], 1
    %3124 = vsyncpa [#allocation4], 1
    %s3125 = scalar_lea.sflag [#allocation4], 1
    %3126 = vsyncpa %s3125, 1

</llo_original>
